<compile_context>
chip_gen: v7x
topology: tpu7x:2x2x1
jax: 0.10.0
libtpu: 0.0.40
codegen_flags: <defaults>
</compile_context>

<pallas_src>
import jax
import jax.numpy as jnp
from jax.experimental import pallas as pl
from jax.experimental.pallas import tpu as pltpu

EPS = 1e-5                      # torch.nn.InstanceNorm2d default eps
LANE = 128                      # TPU lane width; channel padding target
VMEM_LIMIT = 32 * 1024 * 1024   # explicit scoped-VMEM budget (safe on v5e/v6e/v7x)


def _round_up(x, m):
    return (x + m - 1) // m * m


def _pick_hw_tile(hw, cap=2048):
    """Largest tile <= cap that divides hw and keeps the sublane dim 8-aligned."""
    if hw <= cap:
        return hw
    for t in range(cap, 7, -1):
        if hw % t == 0 and t % 8 == 0:
            return t
    return hw


# --------------------------- Pallas kernels ---------------------------------

def _gemm_kernel(p_ref, w_ref, o_ref):
    # (TM, K) bf16 @ (K, Coutp) bf16 -> (TM, Coutp) f32 on the MXU.
    o_ref[...] = jnp.dot(p_ref[...], w_ref[...],
                         preferred_element_type=jnp.float32)


def conv_gemm(patches, w_mat, tm=512):
    """patches: (M, K) bf16, w_mat: (K, Coutp) bf16 -> (M, Coutp) f32."""
    M, K = patches.shape
    _, Coutp = w_mat.shape
    TM = min(tm, M)
    grid = (pl.cdiv(M, TM),)
    return pl.pallas_call(
        _gemm_kernel,
        out_shape=jax.ShapeDtypeStruct((M, Coutp), jnp.float32),
        grid=grid,
        in_specs=[pl.BlockSpec((TM, K), lambda m: (m, 0)),      # streamed
                  pl.BlockSpec((K, Coutp), lambda m: (0, 0))],  # resident weights
        out_specs=pl.BlockSpec((TM, Coutp), lambda m: (m, 0)),
        compiler_params=pltpu.CompilerParams(
            dimension_semantics=("parallel",),
            vmem_limit_bytes=VMEM_LIMIT),
    )(patches, w_mat)


def _make_in_stats_kernel(hw):
    inv_hw = 1.0 / float(hw)

    def kernel(x_ref, mean_ref, rstd_ref):
        t = pl.program_id(1)

        @pl.when(t == 0)
        def _init():
            mean_ref[...] = jnp.zeros_like(mean_ref)
            rstd_ref[...] = jnp.zeros_like(rstd_ref)

        x = x_ref[0].astype(jnp.float32)                  # (THW, Cp)
        mean_ref[0] += jnp.sum(x, axis=0, keepdims=True)      # running sum
        rstd_ref[0] += jnp.sum(x * x, axis=0, keepdims=True)  # running sum of squares

        @pl.when(t == pl.num_programs(1) - 1)
        def _finalize():
            s = mean_ref[0]
            sq = rstd_ref[0]
            m = s * inv_hw
            v = jnp.maximum(sq * inv_hw - m * m, 0.0)     # biased var (torch IN)
            mean_ref[0] = m
            rstd_ref[0] = jax.lax.rsqrt(v + EPS)

    return kernel


def _in_apply_kernel(x_ref, mean_ref, rstd_ref, g_ref, b_ref, o_ref):
    x = x_ref[0].astype(jnp.float32)                      # (THW, Cp)
    m = mean_ref[0]                                       # (1, Cp)
    r = rstd_ref[0]
    g = g_ref[0]
    b = b_ref[0]
    y = (x - m) * (r * g) + b
    o_ref[0] = jnp.maximum(y, 0.0).astype(o_ref.dtype)


def instance_norm_relu(x_nhwc, gamma_p, beta_p, out_dtype=jnp.float32):
    """x_nhwc: (N, H, W, Cp) f32; gamma_p/beta_p: (Cp,) (zero in pad lanes)."""
    N, H, W, Cp = x_nhwc.shape
    HW = H * W
    x3 = x_nhwc.reshape(N, HW, Cp)                        # free reshape (no transpose)
    THW = _pick_hw_tile(HW)
    grid = (N, HW // THW)

    mean, rstd = pl.pallas_call(
        _make_in_stats_kernel(HW),
        out_shape=(jax.ShapeDtypeStruct((N, 1, Cp), jnp.float32),
                   jax.ShapeDtypeStruct((N, 1, Cp), jnp.float32)),
        grid=grid,
        in_specs=[pl.BlockSpec((1, THW, Cp), lambda n, t: (n, t, 0))],
        out_specs=(pl.BlockSpec((1, 1, Cp), lambda n, t: (n, 0, 0)),
                   pl.BlockSpec((1, 1, Cp), lambda n, t: (n, 0, 0))),
        compiler_params=pltpu.CompilerParams(
            dimension_semantics=("parallel", "arbitrary"),
            vmem_limit_bytes=VMEM_LIMIT),
    )(x3)

    g3 = gamma_p.reshape(1, 1, Cp).astype(jnp.float32)
    b3 = beta_p.reshape(1, 1, Cp).astype(jnp.float32)

    y = pl.pallas_call(
        _in_apply_kernel,
        out_shape=jax.ShapeDtypeStruct((N, HW, Cp), out_dtype),
        grid=grid,
        in_specs=[pl.BlockSpec((1, THW, Cp), lambda n, t: (n, t, 0)),
                  pl.BlockSpec((1, 1, Cp), lambda n, t: (n, 0, 0)),
                  pl.BlockSpec((1, 1, Cp), lambda n, t: (n, 0, 0)),
                  pl.BlockSpec((1, 1, Cp), lambda n, t: (0, 0, 0)),
                  pl.BlockSpec((1, 1, Cp), lambda n, t: (0, 0, 0))],
        out_specs=pl.BlockSpec((1, THW, Cp), lambda n, t: (n, t, 0)),
        compiler_params=pltpu.CompilerParams(
            dimension_semantics=("parallel", "parallel"),
            vmem_limit_bytes=VMEM_LIMIT),
    )(x3, mean, rstd, g3, b3)

    return y.reshape(N, H, W, Cp)


# ------------------------------- glue ----------------------------------------

def _im2col_nhwc(xp, kh, kw, stride):
    """xp: (N, Hp, Wp, C) -> (N*Ho*Wo, kh*kw*C); K ordered (i, j, c)."""
    N, Hp, Wp, C = xp.shape
    Ho = (Hp - kh) // stride + 1
    Wo = (Wp - kw) // stride + 1
    taps = []
    for i in range(kh):
        for j in range(kw):
            taps.append(xp[:,
                           i:i + stride * (Ho - 1) + 1:stride,
                           j:j + stride * (Wo - 1) + 1:stride,
                           :])
    p = jnp.stack(taps, axis=3)                           # (N, Ho, Wo, kh*kw, C)
    p = p.reshape(N * Ho * Wo, kh * kw * C)
    return p, Ho, Wo


def conv2d_nhwc(x, w, stride, pad, pad_mode):
    """x: (N, H, W, Cin_p) float; w: (Cout, Cin, kh, kw) f32 (bias=False).
    Returns (N, Ho, Wo, Coutp) f32 with Coutp = round_up(Cout, 128)."""
    N, H, W, Cin_p = x.shape
    Cout, Cin, kh, kw = w.shape
    Coutp = _round_up(Cout, LANE)

    # Zero-pad weight input channels up to the (padded) activation channel count
    # and output channels up to a lane-dense multiple of 128.
    w = jnp.pad(w, ((0, Coutp - Cout), (0, Cin_p - Cin), (0, 0), (0, 0)))
    w_mat = w.transpose(2, 3, 1, 0).reshape(kh * kw * Cin_p, Coutp)
    w_mat = w_mat.astype(jnp.bfloat16)

    x = x.astype(jnp.bfloat16)
    if pad > 0:
        x = jnp.pad(x, ((0, 0), (pad, pad), (pad, pad), (0, 0)), mode=pad_mode)

    patches, Ho, Wo = _im2col_nhwc(x, kh, kw, stride)     # bf16 (M, K)
    out = conv_gemm(patches, w_mat)                       # Pallas MXU GEMM, f32
    return out.reshape(N, Ho, Wo, Coutp)


def _pad_c(v):
    c = v.shape[0]
    return jnp.pad(v, (0, _round_up(c, LANE) - c))


def down_conv_forward(x, params):
    (w1, g1, b1, w2, g2, b2, w3, g3, b3) = params
    nf = w3.shape[0]

    x = jnp.transpose(x, (0, 2, 3, 1))                    # NCHW -> NHWC (boundary only)

    # ReflectionPad2d(3) + Conv2d(nIn, nf/4, 7, bias=False) + IN + ReLU
    h = conv2d_nhwc(x, w1, stride=1, pad=3, pad_mode="reflect")
    h = instance_norm_relu(h, _pad_c(g1), _pad_c(b1), out_dtype=jnp.bfloat16)

    # Conv2d(nf/4, nf/2, 3, stride=2, padding=1, bias=False) + IN + ReLU
    h = conv2d_nhwc(h, w2, stride=2, pad=1, pad_mode="constant")
    h = instance_norm_relu(h, _pad_c(g2), _pad_c(b2), out_dtype=jnp.bfloat16)

    # Conv2d(nf/2, nf, 3, stride=2, padding=1, bias=False) + IN + ReLU
    h = conv2d_nhwc(h, w3, stride=2, pad=1, pad_mode="constant")
    h = instance_norm_relu(h, _pad_c(g3), _pad_c(b3), out_dtype=jnp.float32)

    h = h[..., :nf]                                       # drop channel padding
    return jnp.transpose(h, (0, 3, 1, 2))                 # back to NCHW


def init_params(key, nIn, nf):
    c1, c2, c3 = nf // 4, nf // 2, nf
    ks = jax.random.split(key, 9)

    def conv_w(k, cout, cin, kh, kw):
        fan_in = cin * kh * kw
        bound = 1.0 / jnp.sqrt(float(fan_in))
        return jax.random.uniform(k, (cout, cin, kh, kw), jnp.float32,
                                  -bound, bound)

    def affine(kg, kb, c):
        gamma = 1.0 + 0.1 * jax.random.normal(kg, (c,), jnp.float32)
        beta = 0.1 * jax.random.normal(kb, (c,), jnp.float32)
        return gamma, beta

    w1 = conv_w(ks[0], c1, nIn, 7, 7)
    g1, b1 = affine(ks[1], ks[2], c1)
    w2 = conv_w(ks[3], c2, c1, 3, 3)
    g2, b2 = affine(ks[4], ks[5], c2)
    w3 = conv_w(ks[6], c3, c2, 3, 3)
    g3, b3 = affine(ks[7], ks[8], c3)
    return (w1, g1, b1, w2, g2, b2, w3, g3, b3)


if __name__ == "__main__":
    key = jax.random.PRNGKey(0)
    kx, kp = jax.random.split(key)

    N, nIn, H, W = 2, 3, 16, 16
    nf = 32  # small stand-in for the default 128

    x = jax.random.normal(kx, (N, nIn, H, W), dtype=jnp.float32)
    params = init_params(kp, nIn, nf)

    fwd = jax.jit(down_conv_forward)
    out = fwd(x, params)
    out = jax.block_until_ready(out)

    assert out.shape == (N, nf, H // 4, W // 4), out.shape
    assert out.dtype == jnp.float32
    assert bool(jnp.all(out >= 0.0))  # final ReLU
    print("KERNEL_OK")
</pallas_src>

<mosaic_0001>
module attributes {stable_mosaic.version = 11 : i64} {
  func.func @_gemm_kernel(%arg0: i32, %arg1: memref<512x147xbf16, #tpu.memory_space<vmem>>, %arg2: memref<147x128xbf16, #tpu.memory_space<vmem>>, %arg3: memref<512x128xf32, #tpu.memory_space<vmem>>) attributes {dimension_semantics = [#tpu.dimension_semantics<parallel>], iteration_bounds = array<i64: 1>, scalar_prefetch = 0 : i64, scratch_operands = 0 : i64, tpu.core_type = #tpu.core_type<tc>, window_params = [{transform_indices = @transform_0, window_bounds = array<i64: 512, 147>}, {pipeline_mode = #tpu.pipeline_mode<synchronous>, transform_indices = @transform_1, window_bounds = array<i64: 147, 128>}, {transform_indices = @transform_2, window_bounds = array<i64: 512, 128>}]} {
    %c0 = arith.constant 0 : index
    %c0_0 = arith.constant 0 : index
    %0 = vector.load %arg1[%c0, %c0_0] : memref<512x147xbf16, #tpu.memory_space<vmem>>, vector<512x147xbf16>
    %c0_1 = arith.constant 0 : index
    %c0_2 = arith.constant 0 : index
    %1 = vector.load %arg2[%c0_1, %c0_2] : memref<147x128xbf16, #tpu.memory_space<vmem>>, vector<147x128xbf16>
    %cst = arith.constant dense<0.000000e+00> : vector<512x128xf32>
    %2 = tpu.matmul %0, %1, %cst {dimension_numbers = #tpu.dot_dimension_numbers<[1], [0], [0], [1], [0, 0, 1, 1], [], []>} : vector<512x147xbf16>, vector<147x128xbf16>, vector<512x128xf32> -> vector<512x128xf32>
    %c0_3 = arith.constant 0 : index
    %c0_4 = arith.constant 0 : index
    %3 = vector.load %arg3[%c0_3, %c0_4] : memref<512x128xf32, #tpu.memory_space<vmem>>, vector<512x128xf32>
    tpu.vector_store %arg3[%c0_3, %c0_4], %2 {strides = array<i32>} : memref<512x128xf32, #tpu.memory_space<vmem>>, vector<512x128xf32>,
    return
  }
  func.func @transform_0(%arg0: i32) -> (i32, i32) {
    %c0_i32 = arith.constant 0 : i32
    %c0_i32_0 = arith.constant 0 : i32
    return %arg0, %c0_i32 : i32, i32
  }
  func.func @transform_1(%arg0: i32) -> (i32, i32) {
    %c0_i32 = arith.constant 0 : i32
    %c0_i32_0 = arith.constant 0 : i32
    %c0_i32_1 = arith.constant 0 : i32
    return %c0_i32, %c0_i32_0 : i32, i32
  }
  func.func @transform_2(%arg0: i32) -> (i32, i32) {
    %c0_i32 = arith.constant 0 : i32
    %c0_i32_0 = arith.constant 0 : i32
    return %arg0, %c0_i32 : i32, i32
  }
}

module attributes {stable_mosaic.version = 11 : i64} {
  func.func @kernel(%arg0: i32, %arg1: i32, %arg2: memref<1x256x128xf32, #tpu.memory_space<vmem>>, %arg3: memref<1x1x128xf32, #tpu.memory_space<vmem>>, %arg4: memref<1x1x128xf32, #tpu.memory_space<vmem>>) attributes {dimension_semantics = [#tpu.dimension_semantics<parallel>, #tpu.dimension_semantics<arbitrary>], iteration_bounds = array<i64: 2, 1>, scalar_prefetch = 0 : i64, scratch_operands = 0 : i64, tpu.core_type = #tpu.core_type<tc>, window_params = [{transform_indices = @transform_0, window_bounds = array<i64: 1, 256, 128>}, {transform_indices = @transform_1, window_bounds = array<i64: 1, 1, 128>}, {transform_indices = @transform_2, window_bounds = array<i64: 1, 1, 128>}]} {
    %c0_i32 = arith.constant 0 : i32
    %0 = arith.cmpi eq, %arg1, %c0_i32 : i32
    %1 = arith.extui %0 : i1 to i32
    %c0_i32_0 = arith.constant 0 : i32
    %2 = arith.cmpi ne, %1, %c0_i32_0 : i32
    scf.if %2 {
      %cst_18 = arith.constant 0.000000e+00 : f32
      %25 = vector.broadcast %cst_18 : f32 to vector<1x1x128xf32>
      %c0_19 = arith.constant 0 : index
      %c0_20 = arith.constant 0 : index
      %c0_21 = arith.constant 0 : index
      %26 = vector.load %arg3[%c0_19, %c0_20, %c0_21] : memref<1x1x128xf32, #tpu.memory_space<vmem>>, vector<1x1x128xf32>
      tpu.vector_store %arg3[%c0_19, %c0_20, %c0_21], %25 {strides = array<i32>} : memref<1x1x128xf32, #tpu.memory_space<vmem>>, vector<1x1x128xf32>,
      %cst_22 = arith.constant 0.000000e+00 : f32
      %27 = vector.broadcast %cst_22 : f32 to vector<1x1x128xf32>
      %c0_23 = arith.constant 0 : index
      %c0_24 = arith.constant 0 : index
      %c0_25 = arith.constant 0 : index
      %28 = vector.load %arg4[%c0_23, %c0_24, %c0_25] : memref<1x1x128xf32, #tpu.memory_space<vmem>>, vector<1x1x128xf32>
      tpu.vector_store %arg4[%c0_23, %c0_24, %c0_25], %27 {strides = array<i32>} : memref<1x1x128xf32, #tpu.memory_space<vmem>>, vector<1x1x128xf32>,
    } else {
    }
    %c0 = arith.constant 0 : index
    %c0_1 = arith.constant 0 : index
    %c0_2 = arith.constant 0 : index
    %3 = vector.load %arg2[%c0, %c0_1, %c0_2] : memref<1x256x128xf32, #tpu.memory_space<vmem>>, vector<1x256x128xf32>
    %4 = vector.shape_cast %3 : vector<1x256x128xf32> to vector<256x128xf32>
    %c0_3 = arith.constant 0 : index
    %c0_4 = arith.constant 0 : index
    %c0_5 = arith.constant 0 : index
    %5 = vector.load %arg3[%c0_3, %c0_4, %c0_5] : memref<1x1x128xf32, #tpu.memory_space<vmem>>, vector<1x1x128xf32>
    %6 = vector.shape_cast %5 : vector<1x1x128xf32> to vector<1x128xf32>
    %cst = arith.constant dense<0.000000e+00> : vector<128xf32>
    %7 = vector.multi_reduction <add>, %4, %cst [0] : vector<256x128xf32> to vector<128xf32>
    %8 = vector.shape_cast %7 : vector<128xf32> to vector<1x128xf32>
    %9 = arith.addf %6, %8 : vector<1x128xf32>
    %c0_6 = arith.constant 0 : index
    %c0_7 = arith.constant 0 : index
    %c0_8 = arith.constant 0 : index
    %10 = vector.load %arg3[%c0_6, %c0_7, %c0_8] : memref<1x1x128xf32, #tpu.memory_space<vmem>>, vector<1x1x128xf32>
    %11 = vector.shape_cast %10 : vector<1x1x128xf32> to vector<1x128xf32>
    %12 = vector.shape_cast %9 : vector<1x128xf32> to vector<1x1x128xf32>
    tpu.vector_store %arg3[%c0_6, %c0_7, %c0_8], %12 {strides = array<i32>} : memref<1x1x128xf32, #tpu.memory_space<vmem>>, vector<1x1x128xf32>,
    %c0_9 = arith.constant 0 : index
    %c0_10 = arith.constant 0 : index
    %c0_11 = arith.constant 0 : index
    %13 = vector.load %arg4[%c0_9, %c0_10, %c0_11] : memref<1x1x128xf32, #tpu.memory_space<vmem>>, vector<1x1x128xf32>
    %14 = vector.shape_cast %13 : vector<1x1x128xf32> to vector<1x128xf32>
    %15 = arith.mulf %4, %4 : vector<256x128xf32>
    %cst_12 = arith.constant dense<0.000000e+00> : vector<128xf32>
    %16 = vector.multi_reduction <add>, %15, %cst_12 [0] : vector<256x128xf32> to vector<128xf32>
    %17 = vector.shape_cast %16 : vector<128xf32> to vector<1x128xf32>
    %18 = arith.addf %14, %17 : vector<1x128xf32>
    %c0_13 = arith.constant 0 : index
    %c0_14 = arith.constant 0 : index
    %c0_15 = arith.constant 0 : index
    %19 = vector.load %arg4[%c0_13, %c0_14, %c0_15] : memref<1x1x128xf32, #tpu.memory_space<vmem>>, vector<1x1x128xf32>
    %20 = vector.shape_cast %19 : vector<1x1x128xf32> to vector<1x128xf32>
    %21 = vector.shape_cast %18 : vector<1x128xf32> to vector<1x1x128xf32>
    tpu.vector_store %arg4[%c0_13, %c0_14, %c0_15], %21 {strides = array<i32>} : memref<1x1x128xf32, #tpu.memory_space<vmem>>, vector<1x1x128xf32>,
    %c0_i32_16 = arith.constant 0 : i32
    %22 = arith.cmpi eq, %arg1, %c0_i32_16 : i32
    %23 = arith.extui %22 : i1 to i32
    %c0_i32_17 = arith.constant 0 : i32
    %24 = arith.cmpi ne, %23, %c0_i32_17 : i32
    scf.if %24 {
      %c0_18 = arith.constant 0 : index
      %c0_19 = arith.constant 0 : index
      %c0_20 = arith.constant 0 : index
      %25 = vector.load %arg3[%c0_18, %c0_19, %c0_20] : memref<1x1x128xf32, #tpu.memory_space<vmem>>, vector<1x1x128xf32>
      %26 = vector.shape_cast %25 : vector<1x1x128xf32> to vector<1x128xf32>
      %c0_21 = arith.constant 0 : index
      %c0_22 = arith.constant 0 : index
      %c0_23 = arith.constant 0 : index
      %27 = vector.load %arg4[%c0_21, %c0_22, %c0_23] : memref<1x1x128xf32, #tpu.memory_space<vmem>>, vector<1x1x128xf32>
      %28 = vector.shape_cast %27 : vector<1x1x128xf32> to vector<1x128xf32>
      %cst_24 = arith.constant 3.906250e-03 : f32
      %29 = vector.broadcast %cst_24 : f32 to vector<1x128xf32>
      %30 = arith.mulf %26, %29 : vector<1x128xf32>
      %cst_25 = arith.constant 3.906250e-03 : f32
      %31 = vector.broadcast %cst_25 : f32 to vector<1x128xf32>
      %32 = arith.mulf %28, %31 : vector<1x128xf32>
      %33 = arith.mulf %30, %30 : vector<1x128xf32>
      %34 = arith.subf %32, %33 : vector<1x128xf32>
      %cst_26 = arith.constant 0.000000e+00 : f32
      %35 = vector.broadcast %cst_26 : f32 to vector<1x128xf32>
      %36 = arith.maximumf %34, %35 : vector<1x128xf32>
      %c0_27 = arith.constant 0 : index
      %c0_28 = arith.constant 0 : index
      %c0_29 = arith.constant 0 : index
      %37 = vector.load %arg3[%c0_27, %c0_28, %c0_29] : memref<1x1x128xf32, #tpu.memory_space<vmem>>, vector<1x1x128xf32>
      %38 = vector.shape_cast %37 : vector<1x1x128xf32> to vector<1x128xf32>
      %39 = vector.shape_cast %30 : vector<1x128xf32> to vector<1x1x128xf32>
      tpu.vector_store %arg3[%c0_27, %c0_28, %c0_29], %39 {strides = array<i32>} : memref<1x1x128xf32, #tpu.memory_space<vmem>>, vector<1x1x128xf32>,
      %cst_30 = arith.constant 9.99999974E-6 : f32
      %40 = vector.broadcast %cst_30 : f32 to vector<1x128xf32>
      %41 = arith.addf %36, %40 : vector<1x128xf32>
      %42 = math.rsqrt %41 : vector<1x128xf32>
      %c0_31 = arith.constant 0 : index
      %c0_32 = arith.constant 0 : index
      %c0_33 = arith.constant 0 : index
      %43 = vector.load %arg4[%c0_31, %c0_32, %c0_33] : memref<1x1x128xf32, #tpu.memory_space<vmem>>, vector<1x1x128xf32>
      %44 = vector.shape_cast %43 : vector<1x1x128xf32> to vector<1x128xf32>
      %45 = vector.shape_cast %42 : vector<1x128xf32> to vector<1x1x128xf32>
      tpu.vector_store %arg4[%c0_31, %c0_32, %c0_33], %45 {strides = array<i32>} : memref<1x1x128xf32, #tpu.memory_space<vmem>>, vector<1x1x128xf32>,
    } else {
    }
    return
  }
  func.func @transform_0(%arg0: i32, %arg1: i32) -> (i32, i32, i32) {
    %c0_i32 = arith.constant 0 : i32
    %c0_i32_0 = arith.constant 0 : i32
    return %arg0, %arg1, %c0_i32 : i32, i32, i32
  }
  func.func @transform_1(%arg0: i32, %arg1: i32) -> (i32, i32, i32) {
    %c0_i32 = arith.constant 0 : i32
    %c0_i32_0 = arith.constant 0 : i32
    %c0_i32_1 = arith.constant 0 : i32
    return %arg0, %c0_i32, %c0_i32_0 : i32, i32, i32
  }
  func.func @transform_2(%arg0: i32, %arg1: i32) -> (i32, i32, i32) {
    %c0_i32 = arith.constant 0 : i32
    %c0_i32_0 = arith.constant 0 : i32
    %c0_i32_1 = arith.constant 0 : i32
    return %arg0, %c0_i32, %c0_i32_0 : i32, i32, i32
  }
}

module attributes {stable_mosaic.version = 11 : i64} {
  func.func @_in_apply_kernel(%arg0: i32, %arg1: i32, %arg2: memref<1x256x128xf32, #tpu.memory_space<vmem>>, %arg3: memref<1x1x128xf32, #tpu.memory_space<vmem>>, %arg4: memref<1x1x128xf32, #tpu.memory_space<vmem>>, %arg5: memref<1x1x128xf32, #tpu.memory_space<vmem>>, %arg6: memref<1x1x128xf32, #tpu.memory_space<vmem>>, %arg7: memref<1x256x128xbf16, #tpu.memory_space<vmem>>) attributes {dimension_semantics = [#tpu.dimension_semantics<parallel>, #tpu.dimension_semantics<parallel>], iteration_bounds = array<i64: 2, 1>, scalar_prefetch = 0 : i64, scratch_operands = 0 : i64, tpu.core_type = #tpu.core_type<tc>, window_params = [{transform_indices = @transform_0, window_bounds = array<i64: 1, 256, 128>}, {transform_indices = @transform_1, window_bounds = array<i64: 1, 1, 128>}, {transform_indices = @transform_2, window_bounds = array<i64: 1, 1, 128>}, {pipeline_mode = #tpu.pipeline_mode<synchronous>, transform_indices = @transform_3, window_bounds = array<i64: 1, 1, 128>}, {pipeline_mode = #tpu.pipeline_mode<synchronous>, transform_indices = @transform_4, window_bounds = array<i64: 1, 1, 128>}, {transform_indices = @transform_5, window_bounds = array<i64: 1, 256, 128>}]} {
    %c0 = arith.constant 0 : index
    %c0_0 = arith.constant 0 : index
    %c0_1 = arith.constant 0 : index
    %0 = vector.load %arg2[%c0, %c0_0, %c0_1] : memref<1x256x128xf32, #tpu.memory_space<vmem>>, vector<1x256x128xf32>
    %1 = vector.shape_cast %0 : vector<1x256x128xf32> to vector<256x128xf32>
    %c0_2 = arith.constant 0 : index
    %c0_3 = arith.constant 0 : index
    %c0_4 = arith.constant 0 : index
    %2 = vector.load %arg3[%c0_2, %c0_3, %c0_4] : memref<1x1x128xf32, #tpu.memory_space<vmem>>, vector<1x1x128xf32>
    %3 = vector.shape_cast %2 : vector<1x1x128xf32> to vector<1x128xf32>
    %c0_5 = arith.constant 0 : index
    %c0_6 = arith.constant 0 : index
    %c0_7 = arith.constant 0 : index
    %4 = vector.load %arg4[%c0_5, %c0_6, %c0_7] : memref<1x1x128xf32, #tpu.memory_space<vmem>>, vector<1x1x128xf32>
    %5 = vector.shape_cast %4 : vector<1x1x128xf32> to vector<1x128xf32>
    %c0_8 = arith.constant 0 : index
    %c0_9 = arith.constant 0 : index
    %c0_10 = arith.constant 0 : index
    %6 = vector.load %arg5[%c0_8, %c0_9, %c0_10] : memref<1x1x128xf32, #tpu.memory_space<vmem>>, vector<1x1x128xf32>
    %7 = vector.shape_cast %6 : vector<1x1x128xf32> to vector<1x128xf32>
    %c0_11 = arith.constant 0 : index
    %c0_12 = arith.constant 0 : index
    %c0_13 = arith.constant 0 : index
    %8 = vector.load %arg6[%c0_11, %c0_12, %c0_13] : memref<1x1x128xf32, #tpu.memory_space<vmem>>, vector<1x1x128xf32>
    %9 = vector.shape_cast %8 : vector<1x1x128xf32> to vector<1x128xf32>
    %10 = vector.broadcast %3 : vector<1x128xf32> to vector<256x128xf32>
    %11 = arith.subf %1, %10 : vector<256x128xf32>
    %12 = arith.mulf %5, %7 : vector<1x128xf32>
    %13 = vector.broadcast %12 : vector<1x128xf32> to vector<256x128xf32>
    %14 = arith.mulf %11, %13 : vector<256x128xf32>
    %15 = vector.broadcast %9 : vector<1x128xf32> to vector<256x128xf32>
    %16 = arith.addf %14, %15 : vector<256x128xf32>
    %cst = arith.constant 0.000000e+00 : f32
    %17 = vector.broadcast %cst : f32 to vector<256x128xf32>
    %18 = arith.maximumf %16, %17 : vector<256x128xf32>
    %19 = arith.truncf %18 : vector<256x128xf32> to vector<256x128xbf16>
    %c0_14 = arith.constant 0 : index
    %c0_15 = arith.constant 0 : index
    %c0_16 = arith.constant 0 : index
    %20 = vector.load %arg7[%c0_14, %c0_15, %c0_16] : memref<1x256x128xbf16, #tpu.memory_space<vmem>>, vector<1x256x128xbf16>
    %21 = vector.shape_cast %20 : vector<1x256x128xbf16> to vector<256x128xbf16>
    %22 = vector.shape_cast %19 : vector<256x128xbf16> to vector<1x256x128xbf16>
    tpu.vector_store %arg7[%c0_14, %c0_15, %c0_16], %22 {strides = array<i32>} : memref<1x256x128xbf16, #tpu.memory_space<vmem>>, vector<1x256x128xbf16>,
    return
  }
  func.func @transform_0(%arg0: i32, %arg1: i32) -> (i32, i32, i32) {
    %c0_i32 = arith.constant 0 : i32
    %c0_i32_0 = arith.constant 0 : i32
    return %arg0, %arg1, %c0_i32 : i32, i32, i32
  }
  func.func @transform_1(%arg0: i32, %arg1: i32) -> (i32, i32, i32) {
    %c0_i32 = arith.constant 0 : i32
    %c0_i32_0 = arith.constant 0 : i32
    %c0_i32_1 = arith.constant 0 : i32
    return %arg0, %c0_i32, %c0_i32_0 : i32, i32, i32
  }
  func.func @transform_2(%arg0: i32, %arg1: i32) -> (i32, i32, i32) {
    %c0_i32 = arith.constant 0 : i32
    %c0_i32_0 = arith.constant 0 : i32
    %c0_i32_1 = arith.constant 0 : i32
    return %arg0, %c0_i32, %c0_i32_0 : i32, i32, i32
  }
  func.func @transform_3(%arg0: i32, %arg1: i32) -> (i32, i32, i32) {
    %c0_i32 = arith.constant 0 : i32
    %c0_i32_0 = arith.constant 0 : i32
    %c0_i32_1 = arith.constant 0 : i32
    %c0_i32_2 = arith.constant 0 : i32
    return %c0_i32, %c0_i32_0, %c0_i32_1 : i32, i32, i32
  }
  func.func @transform_4(%arg0: i32, %arg1: i32) -> (i32, i32, i32) {
    %c0_i32 = arith.constant 0 : i32
    %c0_i32_0 = arith.constant 0 : i32
    %c0_i32_1 = arith.constant 0 : i32
    %c0_i32_2 = arith.constant 0 : i32
    return %c0_i32, %c0_i32_0, %c0_i32_1 : i32, i32, i32
  }
  func.func @transform_5(%arg0: i32, %arg1: i32) -> (i32, i32, i32) {
    %c0_i32 = arith.constant 0 : i32
    %c0_i32_0 = arith.constant 0 : i32
    return %arg0, %arg1, %c0_i32 : i32, i32, i32
  }
}

module attributes {stable_mosaic.version = 11 : i64} {
  func.func @_gemm_kernel(%arg0: i32, %arg1: memref<128x1152xbf16, #tpu.memory_space<vmem>>, %arg2: memref<1152x128xbf16, #tpu.memory_space<vmem>>, %arg3: memref<128x128xf32, #tpu.memory_space<vmem>>) attributes {dimension_semantics = [#tpu.dimension_semantics<parallel>], iteration_bounds = array<i64: 1>, scalar_prefetch = 0 : i64, scratch_operands = 0 : i64, tpu.core_type = #tpu.core_type<tc>, window_params = [{transform_indices = @transform_0, window_bounds = array<i64: 128, 1152>}, {pipeline_mode = #tpu.pipeline_mode<synchronous>, transform_indices = @transform_1, window_bounds = array<i64: 1152, 128>}, {transform_indices = @transform_2, window_bounds = array<i64: 128, 128>}]} {
    %c0 = arith.constant 0 : index
    %c0_0 = arith.constant 0 : index
    %0 = vector.load %arg1[%c0, %c0_0] : memref<128x1152xbf16, #tpu.memory_space<vmem>>, vector<128x1152xbf16>
    %c0_1 = arith.constant 0 : index
    %c0_2 = arith.constant 0 : index
    %1 = vector.load %arg2[%c0_1, %c0_2] : memref<1152x128xbf16, #tpu.memory_space<vmem>>, vector<1152x128xbf16>
    %cst = arith.constant dense<0.000000e+00> : vector<128x128xf32>
    %2 = tpu.matmul %0, %1, %cst {dimension_numbers = #tpu.dot_dimension_numbers<[1], [0], [0], [1], [0, 0, 1, 1], [], []>} : vector<128x1152xbf16>, vector<1152x128xbf16>, vector<128x128xf32> -> vector<128x128xf32>
    %c0_3 = arith.constant 0 : index
    %c0_4 = arith.constant 0 : index
    %3 = vector.load %arg3[%c0_3, %c0_4] : memref<128x128xf32, #tpu.memory_space<vmem>>, vector<128x128xf32>
    tpu.vector_store %arg3[%c0_3, %c0_4], %2 {strides = array<i32>} : memref<128x128xf32, #tpu.memory_space<vmem>>, vector<128x128xf32>,
    return
  }
  func.func @transform_0(%arg0: i32) -> (i32, i32) {
    %c0_i32 = arith.constant 0 : i32
    %c0_i32_0 = arith.constant 0 : i32
    return %arg0, %c0_i32 : i32, i32
  }
  func.func @transform_1(%arg0: i32) -> (i32, i32) {
    %c0_i32 = arith.constant 0 : i32
    %c0_i32_0 = arith.constant 0 : i32
    %c0_i32_1 = arith.constant 0 : i32
    return %c0_i32, %c0_i32_0 : i32, i32
  }
  func.func @transform_2(%arg0: i32) -> (i32, i32) {
    %c0_i32 = arith.constant 0 : i32
    %c0_i32_0 = arith.constant 0 : i32
    return %arg0, %c0_i32 : i32, i32
  }
}

module attributes {stable_mosaic.version = 11 : i64} {
  func.func @kernel(%arg0: i32, %arg1: i32, %arg2: memref<1x64x128xf32, #tpu.memory_space<vmem>>, %arg3: memref<1x1x128xf32, #tpu.memory_space<vmem>>, %arg4: memref<1x1x128xf32, #tpu.memory_space<vmem>>) attributes {dimension_semantics = [#tpu.dimension_semantics<parallel>, #tpu.dimension_semantics<arbitrary>], iteration_bounds = array<i64: 2, 1>, scalar_prefetch = 0 : i64, scratch_operands = 0 : i64, tpu.core_type = #tpu.core_type<tc>, window_params = [{transform_indices = @transform_0, window_bounds = array<i64: 1, 64, 128>}, {transform_indices = @transform_1, window_bounds = array<i64: 1, 1, 128>}, {transform_indices = @transform_2, window_bounds = array<i64: 1, 1, 128>}]} {
    %c0_i32 = arith.constant 0 : i32
    %0 = arith.cmpi eq, %arg1, %c0_i32 : i32
    %1 = arith.extui %0 : i1 to i32
    %c0_i32_0 = arith.constant 0 : i32
    %2 = arith.cmpi ne, %1, %c0_i32_0 : i32
    scf.if %2 {
      %cst_18 = arith.constant 0.000000e+00 : f32
      %25 = vector.broadcast %cst_18 : f32 to vector<1x1x128xf32>
      %c0_19 = arith.constant 0 : index
      %c0_20 = arith.constant 0 : index
      %c0_21 = arith.constant 0 : index
      %26 = vector.load %arg3[%c0_19, %c0_20, %c0_21] : memref<1x1x128xf32, #tpu.memory_space<vmem>>, vector<1x1x128xf32>
      tpu.vector_store %arg3[%c0_19, %c0_20, %c0_21], %25 {strides = array<i32>} : memref<1x1x128xf32, #tpu.memory_space<vmem>>, vector<1x1x128xf32>,
      %cst_22 = arith.constant 0.000000e+00 : f32
      %27 = vector.broadcast %cst_22 : f32 to vector<1x1x128xf32>
      %c0_23 = arith.constant 0 : index
      %c0_24 = arith.constant 0 : index
      %c0_25 = arith.constant 0 : index
      %28 = vector.load %arg4[%c0_23, %c0_24, %c0_25] : memref<1x1x128xf32, #tpu.memory_space<vmem>>, vector<1x1x128xf32>
      tpu.vector_store %arg4[%c0_23, %c0_24, %c0_25], %27 {strides = array<i32>} : memref<1x1x128xf32, #tpu.memory_space<vmem>>, vector<1x1x128xf32>,
    } else {
    }
    %c0 = arith.constant 0 : index
    %c0_1 = arith.constant 0 : index
    %c0_2 = arith.constant 0 : index
    %3 = vector.load %arg2[%c0, %c0_1, %c0_2] : memref<1x64x128xf32, #tpu.memory_space<vmem>>, vector<1x64x128xf32>
    %4 = vector.shape_cast %3 : vector<1x64x128xf32> to vector<64x128xf32>
    %c0_3 = arith.constant 0 : index
    %c0_4 = arith.constant 0 : index
    %c0_5 = arith.constant 0 : index
    %5 = vector.load %arg3[%c0_3, %c0_4, %c0_5] : memref<1x1x128xf32, #tpu.memory_space<vmem>>, vector<1x1x128xf32>
    %6 = vector.shape_cast %5 : vector<1x1x128xf32> to vector<1x128xf32>
    %cst = arith.constant dense<0.000000e+00> : vector<128xf32>
    %7 = vector.multi_reduction <add>, %4, %cst [0] : vector<64x128xf32> to vector<128xf32>
    %8 = vector.shape_cast %7 : vector<128xf32> to vector<1x128xf32>
    %9 = arith.addf %6, %8 : vector<1x128xf32>
    %c0_6 = arith.constant 0 : index
    %c0_7 = arith.constant 0 : index
    %c0_8 = arith.constant 0 : index
    %10 = vector.load %arg3[%c0_6, %c0_7, %c0_8] : memref<1x1x128xf32, #tpu.memory_space<vmem>>, vector<1x1x128xf32>
    %11 = vector.shape_cast %10 : vector<1x1x128xf32> to vector<1x128xf32>
    %12 = vector.shape_cast %9 : vector<1x128xf32> to vector<1x1x128xf32>
    tpu.vector_store %arg3[%c0_6, %c0_7, %c0_8], %12 {strides = array<i32>} : memref<1x1x128xf32, #tpu.memory_space<vmem>>, vector<1x1x128xf32>,
    %c0_9 = arith.constant 0 : index
    %c0_10 = arith.constant 0 : index
    %c0_11 = arith.constant 0 : index
    %13 = vector.load %arg4[%c0_9, %c0_10, %c0_11] : memref<1x1x128xf32, #tpu.memory_space<vmem>>, vector<1x1x128xf32>
    %14 = vector.shape_cast %13 : vector<1x1x128xf32> to vector<1x128xf32>
    %15 = arith.mulf %4, %4 : vector<64x128xf32>
    %cst_12 = arith.constant dense<0.000000e+00> : vector<128xf32>
    %16 = vector.multi_reduction <add>, %15, %cst_12 [0] : vector<64x128xf32> to vector<128xf32>
    %17 = vector.shape_cast %16 : vector<128xf32> to vector<1x128xf32>
    %18 = arith.addf %14, %17 : vector<1x128xf32>
    %c0_13 = arith.constant 0 : index
    %c0_14 = arith.constant 0 : index
    %c0_15 = arith.constant 0 : index
    %19 = vector.load %arg4[%c0_13, %c0_14, %c0_15] : memref<1x1x128xf32, #tpu.memory_space<vmem>>, vector<1x1x128xf32>
    %20 = vector.shape_cast %19 : vector<1x1x128xf32> to vector<1x128xf32>
    %21 = vector.shape_cast %18 : vector<1x128xf32> to vector<1x1x128xf32>
    tpu.vector_store %arg4[%c0_13, %c0_14, %c0_15], %21 {strides = array<i32>} : memref<1x1x128xf32, #tpu.memory_space<vmem>>, vector<1x1x128xf32>,
    %c0_i32_16 = arith.constant 0 : i32
    %22 = arith.cmpi eq, %arg1, %c0_i32_16 : i32
    %23 = arith.extui %22 : i1 to i32
    %c0_i32_17 = arith.constant 0 : i32
    %24 = arith.cmpi ne, %23, %c0_i32_17 : i32
    scf.if %24 {
      %c0_18 = arith.constant 0 : index
      %c0_19 = arith.constant 0 : index
      %c0_20 = arith.constant 0 : index
      %25 = vector.load %arg3[%c0_18, %c0_19, %c0_20] : memref<1x1x128xf32, #tpu.memory_space<vmem>>, vector<1x1x128xf32>
      %26 = vector.shape_cast %25 : vector<1x1x128xf32> to vector<1x128xf32>
      %c0_21 = arith.constant 0 : index
      %c0_22 = arith.constant 0 : index
      %c0_23 = arith.constant 0 : index
      %27 = vector.load %arg4[%c0_21, %c0_22, %c0_23] : memref<1x1x128xf32, #tpu.memory_space<vmem>>, vector<1x1x128xf32>
      %28 = vector.shape_cast %27 : vector<1x1x128xf32> to vector<1x128xf32>
      %cst_24 = arith.constant 1.562500e-02 : f32
      %29 = vector.broadcast %cst_24 : f32 to vector<1x128xf32>
      %30 = arith.mulf %26, %29 : vector<1x128xf32>
      %cst_25 = arith.constant 1.562500e-02 : f32
      %31 = vector.broadcast %cst_25 : f32 to vector<1x128xf32>
      %32 = arith.mulf %28, %31 : vector<1x128xf32>
      %33 = arith.mulf %30, %30 : vector<1x128xf32>
      %34 = arith.subf %32, %33 : vector<1x128xf32>
      %cst_26 = arith.constant 0.000000e+00 : f32
      %35 = vector.broadcast %cst_26 : f32 to vector<1x128xf32>
      %36 = arith.maximumf %34, %35 : vector<1x128xf32>
      %c0_27 = arith.constant 0 : index
      %c0_28 = arith.constant 0 : index
      %c0_29 = arith.constant 0 : index
      %37 = vector.load %arg3[%c0_27, %c0_28, %c0_29] : memref<1x1x128xf32, #tpu.memory_space<vmem>>, vector<1x1x128xf32>
      %38 = vector.shape_cast %37 : vector<1x1x128xf32> to vector<1x128xf32>
      %39 = vector.shape_cast %30 : vector<1x128xf32> to vector<1x1x128xf32>
      tpu.vector_store %arg3[%c0_27, %c0_28, %c0_29], %39 {strides = array<i32>} : memref<1x1x128xf32, #tpu.memory_space<vmem>>, vector<1x1x128xf32>,
      %cst_30 = arith.constant 9.99999974E-6 : f32
      %40 = vector.broadcast %cst_30 : f32 to vector<1x128xf32>
      %41 = arith.addf %36, %40 : vector<1x128xf32>
      %42 = math.rsqrt %41 : vector<1x128xf32>
      %c0_31 = arith.constant 0 : index
      %c0_32 = arith.constant 0 : index
      %c0_33 = arith.constant 0 : index
      %43 = vector.load %arg4[%c0_31, %c0_32, %c0_33] : memref<1x1x128xf32, #tpu.memory_space<vmem>>, vector<1x1x128xf32>
      %44 = vector.shape_cast %43 : vector<1x1x128xf32> to vector<1x128xf32>
      %45 = vector.shape_cast %42 : vector<1x128xf32> to vector<1x1x128xf32>
      tpu.vector_store %arg4[%c0_31, %c0_32, %c0_33], %45 {strides = array<i32>} : memref<1x1x128xf32, #tpu.memory_space<vmem>>, vector<1x1x128xf32>,
    } else {
    }
    return
  }
  func.func @transform_0(%arg0: i32, %arg1: i32) -> (i32, i32, i32) {
    %c0_i32 = arith.constant 0 : i32
    %c0_i32_0 = arith.constant 0 : i32
    return %arg0, %arg1, %c0_i32 : i32, i32, i32
  }
  func.func @transform_1(%arg0: i32, %arg1: i32) -> (i32, i32, i32) {
    %c0_i32 = arith.constant 0 : i32
    %c0_i32_0 = arith.constant 0 : i32
    %c0_i32_1 = arith.constant 0 : i32
    return %arg0, %c0_i32, %c0_i32_0 : i32, i32, i32
  }
  func.func @transform_2(%arg0: i32, %arg1: i32) -> (i32, i32, i32) {
    %c0_i32 = arith.constant 0 : i32
    %c0_i32_0 = arith.constant 0 : i32
    %c0_i32_1 = arith.constant 0 : i32
    return %arg0, %c0_i32, %c0_i32_0 : i32, i32, i32
  }
}

module attributes {stable_mosaic.version = 11 : i64} {
  func.func @_in_apply_kernel(%arg0: i32, %arg1: i32, %arg2: memref<1x64x128xf32, #tpu.memory_space<vmem>>, %arg3: memref<1x1x128xf32, #tpu.memory_space<vmem>>, %arg4: memref<1x1x128xf32, #tpu.memory_space<vmem>>, %arg5: memref<1x1x128xf32, #tpu.memory_space<vmem>>, %arg6: memref<1x1x128xf32, #tpu.memory_space<vmem>>, %arg7: memref<1x64x128xbf16, #tpu.memory_space<vmem>>) attributes {dimension_semantics = [#tpu.dimension_semantics<parallel>, #tpu.dimension_semantics<parallel>], iteration_bounds = array<i64: 2, 1>, scalar_prefetch = 0 : i64, scratch_operands = 0 : i64, tpu.core_type = #tpu.core_type<tc>, window_params = [{transform_indices = @transform_0, window_bounds = array<i64: 1, 64, 128>}, {transform_indices = @transform_1, window_bounds = array<i64: 1, 1, 128>}, {transform_indices = @transform_2, window_bounds = array<i64: 1, 1, 128>}, {pipeline_mode = #tpu.pipeline_mode<synchronous>, transform_indices = @transform_3, window_bounds = array<i64: 1, 1, 128>}, {pipeline_mode = #tpu.pipeline_mode<synchronous>, transform_indices = @transform_4, window_bounds = array<i64: 1, 1, 128>}, {transform_indices = @transform_5, window_bounds = array<i64: 1, 64, 128>}]} {
    %c0 = arith.constant 0 : index
    %c0_0 = arith.constant 0 : index
    %c0_1 = arith.constant 0 : index
    %0 = vector.load %arg2[%c0, %c0_0, %c0_1] : memref<1x64x128xf32, #tpu.memory_space<vmem>>, vector<1x64x128xf32>
    %1 = vector.shape_cast %0 : vector<1x64x128xf32> to vector<64x128xf32>
    %c0_2 = arith.constant 0 : index
    %c0_3 = arith.constant 0 : index
    %c0_4 = arith.constant 0 : index
    %2 = vector.load %arg3[%c0_2, %c0_3, %c0_4] : memref<1x1x128xf32, #tpu.memory_space<vmem>>, vector<1x1x128xf32>
    %3 = vector.shape_cast %2 : vector<1x1x128xf32> to vector<1x128xf32>
    %c0_5 = arith.constant 0 : index
    %c0_6 = arith.constant 0 : index
    %c0_7 = arith.constant 0 : index
    %4 = vector.load %arg4[%c0_5, %c0_6, %c0_7] : memref<1x1x128xf32, #tpu.memory_space<vmem>>, vector<1x1x128xf32>
    %5 = vector.shape_cast %4 : vector<1x1x128xf32> to vector<1x128xf32>
    %c0_8 = arith.constant 0 : index
    %c0_9 = arith.constant 0 : index
    %c0_10 = arith.constant 0 : index
    %6 = vector.load %arg5[%c0_8, %c0_9, %c0_10] : memref<1x1x128xf32, #tpu.memory_space<vmem>>, vector<1x1x128xf32>
    %7 = vector.shape_cast %6 : vector<1x1x128xf32> to vector<1x128xf32>
    %c0_11 = arith.constant 0 : index
    %c0_12 = arith.constant 0 : index
    %c0_13 = arith.constant 0 : index
    %8 = vector.load %arg6[%c0_11, %c0_12, %c0_13] : memref<1x1x128xf32, #tpu.memory_space<vmem>>, vector<1x1x128xf32>
    %9 = vector.shape_cast %8 : vector<1x1x128xf32> to vector<1x128xf32>
    %10 = vector.broadcast %3 : vector<1x128xf32> to vector<64x128xf32>
    %11 = arith.subf %1, %10 : vector<64x128xf32>
    %12 = arith.mulf %5, %7 : vector<1x128xf32>
    %13 = vector.broadcast %12 : vector<1x128xf32> to vector<64x128xf32>
    %14 = arith.mulf %11, %13 : vector<64x128xf32>
    %15 = vector.broadcast %9 : vector<1x128xf32> to vector<64x128xf32>
    %16 = arith.addf %14, %15 : vector<64x128xf32>
    %cst = arith.constant 0.000000e+00 : f32
    %17 = vector.broadcast %cst : f32 to vector<64x128xf32>
    %18 = arith.maximumf %16, %17 : vector<64x128xf32>
    %19 = arith.truncf %18 : vector<64x128xf32> to vector<64x128xbf16>
    %c0_14 = arith.constant 0 : index
    %c0_15 = arith.constant 0 : index
    %c0_16 = arith.constant 0 : index
    %20 = vector.load %arg7[%c0_14, %c0_15, %c0_16] : memref<1x64x128xbf16, #tpu.memory_space<vmem>>, vector<1x64x128xbf16>
    %21 = vector.shape_cast %20 : vector<1x64x128xbf16> to vector<64x128xbf16>
    %22 = vector.shape_cast %19 : vector<64x128xbf16> to vector<1x64x128xbf16>
    tpu.vector_store %arg7[%c0_14, %c0_15, %c0_16], %22 {strides = array<i32>} : memref<1x64x128xbf16, #tpu.memory_space<vmem>>, vector<1x64x128xbf16>,
    return
  }
  func.func @transform_0(%arg0: i32, %arg1: i32) -> (i32, i32, i32) {
    %c0_i32 = arith.constant 0 : i32
    %c0_i32_0 = arith.constant 0 : i32
    return %arg0, %arg1, %c0_i32 : i32, i32, i32
  }
  func.func @transform_1(%arg0: i32, %arg1: i32) -> (i32, i32, i32) {
    %c0_i32 = arith.constant 0 : i32
    %c0_i32_0 = arith.constant 0 : i32
    %c0_i32_1 = arith.constant 0 : i32
    return %arg0, %c0_i32, %c0_i32_0 : i32, i32, i32
  }
  func.func @transform_2(%arg0: i32, %arg1: i32) -> (i32, i32, i32) {
    %c0_i32 = arith.constant 0 : i32
    %c0_i32_0 = arith.constant 0 : i32
    %c0_i32_1 = arith.constant 0 : i32
    return %arg0, %c0_i32, %c0_i32_0 : i32, i32, i32
  }
  func.func @transform_3(%arg0: i32, %arg1: i32) -> (i32, i32, i32) {
    %c0_i32 = arith.constant 0 : i32
    %c0_i32_0 = arith.constant 0 : i32
    %c0_i32_1 = arith.constant 0 : i32
    %c0_i32_2 = arith.constant 0 : i32
    return %c0_i32, %c0_i32_0, %c0_i32_1 : i32, i32, i32
  }
  func.func @transform_4(%arg0: i32, %arg1: i32) -> (i32, i32, i32) {
    %c0_i32 = arith.constant 0 : i32
    %c0_i32_0 = arith.constant 0 : i32
    %c0_i32_1 = arith.constant 0 : i32
    %c0_i32_2 = arith.constant 0 : i32
    return %c0_i32, %c0_i32_0, %c0_i32_1 : i32, i32, i32
  }
  func.func @transform_5(%arg0: i32, %arg1: i32) -> (i32, i32, i32) {
    %c0_i32 = arith.constant 0 : i32
    %c0_i32_0 = arith.constant 0 : i32
    return %arg0, %arg1, %c0_i32 : i32, i32, i32
  }
}

module attributes {stable_mosaic.version = 11 : i64} {
  func.func @_gemm_kernel(%arg0: i32, %arg1: memref<32x1152xbf16, #tpu.memory_space<vmem>>, %arg2: memref<1152x128xbf16, #tpu.memory_space<vmem>>, %arg3: memref<32x128xf32, #tpu.memory_space<vmem>>) attributes {dimension_semantics = [#tpu.dimension_semantics<parallel>], iteration_bounds = array<i64: 1>, scalar_prefetch = 0 : i64, scratch_operands = 0 : i64, tpu.core_type = #tpu.core_type<tc>, window_params = [{transform_indices = @transform_0, window_bounds = array<i64: 32, 1152>}, {pipeline_mode = #tpu.pipeline_mode<synchronous>, transform_indices = @transform_1, window_bounds = array<i64: 1152, 128>}, {transform_indices = @transform_2, window_bounds = array<i64: 32, 128>}]} {
    %c0 = arith.constant 0 : index
    %c0_0 = arith.constant 0 : index
    %0 = vector.load %arg1[%c0, %c0_0] : memref<32x1152xbf16, #tpu.memory_space<vmem>>, vector<32x1152xbf16>
    %c0_1 = arith.constant 0 : index
    %c0_2 = arith.constant 0 : index
    %1 = vector.load %arg2[%c0_1, %c0_2] : memref<1152x128xbf16, #tpu.memory_space<vmem>>, vector<1152x128xbf16>
    %cst = arith.constant dense<0.000000e+00> : vector<32x128xf32>
    %2 = tpu.matmul %0, %1, %cst {dimension_numbers = #tpu.dot_dimension_numbers<[1], [0], [0], [1], [0, 0, 1, 1], [], []>} : vector<32x1152xbf16>, vector<1152x128xbf16>, vector<32x128xf32> -> vector<32x128xf32>
    %c0_3 = arith.constant 0 : index
    %c0_4 = arith.constant 0 : index
    %3 = vector.load %arg3[%c0_3, %c0_4] : memref<32x128xf32, #tpu.memory_space<vmem>>, vector<32x128xf32>
    tpu.vector_store %arg3[%c0_3, %c0_4], %2 {strides = array<i32>} : memref<32x128xf32, #tpu.memory_space<vmem>>, vector<32x128xf32>,
    return
  }
  func.func @transform_0(%arg0: i32) -> (i32, i32) {
    %c0_i32 = arith.constant 0 : i32
    %c0_i32_0 = arith.constant 0 : i32
    return %arg0, %c0_i32 : i32, i32
  }
  func.func @transform_1(%arg0: i32) -> (i32, i32) {
    %c0_i32 = arith.constant 0 : i32
    %c0_i32_0 = arith.constant 0 : i32
    %c0_i32_1 = arith.constant 0 : i32
    return %c0_i32, %c0_i32_0 : i32, i32
  }
  func.func @transform_2(%arg0: i32) -> (i32, i32) {
    %c0_i32 = arith.constant 0 : i32
    %c0_i32_0 = arith.constant 0 : i32
    return %arg0, %c0_i32 : i32, i32
  }
}

module attributes {stable_mosaic.version = 11 : i64} {
  func.func @kernel(%arg0: i32, %arg1: i32, %arg2: memref<1x16x128xf32, #tpu.memory_space<vmem>>, %arg3: memref<1x1x128xf32, #tpu.memory_space<vmem>>, %arg4: memref<1x1x128xf32, #tpu.memory_space<vmem>>) attributes {dimension_semantics = [#tpu.dimension_semantics<parallel>, #tpu.dimension_semantics<arbitrary>], iteration_bounds = array<i64: 2, 1>, scalar_prefetch = 0 : i64, scratch_operands = 0 : i64, tpu.core_type = #tpu.core_type<tc>, window_params = [{transform_indices = @transform_0, window_bounds = array<i64: 1, 16, 128>}, {transform_indices = @transform_1, window_bounds = array<i64: 1, 1, 128>}, {transform_indices = @transform_2, window_bounds = array<i64: 1, 1, 128>}]} {
    %c0_i32 = arith.constant 0 : i32
    %0 = arith.cmpi eq, %arg1, %c0_i32 : i32
    %1 = arith.extui %0 : i1 to i32
    %c0_i32_0 = arith.constant 0 : i32
    %2 = arith.cmpi ne, %1, %c0_i32_0 : i32
    scf.if %2 {
      %cst_18 = arith.constant 0.000000e+00 : f32
      %25 = vector.broadcast %cst_18 : f32 to vector<1x1x128xf32>
      %c0_19 = arith.constant 0 : index
      %c0_20 = arith.constant 0 : index
      %c0_21 = arith.constant 0 : index
      %26 = vector.load %arg3[%c0_19, %c0_20, %c0_21] : memref<1x1x128xf32, #tpu.memory_space<vmem>>, vector<1x1x128xf32>
      tpu.vector_store %arg3[%c0_19, %c0_20, %c0_21], %25 {strides = array<i32>} : memref<1x1x128xf32, #tpu.memory_space<vmem>>, vector<1x1x128xf32>,
      %cst_22 = arith.constant 0.000000e+00 : f32
      %27 = vector.broadcast %cst_22 : f32 to vector<1x1x128xf32>
      %c0_23 = arith.constant 0 : index
      %c0_24 = arith.constant 0 : index
      %c0_25 = arith.constant 0 : index
      %28 = vector.load %arg4[%c0_23, %c0_24, %c0_25] : memref<1x1x128xf32, #tpu.memory_space<vmem>>, vector<1x1x128xf32>
      tpu.vector_store %arg4[%c0_23, %c0_24, %c0_25], %27 {strides = array<i32>} : memref<1x1x128xf32, #tpu.memory_space<vmem>>, vector<1x1x128xf32>,
    } else {
    }
    %c0 = arith.constant 0 : index
    %c0_1 = arith.constant 0 : index
    %c0_2 = arith.constant 0 : index
    %3 = vector.load %arg2[%c0, %c0_1, %c0_2] : memref<1x16x128xf32, #tpu.memory_space<vmem>>, vector<1x16x128xf32>
    %4 = vector.shape_cast %3 : vector<1x16x128xf32> to vector<16x128xf32>
    %c0_3 = arith.constant 0 : index
    %c0_4 = arith.constant 0 : index
    %c0_5 = arith.constant 0 : index
    %5 = vector.load %arg3[%c0_3, %c0_4, %c0_5] : memref<1x1x128xf32, #tpu.memory_space<vmem>>, vector<1x1x128xf32>
    %6 = vector.shape_cast %5 : vector<1x1x128xf32> to vector<1x128xf32>
    %cst = arith.constant dense<0.000000e+00> : vector<128xf32>
    %7 = vector.multi_reduction <add>, %4, %cst [0] : vector<16x128xf32> to vector<128xf32>
    %8 = vector.shape_cast %7 : vector<128xf32> to vector<1x128xf32>
    %9 = arith.addf %6, %8 : vector<1x128xf32>
    %c0_6 = arith.constant 0 : index
    %c0_7 = arith.constant 0 : index
    %c0_8 = arith.constant 0 : index
    %10 = vector.load %arg3[%c0_6, %c0_7, %c0_8] : memref<1x1x128xf32, #tpu.memory_space<vmem>>, vector<1x1x128xf32>
    %11 = vector.shape_cast %10 : vector<1x1x128xf32> to vector<1x128xf32>
    %12 = vector.shape_cast %9 : vector<1x128xf32> to vector<1x1x128xf32>
    tpu.vector_store %arg3[%c0_6, %c0_7, %c0_8], %12 {strides = array<i32>} : memref<1x1x128xf32, #tpu.memory_space<vmem>>, vector<1x1x128xf32>,
    %c0_9 = arith.constant 0 : index
    %c0_10 = arith.constant 0 : index
    %c0_11 = arith.constant 0 : index
    %13 = vector.load %arg4[%c0_9, %c0_10, %c0_11] : memref<1x1x128xf32, #tpu.memory_space<vmem>>, vector<1x1x128xf32>
    %14 = vector.shape_cast %13 : vector<1x1x128xf32> to vector<1x128xf32>
    %15 = arith.mulf %4, %4 : vector<16x128xf32>
    %cst_12 = arith.constant dense<0.000000e+00> : vector<128xf32>
    %16 = vector.multi_reduction <add>, %15, %cst_12 [0] : vector<16x128xf32> to vector<128xf32>
    %17 = vector.shape_cast %16 : vector<128xf32> to vector<1x128xf32>
    %18 = arith.addf %14, %17 : vector<1x128xf32>
    %c0_13 = arith.constant 0 : index
    %c0_14 = arith.constant 0 : index
    %c0_15 = arith.constant 0 : index
    %19 = vector.load %arg4[%c0_13, %c0_14, %c0_15] : memref<1x1x128xf32, #tpu.memory_space<vmem>>, vector<1x1x128xf32>
    %20 = vector.shape_cast %19 : vector<1x1x128xf32> to vector<1x128xf32>
    %21 = vector.shape_cast %18 : vector<1x128xf32> to vector<1x1x128xf32>
    tpu.vector_store %arg4[%c0_13, %c0_14, %c0_15], %21 {strides = array<i32>} : memref<1x1x128xf32, #tpu.memory_space<vmem>>, vector<1x1x128xf32>,
    %c0_i32_16 = arith.constant 0 : i32
    %22 = arith.cmpi eq, %arg1, %c0_i32_16 : i32
    %23 = arith.extui %22 : i1 to i32
    %c0_i32_17 = arith.constant 0 : i32
    %24 = arith.cmpi ne, %23, %c0_i32_17 : i32
    scf.if %24 {
      %c0_18 = arith.constant 0 : index
      %c0_19 = arith.constant 0 : index
      %c0_20 = arith.constant 0 : index
      %25 = vector.load %arg3[%c0_18, %c0_19, %c0_20] : memref<1x1x128xf32, #tpu.memory_space<vmem>>, vector<1x1x128xf32>
      %26 = vector.shape_cast %25 : vector<1x1x128xf32> to vector<1x128xf32>
      %c0_21 = arith.constant 0 : index
      %c0_22 = arith.constant 0 : index
      %c0_23 = arith.constant 0 : index
      %27 = vector.load %arg4[%c0_21, %c0_22, %c0_23] : memref<1x1x128xf32, #tpu.memory_space<vmem>>, vector<1x1x128xf32>
      %28 = vector.shape_cast %27 : vector<1x1x128xf32> to vector<1x128xf32>
      %cst_24 = arith.constant 6.250000e-02 : f32
      %29 = vector.broadcast %cst_24 : f32 to vector<1x128xf32>
      %30 = arith.mulf %26, %29 : vector<1x128xf32>
      %cst_25 = arith.constant 6.250000e-02 : f32
      %31 = vector.broadcast %cst_25 : f32 to vector<1x128xf32>
      %32 = arith.mulf %28, %31 : vector<1x128xf32>
      %33 = arith.mulf %30, %30 : vector<1x128xf32>
      %34 = arith.subf %32, %33 : vector<1x128xf32>
      %cst_26 = arith.constant 0.000000e+00 : f32
      %35 = vector.broadcast %cst_26 : f32 to vector<1x128xf32>
      %36 = arith.maximumf %34, %35 : vector<1x128xf32>
      %c0_27 = arith.constant 0 : index
      %c0_28 = arith.constant 0 : index
      %c0_29 = arith.constant 0 : index
      %37 = vector.load %arg3[%c0_27, %c0_28, %c0_29] : memref<1x1x128xf32, #tpu.memory_space<vmem>>, vector<1x1x128xf32>
      %38 = vector.shape_cast %37 : vector<1x1x128xf32> to vector<1x128xf32>
      %39 = vector.shape_cast %30 : vector<1x128xf32> to vector<1x1x128xf32>
      tpu.vector_store %arg3[%c0_27, %c0_28, %c0_29], %39 {strides = array<i32>} : memref<1x1x128xf32, #tpu.memory_space<vmem>>, vector<1x1x128xf32>,
      %cst_30 = arith.constant 9.99999974E-6 : f32
      %40 = vector.broadcast %cst_30 : f32 to vector<1x128xf32>
      %41 = arith.addf %36, %40 : vector<1x128xf32>
      %42 = math.rsqrt %41 : vector<1x128xf32>
      %c0_31 = arith.constant 0 : index
      %c0_32 = arith.constant 0 : index
      %c0_33 = arith.constant 0 : index
      %43 = vector.load %arg4[%c0_31, %c0_32, %c0_33] : memref<1x1x128xf32, #tpu.memory_space<vmem>>, vector<1x1x128xf32>
      %44 = vector.shape_cast %43 : vector<1x1x128xf32> to vector<1x128xf32>
      %45 = vector.shape_cast %42 : vector<1x128xf32> to vector<1x1x128xf32>
      tpu.vector_store %arg4[%c0_31, %c0_32, %c0_33], %45 {strides = array<i32>} : memref<1x1x128xf32, #tpu.memory_space<vmem>>, vector<1x1x128xf32>,
    } else {
    }
    return
  }
  func.func @transform_0(%arg0: i32, %arg1: i32) -> (i32, i32, i32) {
    %c0_i32 = arith.constant 0 : i32
    %c0_i32_0 = arith.constant 0 : i32
    return %arg0, %arg1, %c0_i32 : i32, i32, i32
  }
  func.func @transform_1(%arg0: i32, %arg1: i32) -> (i32, i32, i32) {
    %c0_i32 = arith.constant 0 : i32
    %c0_i32_0 = arith.constant 0 : i32
    %c0_i32_1 = arith.constant 0 : i32
    return %arg0, %c0_i32, %c0_i32_0 : i32, i32, i32
  }
  func.func @transform_2(%arg0: i32, %arg1: i32) -> (i32, i32, i32) {
    %c0_i32 = arith.constant 0 : i32
    %c0_i32_0 = arith.constant 0 : i32
    %c0_i32_1 = arith.constant 0 : i32
    return %arg0, %c0_i32, %c0_i32_0 : i32, i32, i32
  }
}

module attributes {stable_mosaic.version = 11 : i64} {
  func.func @_in_apply_kernel(%arg0: i32, %arg1: i32, %arg2: memref<1x16x128xf32, #tpu.memory_space<vmem>>, %arg3: memref<1x1x128xf32, #tpu.memory_space<vmem>>, %arg4: memref<1x1x128xf32, #tpu.memory_space<vmem>>, %arg5: memref<1x1x128xf32, #tpu.memory_space<vmem>>, %arg6: memref<1x1x128xf32, #tpu.memory_space<vmem>>, %arg7: memref<1x16x128xf32, #tpu.memory_space<vmem>>) attributes {dimension_semantics = [#tpu.dimension_semantics<parallel>, #tpu.dimension_semantics<parallel>], iteration_bounds = array<i64: 2, 1>, scalar_prefetch = 0 : i64, scratch_operands = 0 : i64, tpu.core_type = #tpu.core_type<tc>, window_params = [{transform_indices = @transform_0, window_bounds = array<i64: 1, 16, 128>}, {transform_indices = @transform_1, window_bounds = array<i64: 1, 1, 128>}, {transform_indices = @transform_2, window_bounds = array<i64: 1, 1, 128>}, {pipeline_mode = #tpu.pipeline_mode<synchronous>, transform_indices = @transform_3, window_bounds = array<i64: 1, 1, 128>}, {pipeline_mode = #tpu.pipeline_mode<synchronous>, transform_indices = @transform_4, window_bounds = array<i64: 1, 1, 128>}, {transform_indices = @transform_5, window_bounds = array<i64: 1, 16, 128>}]} {
    %c0 = arith.constant 0 : index
    %c0_0 = arith.constant 0 : index
    %c0_1 = arith.constant 0 : index
    %0 = vector.load %arg2[%c0, %c0_0, %c0_1] : memref<1x16x128xf32, #tpu.memory_space<vmem>>, vector<1x16x128xf32>
    %1 = vector.shape_cast %0 : vector<1x16x128xf32> to vector<16x128xf32>
    %c0_2 = arith.constant 0 : index
    %c0_3 = arith.constant 0 : index
    %c0_4 = arith.constant 0 : index
    %2 = vector.load %arg3[%c0_2, %c0_3, %c0_4] : memref<1x1x128xf32, #tpu.memory_space<vmem>>, vector<1x1x128xf32>
    %3 = vector.shape_cast %2 : vector<1x1x128xf32> to vector<1x128xf32>
    %c0_5 = arith.constant 0 : index
    %c0_6 = arith.constant 0 : index
    %c0_7 = arith.constant 0 : index
    %4 = vector.load %arg4[%c0_5, %c0_6, %c0_7] : memref<1x1x128xf32, #tpu.memory_space<vmem>>, vector<1x1x128xf32>
    %5 = vector.shape_cast %4 : vector<1x1x128xf32> to vector<1x128xf32>
    %c0_8 = arith.constant 0 : index
    %c0_9 = arith.constant 0 : index
    %c0_10 = arith.constant 0 : index
    %6 = vector.load %arg5[%c0_8, %c0_9, %c0_10] : memref<1x1x128xf32, #tpu.memory_space<vmem>>, vector<1x1x128xf32>
    %7 = vector.shape_cast %6 : vector<1x1x128xf32> to vector<1x128xf32>
    %c0_11 = arith.constant 0 : index
    %c0_12 = arith.constant 0 : index
    %c0_13 = arith.constant 0 : index
    %8 = vector.load %arg6[%c0_11, %c0_12, %c0_13] : memref<1x1x128xf32, #tpu.memory_space<vmem>>, vector<1x1x128xf32>
    %9 = vector.shape_cast %8 : vector<1x1x128xf32> to vector<1x128xf32>
    %10 = vector.broadcast %3 : vector<1x128xf32> to vector<16x128xf32>
    %11 = arith.subf %1, %10 : vector<16x128xf32>
    %12 = arith.mulf %5, %7 : vector<1x128xf32>
    %13 = vector.broadcast %12 : vector<1x128xf32> to vector<16x128xf32>
    %14 = arith.mulf %11, %13 : vector<16x128xf32>
    %15 = vector.broadcast %9 : vector<1x128xf32> to vector<16x128xf32>
    %16 = arith.addf %14, %15 : vector<16x128xf32>
    %cst = arith.constant 0.000000e+00 : f32
    %17 = vector.broadcast %cst : f32 to vector<16x128xf32>
    %18 = arith.maximumf %16, %17 : vector<16x128xf32>
    %c0_14 = arith.constant 0 : index
    %c0_15 = arith.constant 0 : index
    %c0_16 = arith.constant 0 : index
    %19 = vector.load %arg7[%c0_14, %c0_15, %c0_16] : memref<1x16x128xf32, #tpu.memory_space<vmem>>, vector<1x16x128xf32>
    %20 = vector.shape_cast %19 : vector<1x16x128xf32> to vector<16x128xf32>
    %21 = vector.shape_cast %18 : vector<16x128xf32> to vector<1x16x128xf32>
    tpu.vector_store %arg7[%c0_14, %c0_15, %c0_16], %21 {strides = array<i32>} : memref<1x16x128xf32, #tpu.memory_space<vmem>>, vector<1x16x128xf32>,
    return
  }
  func.func @transform_0(%arg0: i32, %arg1: i32) -> (i32, i32, i32) {
    %c0_i32 = arith.constant 0 : i32
    %c0_i32_0 = arith.constant 0 : i32
    return %arg0, %arg1, %c0_i32 : i32, i32, i32
  }
  func.func @transform_1(%arg0: i32, %arg1: i32) -> (i32, i32, i32) {
    %c0_i32 = arith.constant 0 : i32
    %c0_i32_0 = arith.constant 0 : i32
    %c0_i32_1 = arith.constant 0 : i32
    return %arg0, %c0_i32, %c0_i32_0 : i32, i32, i32
  }
  func.func @transform_2(%arg0: i32, %arg1: i32) -> (i32, i32, i32) {
    %c0_i32 = arith.constant 0 : i32
    %c0_i32_0 = arith.constant 0 : i32
    %c0_i32_1 = arith.constant 0 : i32
    return %arg0, %c0_i32, %c0_i32_0 : i32, i32, i32
  }
  func.func @transform_3(%arg0: i32, %arg1: i32) -> (i32, i32, i32) {
    %c0_i32 = arith.constant 0 : i32
    %c0_i32_0 = arith.constant 0 : i32
    %c0_i32_1 = arith.constant 0 : i32
    %c0_i32_2 = arith.constant 0 : i32
    return %c0_i32, %c0_i32_0, %c0_i32_1 : i32, i32, i32
  }
  func.func @transform_4(%arg0: i32, %arg1: i32) -> (i32, i32, i32) {
    %c0_i32 = arith.constant 0 : i32
    %c0_i32_0 = arith.constant 0 : i32
    %c0_i32_1 = arith.constant 0 : i32
    %c0_i32_2 = arith.constant 0 : i32
    return %c0_i32, %c0_i32_0, %c0_i32_1 : i32, i32, i32
  }
  func.func @transform_5(%arg0: i32, %arg1: i32) -> (i32, i32, i32) {
    %c0_i32 = arith.constant 0 : i32
    %c0_i32_0 = arith.constant 0 : i32
    return %arg0, %arg1, %c0_i32 : i32, i32, i32
  }
}

</mosaic_0001>

<llo_original>
// kernel: down_conv_forward.10
$region0: #{down_conv_forward.10}
  #allocation0 [shape = 'u32[]', space=smem, size = 0x4, offset = 0x4, fixed_abs, tag = 'smem constant byte address 0x4 - core index']
  #allocation1 [shape = 'u32[144,128]{1,0:T(1,128)}', space=vmem, size = 0x12000, scoped, tag = 'internal scratch']
  %s0 = inlined_call_operand.vmem [shape: f32[2,256,128], index: 0, kind: input, shape index: {}]
  %s1 = inlined_call_operand.vmem [shape: f32[2,1,128], index: 1, kind: output, shape index: {0}]
  %s2 = inlined_call_operand.vmem [shape: f32[2,1,128], index: 2, kind: output, shape index: {1}]
  %3 = xla_tuple %s1, %s2
  %s4 = sld [smem:[#allocation0]]
  $region53: #{down_conv_forward.10} parent=0
    _
  %s6 = ssub.s32 1, %s4
  %s7 = scalar_select 0, %s6, %s4
  loop: start=0, step=1, limit=4
  $region2: #{down_conv_forward.10} parent=0 // loop_pre_header
    _
  $region3: #{down_conv_forward.10} parent=0 // loop_header
    %s9 = sphi 0, %s13
    %p10 = scmp.ge.s32.totalorder %s9, 4
    %s16 = sphi 0, %s28
    %s17 = sphi 0, %s24
    %s18 = sphi 0, %s16
    %s19 = sphi 0, %s17
    %s20 = sphi 0, %s18
    %s21 = sphi 0, %s19
    %s33 = sphi 0, %s35
    %s36 = sphi 0, %s33
    %s37 = sphi 0, %s36
    %s53 = sphi 0, %s37
    %s59 = sphi 0, %s61
    %s62 = sphi 0, %s59
    %s63 = sphi 0, %s62
    %s79 = sphi 0, %s63
    %s85 = sphi 0, %s87
    %s88 = sphi 0, %s85
    %s89 = sphi 0, %s88
    %s105 = sphi 0, %s89
  $region4: #{down_conv_forward.10} parent=0 // loop_header_branch
    %12 = sbr.rel (%p10) target = $region8
  $region5: #{down_conv_forward.10} parent=0 // loop_body
    %s14 = ssub.s32 %s9, 1
    %s15 = ssub.s32 %s9, 2
    %s22 = sadd.s32 1, %s17
    %p23 = scmp.ge.s32.totalorder %s22, 1
    %s24 = scalar_select %p23, 0, %s22
    %s25 = sadd.s32 1, %s16
    %s26 = scalar_select %p23, %s25, %s16
    %p27 = scmp.ge.s32.totalorder %s26, 2
    %s28 = scalar_select %p27, 0, %s26
    %s29 = ssub.s32 %s16, %s28
    %s30 = ssub.s32 %s17, %s24
    %s31 = sor.u32 %s29, %s30
    %p32 = scmp.eq.s32.totalorder %s31, 0
    %s34 = sadd.s32 %s33, 1
    %s35 = scalar_select %p32, %s33, %s34
    %p38 = pneg %p32
    %p39 = scmp.eq.s32.totalorder %s9, 1
    %p40 = por %p38, %p39
    %p41 = scmp.ne.s32.totalorder %s33, %s36
    %p42 = scmp.eq.s32.totalorder %s9, 0
    %p43 = por %p41, %p42
    %p44 = scmp.ne.s32.totalorder %s33, %s36
    %p45 = scmp.eq.s32.totalorder %s14, 1
    %p46 = por %p44, %p45
    %p47 = scmp.ne.s32.totalorder %s36, %s37
    %p48 = scmp.eq.s32.totalorder %s14, 0
    %p49 = por %p47, %p48
    %p50 = scmp.ne.s32.totalorder %s36, %s37
    %p51 = scmp.eq.s32.totalorder %s15, 1
    %p52 = por %p50, %p51
    %p54 = scmp.ne.s32.totalorder %s37, %s53
    %p55 = scmp.eq.s32.totalorder %s15, 0
    %p56 = por %p54, %p55
    %s57 = ssub.s32 %s16, %s28
    %p58 = scmp.eq.s32.totalorder %s57, 0
    %s60 = sadd.s32 %s59, 1
    %s61 = scalar_select %p58, %s59, %s60
    %p64 = pneg %p58
    %p65 = scmp.eq.s32.totalorder %s9, 1
    %p66 = por %p64, %p65
    %p67 = scmp.ne.s32.totalorder %s59, %s62
    %p68 = scmp.eq.s32.totalorder %s9, 0
    %p69 = por %p67, %p68
    %p70 = scmp.ne.s32.totalorder %s59, %s62
    %p71 = scmp.eq.s32.totalorder %s14, 1
    %p72 = por %p70, %p71
    %p73 = scmp.ne.s32.totalorder %s62, %s63
    %p74 = scmp.eq.s32.totalorder %s14, 0
    %p75 = por %p73, %p74
    %p76 = scmp.ne.s32.totalorder %s62, %s63
    %p77 = scmp.eq.s32.totalorder %s15, 1
    %p78 = por %p76, %p77
    %p80 = scmp.ne.s32.totalorder %s63, %s79
    %p81 = scmp.eq.s32.totalorder %s15, 0
    %p82 = por %p80, %p81
    %s83 = ssub.s32 %s16, %s28
    %p84 = scmp.eq.s32.totalorder %s83, 0
    %s86 = sadd.s32 %s85, 1
    %s87 = scalar_select %p84, %s85, %s86
    %p90 = pneg %p84
    %p91 = scmp.eq.s32.totalorder %s9, 1
    %p92 = por %p90, %p91
    %p93 = scmp.ne.s32.totalorder %s85, %s88
    %p94 = scmp.eq.s32.totalorder %s9, 0
    %p95 = por %p93, %p94
    %p96 = scmp.ne.s32.totalorder %s85, %s88
    %p97 = scmp.eq.s32.totalorder %s14, 1
    %p98 = por %p96, %p97
    %p99 = scmp.ne.s32.totalorder %s88, %s89
    %p100 = scmp.eq.s32.totalorder %s14, 0
    %p101 = por %p99, %p100
    %p102 = scmp.ne.s32.totalorder %s88, %s89
    %p103 = scmp.eq.s32.totalorder %s15, 1
    %p104 = por %p102, %p103
    %p106 = scmp.ne.s32.totalorder %s89, %s105
    %p107 = scmp.eq.s32.totalorder %s15, 0
    %p108 = por %p106, %p107
    %p109 = scmp.le.s32.totalorder 1, %s9
    %p110 = scmp.lt.s32.totalorder %s9, 3
    %p111 = pnand %p109, %p110
    %p112 = pneg %p111
    // Predicated region
    $region9: #{down_conv_forward.10} parent=5 // pred_check
      _
    $region10: #{down_conv_forward.10} parent=5 // pred_check_branch
      %114 = sbr.rel (%p111) target = $region12
    $region11: #{down_conv_forward.10} parent=5 // pred_region
      %s115 = ssub.s32 %s9, 1
    $region12: #{down_conv_forward.10} parent=5 // pred_fallthru
      _
    %p116 = scmp.lt.s32.totalorder %s9, 2
    // Predicated region
    $region13: #{down_conv_forward.10} parent=5 // pred_check
      %p117 = pneg %p116
    $region14: #{down_conv_forward.10} parent=5 // pred_check_branch
      %119 = sbr.rel (%p117) target = $region16
    $region15: #{down_conv_forward.10} parent=5 // pred_region
      // Predicated region
      $region17: #{down_conv_forward.10} parent=15 // pred_check
        %p120 = pneg %p43
      $region18: #{down_conv_forward.10} parent=15 // pred_check_branch
        %122 = sbr.rel (%p120) target = $region20
      $region19: #{down_conv_forward.10} parent=15 // pred_region
        %s123 = smul.u32 32, %s17
        %p124 = scmp.lt.s32.totalorder %s16, 1
        %s125 = scalar_select %p124, %s16, 1
        %p126 = scmp.lt.s32.totalorder %s123, 31
        %s127 = scalar_select %p126, %s123, 31
        %s128 = smul.addr %s125, 32
        %s129 = sadd.s32 %s127, %s128
        %s130 = smul.addr %s129, 8
        %s131 = scalar_lea.vmem %s0, %s130
        %s132 = smul.u32 32, %s17
      $region20: #{down_conv_forward.10} parent=15 // pred_fallthru
        _
    $region16: #{down_conv_forward.10} parent=5 // pred_fallthru
      _
    %p133 = scmp.le.s32.totalorder 1, %s9
    %p134 = scmp.lt.s32.totalorder %s9, 3
    %p135 = pnand %p133, %p134
    %p136 = pneg %p135
    // Predicated region
    $region21: #{down_conv_forward.10} parent=5 // pred_check
      _
    $region22: #{down_conv_forward.10} parent=5 // pred_check_branch
      %138 = sbr.rel (%p135) target = $region24
    $region23: #{down_conv_forward.10} parent=5 // pred_region
      %s139 = ssub.s32 %s9, 1
      %s140 = smul.u32 32, %s19
      %p141 = scmp.lt.s32.totalorder %s18, 1
      %s142 = scalar_select %p141, %s18, 1
      %p143 = scmp.lt.s32.totalorder %s140, 31
      %s144 = scalar_select %p143, %s140, 31
      %s145 = smul.addr %s142, 32
      %s146 = sadd.s32 %s144, %s145
      %s147 = smul.addr %s146, 8
      %s148 = scalar_lea.vmem %s0, %s147
      %p149 = pneg %p49
      %p150 = pneg %p46
      %p151 = pneg %p75
      %p152 = pneg %p72
      %p153 = scmp.lt.s32.totalorder %s18, 1
      %s154 = scalar_select %p153, %s18, 1
      %s155 = scalar_lea.vmem %s1, %s154
      %p156 = pneg %p101
      %p157 = pneg %p98
      %p158 = scmp.lt.s32.totalorder %s18, 1
      %s159 = scalar_select %p158, %s18, 1
      %s160 = scalar_lea.vmem %s2, %s159
      %s161 = smul.u32 32, %s19
      %p162 = scmp.lt.s32.totalorder %s18, 1
      %s163 = scalar_select %p162, %s18, 1
      %p164 = scmp.lt.s32.totalorder %s161, 31
      %s165 = scalar_select %p164, %s161, 31
      %s166 = smul.addr %s163, 32
      %s167 = sadd.s32 %s165, %s166
      %s168 = smul.addr %s167, 8
      %s169 = scalar_lea.vmem %s0, %s168
      %s170 = smul.u32 32, %s19
      %p171 = scmp.lt.s32.totalorder %s18, 1
      %s172 = scalar_select %p171, %s18, 1
      %s173 = scalar_lea.vmem %s1, %s172
      %p174 = scmp.lt.s32.totalorder %s18, 1
      %s175 = scalar_select %p174, %s18, 1
      %s176 = scalar_lea.vmem %s2, %s175
      %p177 = scmp.eq.s32.totalorder %s19, 0
      // Predicated region
      $region25: #{down_conv_forward.10} parent=23 // pred_check
        %p178 = pneg %p177
      $region26: #{down_conv_forward.10} parent=23 // pred_check_branch
        %180 = sbr.rel (%p178) target = $region28
      $region27: #{down_conv_forward.10} parent=23 // pred_region
        %181 = vst [vmem:[%s173] sm:$0x1] 0.0
        %182 = vst [vmem:[%s176] sm:$0x1] 0.0
      $region28: #{down_conv_forward.10} parent=23 // pred_fallthru
        _
      %v183 = vld [vmem:[%s169] sm:$0xff]
      %v184 = vld [vmem:[%s169 + $0x8] sm:$0xff]
      %v185 = vld [vmem:[%s169 + $0x10] sm:$0xff]
      %v186 = vld [vmem:[%s169 + $0x18] sm:$0xff]
      %v187 = vld [vmem:[%s169 + $0x20] sm:$0xff]
      %v188 = vld [vmem:[%s169 + $0x28] sm:$0xff]
      %v189 = vld [vmem:[%s169 + $0x30] sm:$0xff]
      %v190 = vld [vmem:[%s169 + $0x38] sm:$0xff]
      %v191 = vld [vmem:[%s169 + $0x40] sm:$0xff]
      %v192 = vld [vmem:[%s169 + $0x48] sm:$0xff]
      %v193 = vld [vmem:[%s169 + $0x50] sm:$0xff]
      %v194 = vld [vmem:[%s169 + $0x58] sm:$0xff]
      %v195 = vld [vmem:[%s169 + $0x60] sm:$0xff]
      %v196 = vld [vmem:[%s169 + $0x68] sm:$0xff]
      %v197 = vld [vmem:[%s169 + $0x70] sm:$0xff]
      %v198 = vld [vmem:[%s169 + $0x78] sm:$0xff]
      %v199 = vld [vmem:[%s169 + $0x80] sm:$0xff]
      %v200 = vld [vmem:[%s169 + $0x88] sm:$0xff]
      %v201 = vld [vmem:[%s169 + $0x90] sm:$0xff]
      %v202 = vld [vmem:[%s169 + $0x98] sm:$0xff]
      %v203 = vld [vmem:[%s169 + $0xa0] sm:$0xff]
      %v204 = vld [vmem:[%s169 + $0xa8] sm:$0xff]
      %v205 = vld [vmem:[%s169 + $0xb0] sm:$0xff]
      %v206 = vld [vmem:[%s169 + $0xb8] sm:$0xff]
      %v207 = vld [vmem:[%s169 + $0xc0] sm:$0xff]
      %v208 = vld [vmem:[%s169 + $0xc8] sm:$0xff]
      %v209 = vld [vmem:[%s169 + $0xd0] sm:$0xff]
      %v210 = vld [vmem:[%s169 + $0xd8] sm:$0xff]
      %v211 = vld [vmem:[%s169 + $0xe0] sm:$0xff]
      %v212 = vld [vmem:[%s169 + $0xe8] sm:$0xff]
      %v213 = vld [vmem:[%s169 + $0xf0] sm:$0xff]
      %v214 = vld [vmem:[%s169 + $0xf8] sm:$0xff]
      %v215 = vld [vmem:[%s173] sm:$0x1]
      %v216 = vadd.f32 %v183, %v184
      %v217 = vadd.f32 %v216, %v185
      %v218 = vadd.f32 %v217, %v186
      %v219 = vadd.f32 %v218, %v187
      %v220 = vadd.f32 %v219, %v188
      %v221 = vadd.f32 %v220, %v189
      %v222 = vadd.f32 %v221, %v190
      %v223 = vadd.f32 %v222, %v191
      %v224 = vadd.f32 %v223, %v192
      %v225 = vadd.f32 %v224, %v193
      %v226 = vadd.f32 %v225, %v194
      %v227 = vadd.f32 %v226, %v195
      %v228 = vadd.f32 %v227, %v196
      %v229 = vadd.f32 %v228, %v197
      %v230 = vadd.f32 %v229, %v198
      %v231 = vadd.f32 %v230, %v199
      %v232 = vadd.f32 %v231, %v200
      %v233 = vadd.f32 %v232, %v201
      %v234 = vadd.f32 %v233, %v202
      %v235 = vadd.f32 %v234, %v203
      %v236 = vadd.f32 %v235, %v204
      %v237 = vadd.f32 %v236, %v205
      %v238 = vadd.f32 %v237, %v206
      %v239 = vadd.f32 %v238, %v207
      %v240 = vadd.f32 %v239, %v208
      %v241 = vadd.f32 %v240, %v209
      %v242 = vadd.f32 %v241, %v210
      %v243 = vadd.f32 %v242, %v211
      %v244 = vadd.f32 %v243, %v212
      %v245 = vadd.f32 %v244, %v213
      %v246 = vadd.f32 %v245, %v214
      %v247 = vrot.slane %v246, 4
      %v248 = vadd.f32 %v246, %v247
      %v249 = vrot.slane %v248, 2
      %v250 = vadd.f32 %v248, %v249
      %v251 = vrot.slane %v250, 1
      %v252 = vadd.f32 %v250, %v251
      %v253 = vadd.f32 %v215, %v252
      %254 = vst [vmem:[%s173] sm:$0x1] %v253
      %v255 = vld [vmem:[%s176] sm:$0x1]
      %v256 = vmul.f32 %v183, %v183
      %v257 = vmul.f32 %v184, %v184
      %v258 = vmul.f32 %v185, %v185
      %v259 = vmul.f32 %v186, %v186
      %v260 = vmul.f32 %v187, %v187
      %v261 = vmul.f32 %v188, %v188
      %v262 = vmul.f32 %v189, %v189
      %v263 = vmul.f32 %v190, %v190
      %v264 = vmul.f32 %v191, %v191
      %v265 = vmul.f32 %v192, %v192
      %v266 = vmul.f32 %v193, %v193
      %v267 = vmul.f32 %v194, %v194
      %v268 = vmul.f32 %v195, %v195
      %v269 = vmul.f32 %v196, %v196
      %v270 = vmul.f32 %v197, %v197
      %v271 = vmul.f32 %v198, %v198
      %v272 = vmul.f32 %v199, %v199
      %v273 = vmul.f32 %v200, %v200
      %v274 = vmul.f32 %v201, %v201
      %v275 = vmul.f32 %v202, %v202
      %v276 = vmul.f32 %v203, %v203
      %v277 = vmul.f32 %v204, %v204
      %v278 = vmul.f32 %v205, %v205
      %v279 = vmul.f32 %v206, %v206
      %v280 = vmul.f32 %v207, %v207
      %v281 = vmul.f32 %v208, %v208
      %v282 = vmul.f32 %v209, %v209
      %v283 = vmul.f32 %v210, %v210
      %v284 = vmul.f32 %v211, %v211
      %v285 = vmul.f32 %v212, %v212
      %v286 = vmul.f32 %v213, %v213
      %v287 = vmul.f32 %v214, %v214
      %v288 = vadd.f32 %v256, %v257
      %v289 = vadd.f32 %v288, %v258
      %v290 = vadd.f32 %v289, %v259
      %v291 = vadd.f32 %v290, %v260
      %v292 = vadd.f32 %v291, %v261
      %v293 = vadd.f32 %v292, %v262
      %v294 = vadd.f32 %v293, %v263
      %v295 = vadd.f32 %v294, %v264
      %v296 = vadd.f32 %v295, %v265
      %v297 = vadd.f32 %v296, %v266
      %v298 = vadd.f32 %v297, %v267
      %v299 = vadd.f32 %v298, %v268
      %v300 = vadd.f32 %v299, %v269
      %v301 = vadd.f32 %v300, %v270
      %v302 = vadd.f32 %v301, %v271
      %v303 = vadd.f32 %v302, %v272
      %v304 = vadd.f32 %v303, %v273
      %v305 = vadd.f32 %v304, %v274
      %v306 = vadd.f32 %v305, %v275
      %v307 = vadd.f32 %v306, %v276
      %v308 = vadd.f32 %v307, %v277
      %v309 = vadd.f32 %v308, %v278
      %v310 = vadd.f32 %v309, %v279
      %v311 = vadd.f32 %v310, %v280
      %v312 = vadd.f32 %v311, %v281
      %v313 = vadd.f32 %v312, %v282
      %v314 = vadd.f32 %v313, %v283
      %v315 = vadd.f32 %v314, %v284
      %v316 = vadd.f32 %v315, %v285
      %v317 = vadd.f32 %v316, %v286
      %v318 = vadd.f32 %v317, %v287
      %v319 = vrot.slane %v318, 4
      %v320 = vadd.f32 %v318, %v319
      %v321 = vrot.slane %v320, 2
      %v322 = vadd.f32 %v320, %v321
      %v323 = vrot.slane %v322, 1
      %v324 = vadd.f32 %v322, %v323
      %v325 = vadd.f32 %v255, %v324
      %326 = vst [vmem:[%s176] sm:$0x1] %v325
      // Predicated region
      $region29: #{down_conv_forward.10} parent=23 // pred_check
        %p327 = pneg %p177
      $region30: #{down_conv_forward.10} parent=23 // pred_check_branch
        %329 = sbr.rel (%p327) target = $region32
      $region31: #{down_conv_forward.10} parent=23 // pred_region
        %v330 = vld [vmem:[%s173] sm:$0x1]
        %v331 = vld [vmem:[%s176] sm:$0x1]
        %v332 = vmul.f32 %v330, 0.00390625
        %v333 = vmul.f32 %v331, 0.00390625
        %v334 = vmul.f32 %v332, %v332
        %v335 = vsub.f32 %v333, %v334
        %v336 = vmax.f32 %v335, 0.0
        %337 = vst [vmem:[%s173] sm:$0x1] %v332
        %v338 = vadd.f32 %v336, 1e-05
        %v339 = vrsqrt.pop %v338
        %340 = vst [vmem:[%s176] sm:$0x1] %v339
      $region32: #{down_conv_forward.10} parent=23 // pred_fallthru
        _
      %p341 = scmp.lt.s32.totalorder %s18, 1
      %s342 = scalar_select %p341, %s18, 1
      %s343 = scalar_lea.vmem %s1, %s342
      %p344 = scmp.lt.s32.totalorder %s18, 1
      %s345 = scalar_select %p344, %s18, 1
      %s346 = scalar_lea.vmem %s2, %s345
      // Predicated region
      $region33: #{down_conv_forward.10} parent=23 // pred_check
        %p347 = pneg %p72
      $region34: #{down_conv_forward.10} parent=23 // pred_check_branch
        %349 = sbr.rel (%p347) target = $region36
      $region35: #{down_conv_forward.10} parent=23 // pred_region
        _
      $region36: #{down_conv_forward.10} parent=23 // pred_fallthru
        _
      // Predicated region
      $region37: #{down_conv_forward.10} parent=23 // pred_check
        %p350 = pneg %p98
      $region38: #{down_conv_forward.10} parent=23 // pred_check_branch
        %352 = sbr.rel (%p350) target = $region40
      $region39: #{down_conv_forward.10} parent=23 // pred_region
        _
      $region40: #{down_conv_forward.10} parent=23 // pred_fallthru
        _
    $region24: #{down_conv_forward.10} parent=5 // pred_fallthru
      _
    %p353 = scmp.le.s32.totalorder 2, %s9
    // Predicated region
    $region41: #{down_conv_forward.10} parent=5 // pred_check
      %p354 = pneg %p353
    $region42: #{down_conv_forward.10} parent=5 // pred_check_branch
      %356 = sbr.rel (%p354) target = $region44
    $region43: #{down_conv_forward.10} parent=5 // pred_region
      %s357 = ssub.s32 %s9, 2
      // Predicated region
      $region45: #{down_conv_forward.10} parent=43 // pred_check
        %p358 = pneg %p78
      $region46: #{down_conv_forward.10} parent=43 // pred_check_branch
        %360 = sbr.rel (%p358) target = $region48
      $region47: #{down_conv_forward.10} parent=43 // pred_region
        %p361 = scmp.lt.s32.totalorder %s20, 1
        %s362 = scalar_select %p361, %s20, 1
        %s363 = scalar_lea.vmem %s1, %s362
      $region48: #{down_conv_forward.10} parent=43 // pred_fallthru
        _
      // Predicated region
      $region49: #{down_conv_forward.10} parent=43 // pred_check
        %p364 = pneg %p104
      $region50: #{down_conv_forward.10} parent=43 // pred_check_branch
        %366 = sbr.rel (%p364) target = $region52
      $region51: #{down_conv_forward.10} parent=43 // pred_region
        %p367 = scmp.lt.s32.totalorder %s20, 1
        %s368 = scalar_select %p367, %s20, 1
        %s369 = scalar_lea.vmem %s2, %s368
      $region52: #{down_conv_forward.10} parent=43 // pred_fallthru
        _
    $region44: #{down_conv_forward.10} parent=5 // pred_fallthru
      _
  $region6: #{down_conv_forward.10} parent=0 // loop_footer
    %s13 = sadd.s32 1, %s9
  $region7: #{down_conv_forward.10} parent=0 // loop_footer_branch
    %8 = sbr.rel target = $region3
  $region8: #{down_conv_forward.10} parent=0 // loop_exit
    _

// kernel: down_conv_forward.9
$region0: #{down_conv_forward.9}
  #allocation0 [shape = 'u32[]', space=smem, size = 0x4, offset = 0x4, fixed_abs, tag = 'smem constant byte address 0x4 - core index']
  #allocation1 [shape = 'u32[144,128]{1,0:T(1,128)}', space=vmem, size = 0x12000, scoped, tag = 'internal scratch']
  %s0 = inlined_call_operand.vmem [shape: bf16[512,147], index: 0, kind: input, shape index: {}]
  %s1 = inlined_call_operand.vmem [shape: bf16[147,128], index: 1, kind: input, shape index: {}]
  %s2 = inlined_call_operand.vmem [shape: f32[512,128], index: 2, kind: output, shape index: {}]
  %s3 = sld [smem:[#allocation0]]
  $region18: #{down_conv_forward.9} parent=0
    _
  %s5 = ssub.s32 1, %s3
  %s6 = scalar_select 0, %s5, %s3
  // Predicated region
  $region2: #{down_conv_forward.9} parent=0 // pred_check
    _
  $region3: #{down_conv_forward.9} parent=0 // pred_check_branch
    %8 = sbr.rel (0) target = $region5
  $region4: #{down_conv_forward.9} parent=0 // pred_region
    _
  $region5: #{down_conv_forward.9} parent=0 // pred_fallthru
    _
  // Predicated region
  $region6: #{down_conv_forward.9} parent=0 // pred_check
    _
  $region7: #{down_conv_forward.9} parent=0 // pred_check_branch
    %10 = sbr.rel (0) target = $region9
  $region8: #{down_conv_forward.9} parent=0 // pred_region
    _
  $region9: #{down_conv_forward.9} parent=0 // pred_fallthru
    _
  %v12 = vld [vmem:[%s0] sm:$0xff]
  %v13 = vld [vmem:[%s0 + $0x8] sm:$0xff]
  %v14 = vld [vmem:[%s0 + $0x10] sm:$0xff]
  %v15 = vld [vmem:[%s0 + $0x18] sm:$0xff]
  %v16 = vld [vmem:[%s0 + $0x20] sm:$0xff]
  %v17 = vld [vmem:[%s0 + $0x28] sm:$0xff]
  %v18 = vld [vmem:[%s0 + $0x30] sm:$0xff]
  %v19 = vld [vmem:[%s0 + $0x38] sm:$0xff]
  %v20 = vld [vmem:[%s0 + $0x40] sm:$0xff]
  %v21 = vld [vmem:[%s0 + $0x48] sm:$0xff]
  %v22 = vld [vmem:[%s0 + $0x50] sm:$0xff]
  %v23 = vld [vmem:[%s0 + $0x58] sm:$0xff]
  %v24 = vld [vmem:[%s0 + $0x60] sm:$0xff]
  %v25 = vld [vmem:[%s0 + $0x68] sm:$0xff]
  %v26 = vld [vmem:[%s0 + $0x70] sm:$0xff]
  %v27 = vld [vmem:[%s0 + $0x78] sm:$0xff]
  %v28 = vld [vmem:[%s0 + $0x80] sm:$0xff]
  %v29 = vld [vmem:[%s0 + $0x88] sm:$0xff]
  %v30 = vld [vmem:[%s0 + $0x90] sm:$0xff]
  %v31 = vld [vmem:[%s0 + $0x98] sm:$0xff]
  %v32 = vld [vmem:[%s0 + $0xa0] sm:$0xff]
  %v33 = vld [vmem:[%s0 + $0xa8] sm:$0xff]
  %v34 = vld [vmem:[%s0 + $0xb0] sm:$0xff]
  %v35 = vld [vmem:[%s0 + $0xb8] sm:$0xff]
  %v36 = vld [vmem:[%s0 + $0xc0] sm:$0xff]
  %v37 = vld [vmem:[%s0 + $0xc8] sm:$0xff]
  %v38 = vld [vmem:[%s0 + $0xd0] sm:$0xff]
  %v39 = vld [vmem:[%s0 + $0xd8] sm:$0xff]
  %v40 = vld [vmem:[%s0 + $0xe0] sm:$0xff]
  %v41 = vld [vmem:[%s0 + $0xe8] sm:$0xff]
  %v42 = vld [vmem:[%s0 + $0xf0] sm:$0xff]
  %v43 = vld [vmem:[%s0 + $0xf8] sm:$0xff]
  %v44 = vld [vmem:[%s0 + $0x100] sm:$0xff]
  %v45 = vld [vmem:[%s0 + $0x108] sm:$0xff]
  %v46 = vld [vmem:[%s0 + $0x110] sm:$0xff]
  %v47 = vld [vmem:[%s0 + $0x118] sm:$0xff]
  %v48 = vld [vmem:[%s0 + $0x120] sm:$0xff]
  %v49 = vld [vmem:[%s0 + $0x128] sm:$0xff]
  %v50 = vld [vmem:[%s0 + $0x130] sm:$0xff]
  %v51 = vld [vmem:[%s0 + $0x138] sm:$0xff]
  %v52 = vld [vmem:[%s0 + $0x140] sm:$0xff]
  %v53 = vld [vmem:[%s0 + $0x148] sm:$0xff]
  %v54 = vld [vmem:[%s0 + $0x150] sm:$0xff]
  %v55 = vld [vmem:[%s0 + $0x158] sm:$0xff]
  %v56 = vld [vmem:[%s0 + $0x160] sm:$0xff]
  %v57 = vld [vmem:[%s0 + $0x168] sm:$0xff]
  %v58 = vld [vmem:[%s0 + $0x170] sm:$0xff]
  %v59 = vld [vmem:[%s0 + $0x178] sm:$0xff]
  %v60 = vld [vmem:[%s0 + $0x180] sm:$0xff]
  %v61 = vld [vmem:[%s0 + $0x188] sm:$0xff]
  %v62 = vld [vmem:[%s0 + $0x190] sm:$0xff]
  %v63 = vld [vmem:[%s0 + $0x198] sm:$0xff]
  %v64 = vld [vmem:[%s0 + $0x1a0] sm:$0xff]
  %v65 = vld [vmem:[%s0 + $0x1a8] sm:$0xff]
  %v66 = vld [vmem:[%s0 + $0x1b0] sm:$0xff]
  %v67 = vld [vmem:[%s0 + $0x1b8] sm:$0xff]
  %v68 = vld [vmem:[%s0 + $0x1c0] sm:$0xff]
  %v69 = vld [vmem:[%s0 + $0x1c8] sm:$0xff]
  %v70 = vld [vmem:[%s0 + $0x1d0] sm:$0xff]
  %v71 = vld [vmem:[%s0 + $0x1d8] sm:$0xff]
  %v72 = vld [vmem:[%s0 + $0x1e0] sm:$0xff]
  %v73 = vld [vmem:[%s0 + $0x1e8] sm:$0xff]
  %v74 = vld [vmem:[%s0 + $0x1f0] sm:$0xff]
  %v75 = vld [vmem:[%s0 + $0x1f8] sm:$0xff]
  %v76 = vld [vmem:[%s1] sm:$0xf]
  %v77 = vld [vmem:[%s1 + $0x4] sm:$0xf]
  %v78 = vld [vmem:[%s1 + $0x8] sm:$0xf]
  %v79 = vld [vmem:[%s1 + $0xc] sm:$0xf]
  %v80 = vld [vmem:[%s1 + $0x10] sm:$0xf]
  %v81 = vld [vmem:[%s1 + $0x14] sm:$0xf]
  %v82 = vld [vmem:[%s1 + $0x18] sm:$0xf]
  %v83 = vld [vmem:[%s1 + $0x1c] sm:$0xf]
  %v84 = vld [vmem:[%s1 + $0x20] sm:$0xf]
  %v85 = vld [vmem:[%s1 + $0x24] sm:$0xf]
  %v86 = vld [vmem:[%s1 + $0x28] sm:$0xf]
  %v87 = vld [vmem:[%s1 + $0x2c] sm:$0xf]
  %v88 = vld [vmem:[%s1 + $0x30] sm:$0xf]
  %v89 = vld [vmem:[%s1 + $0x34] sm:$0xf]
  %v90 = vld [vmem:[%s1 + $0x38] sm:$0xf]
  %v91 = vld [vmem:[%s1 + $0x3c] sm:$0xf]
  %v92 = vld [vmem:[%s1 + $0x40] sm:$0xf]
  %v93 = vld [vmem:[%s1 + $0x44] sm:$0xf]
  %v94 = vld [vmem:[%s1 + $0x48] sm:$0x3]
  %v159 = vunpack.c.l.b16 %v12
  %v160 = vunpack.c.h.b16 %v12
  %v161 = vunpack.c.l.b16 %v13
  %v162 = vunpack.c.h.b16 %v13
  %v163 = vunpack.c.l.b16 %v14
  %v164 = vunpack.c.h.b16 %v14
  %v165 = vunpack.c.l.b16 %v15
  %v166 = vunpack.c.h.b16 %v15
  %v167 = vunpack.c.l.b16 %v16
  %v168 = vunpack.c.h.b16 %v16
  %v169 = vunpack.c.l.b16 %v17
  %v170 = vunpack.c.h.b16 %v17
  %v171 = vunpack.c.l.b16 %v18
  %v172 = vunpack.c.h.b16 %v18
  %v173 = vunpack.c.l.b16 %v19
  %v174 = vunpack.c.h.b16 %v19
  %v175 = vunpack.c.l.b16 %v20
  %v176 = vunpack.c.h.b16 %v20
  %v177 = vunpack.c.l.b16 %v21
  %v178 = vunpack.c.h.b16 %v21
  %v179 = vunpack.c.l.b16 %v22
  %v180 = vunpack.c.h.b16 %v22
  %v181 = vunpack.c.l.b16 %v23
  %v182 = vunpack.c.h.b16 %v23
  %v183 = vunpack.c.l.b16 %v24
  %v184 = vunpack.c.h.b16 %v24
  %v185 = vunpack.c.l.b16 %v25
  %v186 = vunpack.c.h.b16 %v25
  %v187 = vunpack.c.l.b16 %v26
  %v188 = vunpack.c.h.b16 %v26
  %v189 = vunpack.c.l.b16 %v27
  %v190 = vunpack.c.h.b16 %v27
  %v191 = vunpack.c.l.b16 %v28
  %v192 = vunpack.c.h.b16 %v28
  %v193 = vunpack.c.l.b16 %v29
  %v194 = vunpack.c.h.b16 %v29
  %v195 = vunpack.c.l.b16 %v30
  %v196 = vunpack.c.h.b16 %v30
  %v197 = vunpack.c.l.b16 %v31
  %v198 = vunpack.c.h.b16 %v31
  %v199 = vunpack.c.l.b16 %v32
  %v200 = vunpack.c.h.b16 %v32
  %v201 = vunpack.c.l.b16 %v33
  %v202 = vunpack.c.h.b16 %v33
  %v203 = vunpack.c.l.b16 %v34
  %v204 = vunpack.c.h.b16 %v34
  %v205 = vunpack.c.l.b16 %v35
  %v206 = vunpack.c.h.b16 %v35
  %v207 = vunpack.c.l.b16 %v36
  %v208 = vunpack.c.h.b16 %v36
  %v209 = vunpack.c.l.b16 %v37
  %v210 = vunpack.c.h.b16 %v37
  %v211 = vunpack.c.l.b16 %v38
  %v212 = vunpack.c.h.b16 %v38
  %v213 = vunpack.c.l.b16 %v39
  %v214 = vunpack.c.h.b16 %v39
  %v215 = vunpack.c.l.b16 %v40
  %v216 = vunpack.c.h.b16 %v40
  %v217 = vunpack.c.l.b16 %v41
  %v218 = vunpack.c.h.b16 %v41
  %v219 = vunpack.c.l.b16 %v42
  %v220 = vunpack.c.h.b16 %v42
  %v221 = vunpack.c.l.b16 %v43
  %v222 = vunpack.c.h.b16 %v43
  %v223 = vunpack.c.l.b16 %v44
  %v224 = vunpack.c.h.b16 %v44
  %v225 = vunpack.c.l.b16 %v45
  %v226 = vunpack.c.h.b16 %v45
  %v227 = vunpack.c.l.b16 %v46
  %v228 = vunpack.c.h.b16 %v46
  %v229 = vunpack.c.l.b16 %v47
  %v230 = vunpack.c.h.b16 %v47
  %v231 = vunpack.c.l.b16 %v48
  %v232 = vunpack.c.h.b16 %v48
  %v233 = vunpack.c.l.b16 %v49
  %v234 = vunpack.c.h.b16 %v49
  %v235 = vunpack.c.l.b16 %v50
  %v236 = vunpack.c.h.b16 %v50
  %v237 = vunpack.c.l.b16 %v51
  %v238 = vunpack.c.h.b16 %v51
  %v239 = vunpack.c.l.b16 %v52
  %v240 = vunpack.c.h.b16 %v52
  %v241 = vunpack.c.l.b16 %v53
  %v242 = vunpack.c.h.b16 %v53
  %v243 = vunpack.c.l.b16 %v54
  %v244 = vunpack.c.h.b16 %v54
  %v245 = vunpack.c.l.b16 %v55
  %v246 = vunpack.c.h.b16 %v55
  %v247 = vunpack.c.l.b16 %v56
  %v248 = vunpack.c.h.b16 %v56
  %v249 = vunpack.c.l.b16 %v57
  %v250 = vunpack.c.h.b16 %v57
  %v251 = vunpack.c.l.b16 %v58
  %v252 = vunpack.c.h.b16 %v58
  %v253 = vunpack.c.l.b16 %v59
  %v254 = vunpack.c.h.b16 %v59
  %v255 = vunpack.c.l.b16 %v60
  %v256 = vunpack.c.h.b16 %v60
  %v257 = vunpack.c.l.b16 %v61
  %v258 = vunpack.c.h.b16 %v61
  %v259 = vunpack.c.l.b16 %v62
  %v260 = vunpack.c.h.b16 %v62
  %v261 = vunpack.c.l.b16 %v63
  %v262 = vunpack.c.h.b16 %v63
  %v263 = vunpack.c.l.b16 %v64
  %v264 = vunpack.c.h.b16 %v64
  %v265 = vunpack.c.l.b16 %v65
  %v266 = vunpack.c.h.b16 %v65
  %v267 = vunpack.c.l.b16 %v66
  %v268 = vunpack.c.h.b16 %v66
  %v269 = vunpack.c.l.b16 %v67
  %v270 = vunpack.c.h.b16 %v67
  %v271 = vunpack.c.l.b16 %v68
  %v272 = vunpack.c.h.b16 %v68
  %v273 = vunpack.c.l.b16 %v69
  %v274 = vunpack.c.h.b16 %v69
  %v275 = vunpack.c.l.b16 %v70
  %v276 = vunpack.c.h.b16 %v70
  %v277 = vunpack.c.l.b16 %v71
  %v278 = vunpack.c.h.b16 %v71
  %v279 = vunpack.c.l.b16 %v72
  %v280 = vunpack.c.h.b16 %v72
  %v281 = vunpack.c.l.b16 %v73
  %v282 = vunpack.c.h.b16 %v73
  %v283 = vunpack.c.l.b16 %v74
  %v284 = vunpack.c.h.b16 %v74
  %v285 = vunpack.c.l.b16 %v75
  %v286 = vunpack.c.h.b16 %v75
  %v287 = vpack.c.b16 %v161, %v159
  %v288 = vpack.c.b16 %v162, %v160
  %v289 = vpack.c.b16 %v165, %v163
  %v290 = vpack.c.b16 %v166, %v164
  %v291 = vpack.c.b16 %v169, %v167
  %v292 = vpack.c.b16 %v170, %v168
  %v293 = vpack.c.b16 %v173, %v171
  %v294 = vpack.c.b16 %v174, %v172
  %v295 = vpack.c.b16 %v177, %v175
  %v296 = vpack.c.b16 %v178, %v176
  %v297 = vpack.c.b16 %v181, %v179
  %v298 = vpack.c.b16 %v182, %v180
  %v299 = vpack.c.b16 %v185, %v183
  %v300 = vpack.c.b16 %v186, %v184
  %v301 = vpack.c.b16 %v189, %v187
  %v302 = vpack.c.b16 %v190, %v188
  %v303 = vpack.c.b16 %v193, %v191
  %v304 = vpack.c.b16 %v194, %v192
  %v305 = vpack.c.b16 %v197, %v195
  %v306 = vpack.c.b16 %v198, %v196
  %v307 = vpack.c.b16 %v201, %v199
  %v308 = vpack.c.b16 %v202, %v200
  %v309 = vpack.c.b16 %v205, %v203
  %v310 = vpack.c.b16 %v206, %v204
  %v311 = vpack.c.b16 %v209, %v207
  %v312 = vpack.c.b16 %v210, %v208
  %v313 = vpack.c.b16 %v213, %v211
  %v314 = vpack.c.b16 %v214, %v212
  %v315 = vpack.c.b16 %v217, %v215
  %v316 = vpack.c.b16 %v218, %v216
  %v317 = vpack.c.b16 %v221, %v219
  %v318 = vpack.c.b16 %v222, %v220
  %v319 = vpack.c.b16 %v225, %v223
  %v320 = vpack.c.b16 %v226, %v224
  %v321 = vpack.c.b16 %v229, %v227
  %v322 = vpack.c.b16 %v230, %v228
  %v323 = vpack.c.b16 %v233, %v231
  %v324 = vpack.c.b16 %v234, %v232
  %v325 = vpack.c.b16 %v237, %v235
  %v326 = vpack.c.b16 %v238, %v236
  %v327 = vpack.c.b16 %v241, %v239
  %v328 = vpack.c.b16 %v242, %v240
  %v329 = vpack.c.b16 %v245, %v243
  %v330 = vpack.c.b16 %v246, %v244
  %v331 = vpack.c.b16 %v249, %v247
  %v332 = vpack.c.b16 %v250, %v248
  %v333 = vpack.c.b16 %v253, %v251
  %v334 = vpack.c.b16 %v254, %v252
  %v335 = vpack.c.b16 %v257, %v255
  %v336 = vpack.c.b16 %v258, %v256
  %v337 = vpack.c.b16 %v261, %v259
  %v338 = vpack.c.b16 %v262, %v260
  %v339 = vpack.c.b16 %v265, %v263
  %v340 = vpack.c.b16 %v266, %v264
  %v341 = vpack.c.b16 %v269, %v267
  %v342 = vpack.c.b16 %v270, %v268
  %v343 = vpack.c.b16 %v273, %v271
  %v344 = vpack.c.b16 %v274, %v272
  %v345 = vpack.c.b16 %v277, %v275
  %v346 = vpack.c.b16 %v278, %v276
  %v347 = vpack.c.b16 %v281, %v279
  %v348 = vpack.c.b16 %v282, %v280
  %v349 = vpack.c.b16 %v285, %v283
  %v350 = vpack.c.b16 %v286, %v284
  %v402 = vunpack.c.l.b16 %v76
  %v403 = vunpack.c.l.b16 %v77
  %v404 = vunpack.c.l.b16 %v78
  %v405 = vunpack.c.l.b16 %v79
  %v406 = vunpack.c.l.b16 %v80
  %v407 = vunpack.c.l.b16 %v81
  %v408 = vunpack.c.l.b16 %v82
  %v409 = vunpack.c.l.b16 %v83
  %v410 = vunpack.c.l.b16 %v84
  %v411 = vunpack.c.l.b16 %v85
  %v412 = vunpack.c.l.b16 %v86
  %v413 = vunpack.c.l.b16 %v87
  %v414 = vunpack.c.l.b16 %v88
  %v415 = vunpack.c.l.b16 %v89
  %v416 = vunpack.c.l.b16 %v90
  %v417 = vunpack.c.l.b16 %v91
  %v418 = vunpack.c.l.b16 %v92
  %v419 = vunpack.c.l.b16 %v93
  %v420 = vunpack.c.l.b16 %v94
  %v421 = vpack.c.b16 %v403, %v402
  %v422 = vpack.c.b16 %v405, %v404
  %v423 = vpack.c.b16 %v407, %v406
  %v424 = vpack.c.b16 %v409, %v408
  %v425 = vpack.c.b16 %v411, %v410
  %v426 = vpack.c.b16 %v413, %v412
  %v427 = vpack.c.b16 %v415, %v414
  %v428 = vpack.c.b16 %v417, %v416
  %v429 = vpack.c.b16 %v419, %v418
  %v430 = vpack.c.b16 %v420, %v420
  %vm440 = vcmask 154624
  %v442 = vsel %vm440, %v288, 0
  %v445 = vsel %vm440, %v290, 0
  %v448 = vsel %vm440, %v292, 0
  %v451 = vsel %vm440, %v294, 0
  %v454 = vsel %vm440, %v296, 0
  %v457 = vsel %vm440, %v298, 0
  %v460 = vsel %vm440, %v300, 0
  %v463 = vsel %vm440, %v302, 0
  %v466 = vsel %vm440, %v304, 0
  %v469 = vsel %vm440, %v306, 0
  %v472 = vsel %vm440, %v308, 0
  %v475 = vsel %vm440, %v310, 0
  %v478 = vsel %vm440, %v312, 0
  %v481 = vsel %vm440, %v314, 0
  %v484 = vsel %vm440, %v316, 0
  %v487 = vsel %vm440, %v318, 0
  %v490 = vsel %vm440, %v320, 0
  %v493 = vsel %vm440, %v322, 0
  %v496 = vsel %vm440, %v324, 0
  %v499 = vsel %vm440, %v326, 0
  %v502 = vsel %vm440, %v328, 0
  %v505 = vsel %vm440, %v330, 0
  %v508 = vsel %vm440, %v332, 0
  %v511 = vsel %vm440, %v334, 0
  %v514 = vsel %vm440, %v336, 0
  %v517 = vsel %vm440, %v338, 0
  %v520 = vsel %vm440, %v340, 0
  %v523 = vsel %vm440, %v342, 0
  %v526 = vsel %vm440, %v344, 0
  %v529 = vsel %vm440, %v346, 0
  %v532 = vsel %vm440, %v348, 0
  %v535 = vsel %vm440, %v350, 0
  %vm537 = vcmask 1040384
  %vm538 = vcmask 1041408
  %v539 = vsel %vm537, 4294967295, 65535
  %v540 = vsel %vm538, %v539, 0
  %v542 = vand.u32 %v430, %v540
  %544 = vmatprep.subr.bf16.mxu0 0
  %545 = vmatpush1.bf16.msra.mxu0 %v421
  %546 = vmatprep.subr.bf16.mxu0 0
  %547 = vmatpush1.bf16.msra.mxu0 %v422
  %548 = vmatprep.subr.bf16.mxu0 0
  %549 = vmatpush1.bf16.msra.mxu0 %v423
  %550 = vmatprep.subr.bf16.mxu0 0
  %551 = vmatpush1.bf16.msra.mxu0 %v424
  %552 = vmatprep.subr.bf16.mxu0 0
  %553 = vmatpush1.bf16.msra.mxu0 %v425
  %554 = vmatprep.subr.bf16.mxu0 0
  %555 = vmatpush1.bf16.msra.mxu0 %v426
  %556 = vmatprep.subr.bf16.mxu0 0
  %557 = vmatpush1.bf16.msra.mxu0 %v427
  %558 = vmatprep.subr.bf16.mxu0 0
  %559 = vmatpush1.bf16.msra.mxu0 %v428
  %560 = vmatprep.subr.bf16.mxu0 0
  %561 = vmatpush1.bf16.msra.mxu0 %v429
  %562 = vmatprep.subr.bf16.mxu0 0
  %563 = vmatpush1.bf16.msra.mxu0 %v542
  %564 = vmatprep.subr.bf16.mxu0 0
  %565 = vmatpush1.bf16.msra.mxu0 0
  %566 = vmatprep.subr.bf16.mxu0 0
  %567 = vmatpush1.bf16.msra.mxu0 0
  %568 = vmatprep.subr.bf16.mxu0 0
  %569 = vmatpush1.bf16.msra.mxu0 0
  %570 = vmatprep.subr.bf16.mxu0 0
  %571 = vmatpush1.bf16.msra.mxu0 0
  %572 = vmatprep.subr.bf16.mxu0 0
  %573 = vmatpush1.bf16.msra.mxu0 0
  %574 = vmatprep.subr.bf16.mxu0 0
  %575 = vmatpush1.bf16.msra.mxu0 0
  %576 = vmatprep.mubr.bf16.mxu0 %v442
  %577 = vmatmul.mubr.bf16.gmra.mrb[0].mxu0 %v287
  %v578 = vpop.f32.mrb[0].mxu0
  %v579 = vadd.f32 0.0, %v578
  %v580 = vpop.f32.mrb[0].mxu0
  %v581 = vpop.f32.mrb[0].mxu0
  %v582 = vadd.f32 0.0, %v581
  %v583 = vpop.f32.mrb[0].mxu0
  %584 = vmatprep.mubr.bf16.mxu0 %v445
  %585 = vmatmul.mubr.bf16.gmra.mrb[0].mxu0 %v289
  %v586 = vpop.f32.mrb[0].mxu0
  %v587 = vadd.f32 0.0, %v586
  %v588 = vpop.f32.mrb[0].mxu0
  %v589 = vpop.f32.mrb[0].mxu0
  %v590 = vadd.f32 0.0, %v589
  %v591 = vpop.f32.mrb[0].mxu0
  %592 = vmatprep.mubr.bf16.mxu0 %v448
  %593 = vmatmul.mubr.bf16.gmra.mrb[0].mxu0 %v291
  %v594 = vpop.f32.mrb[0].mxu0
  %v595 = vadd.f32 0.0, %v594
  %v596 = vpop.f32.mrb[0].mxu0
  %v597 = vpop.f32.mrb[0].mxu0
  %v598 = vadd.f32 0.0, %v597
  %v599 = vpop.f32.mrb[0].mxu0
  %600 = vmatprep.mubr.bf16.mxu0 %v451
  %601 = vmatmul.mubr.bf16.gmra.mrb[0].mxu0 %v293
  %v602 = vpop.f32.mrb[0].mxu0
  %v603 = vadd.f32 0.0, %v602
  %v604 = vpop.f32.mrb[0].mxu0
  %v605 = vpop.f32.mrb[0].mxu0
  %v606 = vadd.f32 0.0, %v605
  %v607 = vpop.f32.mrb[0].mxu0
  %608 = vmatprep.mubr.bf16.mxu0 %v454
  %609 = vmatmul.mubr.bf16.gmra.mrb[0].mxu0 %v295
  %v610 = vpop.f32.mrb[0].mxu0
  %v611 = vadd.f32 0.0, %v610
  %v612 = vpop.f32.mrb[0].mxu0
  %v613 = vpop.f32.mrb[0].mxu0
  %v614 = vadd.f32 0.0, %v613
  %v615 = vpop.f32.mrb[0].mxu0
  %616 = vmatprep.mubr.bf16.mxu0 %v457
  %617 = vmatmul.mubr.bf16.gmra.mrb[0].mxu0 %v297
  %v618 = vpop.f32.mrb[0].mxu0
  %v619 = vadd.f32 0.0, %v618
  %v620 = vpop.f32.mrb[0].mxu0
  %v621 = vpop.f32.mrb[0].mxu0
  %v622 = vadd.f32 0.0, %v621
  %v623 = vpop.f32.mrb[0].mxu0
  %624 = vmatprep.mubr.bf16.mxu0 %v460
  %625 = vmatmul.mubr.bf16.gmra.mrb[0].mxu0 %v299
  %v626 = vpop.f32.mrb[0].mxu0
  %v627 = vadd.f32 0.0, %v626
  %v628 = vpop.f32.mrb[0].mxu0
  %v629 = vpop.f32.mrb[0].mxu0
  %v630 = vadd.f32 0.0, %v629
  %v631 = vpop.f32.mrb[0].mxu0
  %632 = vmatprep.mubr.bf16.mxu0 %v463
  %633 = vmatmul.mubr.bf16.gmra.mrb[0].mxu0 %v301
  %v634 = vpop.f32.mrb[0].mxu0
  %v635 = vadd.f32 0.0, %v634
  %v636 = vpop.f32.mrb[0].mxu0
  %v637 = vpop.f32.mrb[0].mxu0
  %v638 = vadd.f32 0.0, %v637
  %v639 = vpop.f32.mrb[0].mxu0
  %640 = vmatprep.mubr.bf16.mxu0 %v466
  %641 = vmatmul.mubr.bf16.gmra.mrb[0].mxu0 %v303
  %v642 = vpop.f32.mrb[0].mxu0
  %v643 = vadd.f32 0.0, %v642
  %v644 = vpop.f32.mrb[0].mxu0
  %v645 = vpop.f32.mrb[0].mxu0
  %v646 = vadd.f32 0.0, %v645
  %v647 = vpop.f32.mrb[0].mxu0
  %648 = vmatprep.mubr.bf16.mxu0 %v469
  %649 = vmatmul.mubr.bf16.gmra.mrb[0].mxu0 %v305
  %v650 = vpop.f32.mrb[0].mxu0
  %v651 = vadd.f32 0.0, %v650
  %v652 = vpop.f32.mrb[0].mxu0
  %v653 = vpop.f32.mrb[0].mxu0
  %v654 = vadd.f32 0.0, %v653
  %v655 = vpop.f32.mrb[0].mxu0
  %656 = vmatprep.mubr.bf16.mxu0 %v472
  %657 = vmatmul.mubr.bf16.gmra.mrb[0].mxu0 %v307
  %v658 = vpop.f32.mrb[0].mxu0
  %v659 = vadd.f32 0.0, %v658
  %v660 = vpop.f32.mrb[0].mxu0
  %v661 = vpop.f32.mrb[0].mxu0
  %v662 = vadd.f32 0.0, %v661
  %v663 = vpop.f32.mrb[0].mxu0
  %664 = vmatprep.mubr.bf16.mxu0 %v475
  %665 = vmatmul.mubr.bf16.gmra.mrb[0].mxu0 %v309
  %v666 = vpop.f32.mrb[0].mxu0
  %v667 = vadd.f32 0.0, %v666
  %v668 = vpop.f32.mrb[0].mxu0
  %v669 = vpop.f32.mrb[0].mxu0
  %v670 = vadd.f32 0.0, %v669
  %v671 = vpop.f32.mrb[0].mxu0
  %672 = vmatprep.mubr.bf16.mxu0 %v478
  %673 = vmatmul.mubr.bf16.gmra.mrb[0].mxu0 %v311
  %v674 = vpop.f32.mrb[0].mxu0
  %v675 = vadd.f32 0.0, %v674
  %v676 = vpop.f32.mrb[0].mxu0
  %v677 = vpop.f32.mrb[0].mxu0
  %v678 = vadd.f32 0.0, %v677
  %v679 = vpop.f32.mrb[0].mxu0
  %680 = vmatprep.mubr.bf16.mxu0 %v481
  %681 = vmatmul.mubr.bf16.gmra.mrb[0].mxu0 %v313
  %v682 = vpop.f32.mrb[0].mxu0
  %v683 = vadd.f32 0.0, %v682
  %v684 = vpop.f32.mrb[0].mxu0
  %v685 = vpop.f32.mrb[0].mxu0
  %v686 = vadd.f32 0.0, %v685
  %v687 = vpop.f32.mrb[0].mxu0
  %688 = vmatprep.mubr.bf16.mxu0 %v484
  %689 = vmatmul.mubr.bf16.gmra.mrb[0].mxu0 %v315
  %v690 = vpop.f32.mrb[0].mxu0
  %v691 = vadd.f32 0.0, %v690
  %v692 = vpop.f32.mrb[0].mxu0
  %v693 = vpop.f32.mrb[0].mxu0
  %v694 = vadd.f32 0.0, %v693
  %v695 = vpop.f32.mrb[0].mxu0
  %696 = vmatprep.mubr.bf16.mxu0 %v487
  %697 = vmatmul.mubr.bf16.gmra.mrb[0].mxu0 %v317
  %v698 = vpop.f32.mrb[0].mxu0
  %v699 = vadd.f32 0.0, %v698
  %v700 = vpop.f32.mrb[0].mxu0
  %v701 = vpop.f32.mrb[0].mxu0
  %v702 = vadd.f32 0.0, %v701
  %v703 = vpop.f32.mrb[0].mxu0
  %704 = vmatprep.mubr.bf16.mxu0 %v490
  %705 = vmatmul.mubr.bf16.gmra.mrb[0].mxu0 %v319
  %v706 = vpop.f32.mrb[0].mxu0
  %v707 = vadd.f32 0.0, %v706
  %v708 = vpop.f32.mrb[0].mxu0
  %v709 = vpop.f32.mrb[0].mxu0
  %v710 = vadd.f32 0.0, %v709
  %v711 = vpop.f32.mrb[0].mxu0
  %712 = vmatprep.mubr.bf16.mxu0 %v493
  %713 = vmatmul.mubr.bf16.gmra.mrb[0].mxu0 %v321
  %v714 = vpop.f32.mrb[0].mxu0
  %v715 = vadd.f32 0.0, %v714
  %v716 = vpop.f32.mrb[0].mxu0
  %v717 = vpop.f32.mrb[0].mxu0
  %v718 = vadd.f32 0.0, %v717
  %v719 = vpop.f32.mrb[0].mxu0
  %720 = vmatprep.mubr.bf16.mxu0 %v496
  %721 = vmatmul.mubr.bf16.gmra.mrb[0].mxu0 %v323
  %v722 = vpop.f32.mrb[0].mxu0
  %v723 = vadd.f32 0.0, %v722
  %v724 = vpop.f32.mrb[0].mxu0
  %v725 = vpop.f32.mrb[0].mxu0
  %v726 = vadd.f32 0.0, %v725
  %v727 = vpop.f32.mrb[0].mxu0
  %728 = vmatprep.mubr.bf16.mxu0 %v499
  %729 = vmatmul.mubr.bf16.gmra.mrb[0].mxu0 %v325
  %v730 = vpop.f32.mrb[0].mxu0
  %v731 = vadd.f32 0.0, %v730
  %v732 = vpop.f32.mrb[0].mxu0
  %v733 = vpop.f32.mrb[0].mxu0
  %v734 = vadd.f32 0.0, %v733
  %v735 = vpop.f32.mrb[0].mxu0
  %736 = vmatprep.mubr.bf16.mxu0 %v502
  %737 = vmatmul.mubr.bf16.gmra.mrb[0].mxu0 %v327
  %v738 = vpop.f32.mrb[0].mxu0
  %v739 = vadd.f32 0.0, %v738
  %v740 = vpop.f32.mrb[0].mxu0
  %v741 = vpop.f32.mrb[0].mxu0
  %v742 = vadd.f32 0.0, %v741
  %v743 = vpop.f32.mrb[0].mxu0
  %744 = vmatprep.mubr.bf16.mxu0 %v505
  %745 = vmatmul.mubr.bf16.gmra.mrb[0].mxu0 %v329
  %v746 = vpop.f32.mrb[0].mxu0
  %v747 = vadd.f32 0.0, %v746
  %v748 = vpop.f32.mrb[0].mxu0
  %v749 = vpop.f32.mrb[0].mxu0
  %v750 = vadd.f32 0.0, %v749
  %v751 = vpop.f32.mrb[0].mxu0
  %752 = vmatprep.mubr.bf16.mxu0 %v508
  %753 = vmatmul.mubr.bf16.gmra.mrb[0].mxu0 %v331
  %v754 = vpop.f32.mrb[0].mxu0
  %v755 = vadd.f32 0.0, %v754
  %v756 = vpop.f32.mrb[0].mxu0
  %v757 = vpop.f32.mrb[0].mxu0
  %v758 = vadd.f32 0.0, %v757
  %v759 = vpop.f32.mrb[0].mxu0
  %760 = vmatprep.mubr.bf16.mxu0 %v511
  %761 = vmatmul.mubr.bf16.gmra.mrb[0].mxu0 %v333
  %v762 = vpop.f32.mrb[0].mxu0
  %v763 = vadd.f32 0.0, %v762
  %v764 = vpop.f32.mrb[0].mxu0
  %v765 = vpop.f32.mrb[0].mxu0
  %v766 = vadd.f32 0.0, %v765
  %v767 = vpop.f32.mrb[0].mxu0
  %768 = vmatprep.mubr.bf16.mxu0 %v514
  %769 = vmatmul.mubr.bf16.gmra.mrb[0].mxu0 %v335
  %v770 = vpop.f32.mrb[0].mxu0
  %v771 = vadd.f32 0.0, %v770
  %v772 = vpop.f32.mrb[0].mxu0
  %v773 = vpop.f32.mrb[0].mxu0
  %v774 = vadd.f32 0.0, %v773
  %v775 = vpop.f32.mrb[0].mxu0
  %776 = vmatprep.mubr.bf16.mxu0 %v517
  %777 = vmatmul.mubr.bf16.gmra.mrb[0].mxu0 %v337
  %v778 = vpop.f32.mrb[0].mxu0
  %v779 = vadd.f32 0.0, %v778
  %v780 = vpop.f32.mrb[0].mxu0
  %v781 = vpop.f32.mrb[0].mxu0
  %v782 = vadd.f32 0.0, %v781
  %v783 = vpop.f32.mrb[0].mxu0
  %784 = vmatprep.mubr.bf16.mxu0 %v520
  %785 = vmatmul.mubr.bf16.gmra.mrb[0].mxu0 %v339
  %v786 = vpop.f32.mrb[0].mxu0
  %v787 = vadd.f32 0.0, %v786
  %v788 = vpop.f32.mrb[0].mxu0
  %v789 = vpop.f32.mrb[0].mxu0
  %v790 = vadd.f32 0.0, %v789
  %v791 = vpop.f32.mrb[0].mxu0
  %792 = vmatprep.mubr.bf16.mxu0 %v523
  %793 = vmatmul.mubr.bf16.gmra.mrb[0].mxu0 %v341
  %v794 = vpop.f32.mrb[0].mxu0
  %v795 = vadd.f32 0.0, %v794
  %v796 = vpop.f32.mrb[0].mxu0
  %v797 = vpop.f32.mrb[0].mxu0
  %v798 = vadd.f32 0.0, %v797
  %v799 = vpop.f32.mrb[0].mxu0
  %800 = vmatprep.mubr.bf16.mxu0 %v526
  %801 = vmatmul.mubr.bf16.gmra.mrb[0].mxu0 %v343
  %v802 = vpop.f32.mrb[0].mxu0
  %v803 = vadd.f32 0.0, %v802
  %v804 = vpop.f32.mrb[0].mxu0
  %v805 = vpop.f32.mrb[0].mxu0
  %v806 = vadd.f32 0.0, %v805
  %v807 = vpop.f32.mrb[0].mxu0
  %808 = vmatprep.mubr.bf16.mxu0 %v529
  %809 = vmatmul.mubr.bf16.gmra.mrb[0].mxu0 %v345
  %v810 = vpop.f32.mrb[0].mxu0
  %v811 = vadd.f32 0.0, %v810
  %v812 = vpop.f32.mrb[0].mxu0
  %v813 = vpop.f32.mrb[0].mxu0
  %v814 = vadd.f32 0.0, %v813
  %v815 = vpop.f32.mrb[0].mxu0
  %816 = vmatprep.mubr.bf16.mxu0 %v532
  %817 = vmatmul.mubr.bf16.gmra.mrb[0].mxu0 %v347
  %v818 = vpop.f32.mrb[0].mxu0
  %v819 = vadd.f32 0.0, %v818
  %v820 = vpop.f32.mrb[0].mxu0
  %v821 = vpop.f32.mrb[0].mxu0
  %v822 = vadd.f32 0.0, %v821
  %v823 = vpop.f32.mrb[0].mxu0
  %824 = vmatprep.mubr.bf16.mxu0 %v535
  %825 = vmatmul.mubr.bf16.gmra.mrb[0].mxu0 %v349
  %v826 = vpop.f32.mrb[0].mxu0
  %v827 = vadd.f32 0.0, %v826
  %v828 = vpop.f32.mrb[0].mxu0
  %v829 = vpop.f32.mrb[0].mxu0
  %v830 = vadd.f32 0.0, %v829
  %v831 = vpop.f32.mrb[0].mxu0
  %832 = vdwg.mxu0
  %833 = vst [vmem:[%s2] sm:$0xff] %v579
  %834 = vst [vmem:[%s2 + $0x8] sm:$0xff] %v582
  %835 = vst [vmem:[%s2 + $0x10] sm:$0xff] %v587
  %836 = vst [vmem:[%s2 + $0x18] sm:$0xff] %v590
  %837 = vst [vmem:[%s2 + $0x20] sm:$0xff] %v595
  %838 = vst [vmem:[%s2 + $0x28] sm:$0xff] %v598
  %839 = vst [vmem:[%s2 + $0x30] sm:$0xff] %v603
  %840 = vst [vmem:[%s2 + $0x38] sm:$0xff] %v606
  %841 = vst [vmem:[%s2 + $0x40] sm:$0xff] %v611
  %842 = vst [vmem:[%s2 + $0x48] sm:$0xff] %v614
  %843 = vst [vmem:[%s2 + $0x50] sm:$0xff] %v619
  %844 = vst [vmem:[%s2 + $0x58] sm:$0xff] %v622
  %845 = vst [vmem:[%s2 + $0x60] sm:$0xff] %v627
  %846 = vst [vmem:[%s2 + $0x68] sm:$0xff] %v630
  %847 = vst [vmem:[%s2 + $0x70] sm:$0xff] %v635
  %848 = vst [vmem:[%s2 + $0x78] sm:$0xff] %v638
  %849 = vst [vmem:[%s2 + $0x80] sm:$0xff] %v643
  %850 = vst [vmem:[%s2 + $0x88] sm:$0xff] %v646
  %851 = vst [vmem:[%s2 + $0x90] sm:$0xff] %v651
  %852 = vst [vmem:[%s2 + $0x98] sm:$0xff] %v654
  %853 = vst [vmem:[%s2 + $0xa0] sm:$0xff] %v659
  %854 = vst [vmem:[%s2 + $0xa8] sm:$0xff] %v662
  %855 = vst [vmem:[%s2 + $0xb0] sm:$0xff] %v667
  %856 = vst [vmem:[%s2 + $0xb8] sm:$0xff] %v670
  %857 = vst [vmem:[%s2 + $0xc0] sm:$0xff] %v675
  %858 = vst [vmem:[%s2 + $0xc8] sm:$0xff] %v678
  %859 = vst [vmem:[%s2 + $0xd0] sm:$0xff] %v683
  %860 = vst [vmem:[%s2 + $0xd8] sm:$0xff] %v686
  %861 = vst [vmem:[%s2 + $0xe0] sm:$0xff] %v691
  %862 = vst [vmem:[%s2 + $0xe8] sm:$0xff] %v694
  %863 = vst [vmem:[%s2 + $0xf0] sm:$0xff] %v699
  %864 = vst [vmem:[%s2 + $0xf8] sm:$0xff] %v702
  %865 = vst [vmem:[%s2 + $0x100] sm:$0xff] %v707
  %866 = vst [vmem:[%s2 + $0x108] sm:$0xff] %v710
  %867 = vst [vmem:[%s2 + $0x110] sm:$0xff] %v715
  %868 = vst [vmem:[%s2 + $0x118] sm:$0xff] %v718
  %869 = vst [vmem:[%s2 + $0x120] sm:$0xff] %v723
  %870 = vst [vmem:[%s2 + $0x128] sm:$0xff] %v726
  %871 = vst [vmem:[%s2 + $0x130] sm:$0xff] %v731
  %872 = vst [vmem:[%s2 + $0x138] sm:$0xff] %v734
  %873 = vst [vmem:[%s2 + $0x140] sm:$0xff] %v739
  %874 = vst [vmem:[%s2 + $0x148] sm:$0xff] %v742
  %875 = vst [vmem:[%s2 + $0x150] sm:$0xff] %v747
  %876 = vst [vmem:[%s2 + $0x158] sm:$0xff] %v750
  %877 = vst [vmem:[%s2 + $0x160] sm:$0xff] %v755
  %878 = vst [vmem:[%s2 + $0x168] sm:$0xff] %v758
  %879 = vst [vmem:[%s2 + $0x170] sm:$0xff] %v763
  %880 = vst [vmem:[%s2 + $0x178] sm:$0xff] %v766
  %881 = vst [vmem:[%s2 + $0x180] sm:$0xff] %v771
  %882 = vst [vmem:[%s2 + $0x188] sm:$0xff] %v774
  %883 = vst [vmem:[%s2 + $0x190] sm:$0xff] %v779
  %884 = vst [vmem:[%s2 + $0x198] sm:$0xff] %v782
  %885 = vst [vmem:[%s2 + $0x1a0] sm:$0xff] %v787
  %886 = vst [vmem:[%s2 + $0x1a8] sm:$0xff] %v790
  %887 = vst [vmem:[%s2 + $0x1b0] sm:$0xff] %v795
  %888 = vst [vmem:[%s2 + $0x1b8] sm:$0xff] %v798
  %889 = vst [vmem:[%s2 + $0x1c0] sm:$0xff] %v803
  %890 = vst [vmem:[%s2 + $0x1c8] sm:$0xff] %v806
  %891 = vst [vmem:[%s2 + $0x1d0] sm:$0xff] %v811
  %892 = vst [vmem:[%s2 + $0x1d8] sm:$0xff] %v814
  %893 = vst [vmem:[%s2 + $0x1e0] sm:$0xff] %v819
  %894 = vst [vmem:[%s2 + $0x1e8] sm:$0xff] %v822
  %895 = vst [vmem:[%s2 + $0x1f0] sm:$0xff] %v827
  %896 = vst [vmem:[%s2 + $0x1f8] sm:$0xff] %v830
  // Predicated region
  $region10: #{down_conv_forward.9} parent=0 // pred_check
    _
  $region11: #{down_conv_forward.9} parent=0 // pred_check_branch
    %898 = sbr.rel (0) target = $region13
  $region12: #{down_conv_forward.9} parent=0 // pred_region
    _
  $region13: #{down_conv_forward.9} parent=0 // pred_fallthru
    _
  // Predicated region
  $region14: #{down_conv_forward.9} parent=0 // pred_check
    _
  $region15: #{down_conv_forward.9} parent=0 // pred_check_branch
    %900 = sbr.rel (0) target = $region17
  $region16: #{down_conv_forward.9} parent=0 // pred_region
    _
  $region17: #{down_conv_forward.9} parent=0 // pred_fallthru
    _

// kernel: down_conv_forward.11
$region0: #{down_conv_forward.11}
  #allocation0 [shape = 'u32[]', space=smem, size = 0x4, offset = 0x4, fixed_abs, tag = 'smem constant byte address 0x4 - core index']
  #allocation1 [shape = 'u32[144,128]{1,0:T(1,128)}', space=vmem, size = 0x12000, scoped, tag = 'internal scratch']
  %s0 = inlined_call_operand.vmem [shape: f32[2,256,128], index: 0, kind: input, shape index: {}]
  %s1 = inlined_call_operand.vmem [shape: f32[2,1,128], index: 1, kind: input, shape index: {}]
  %s2 = inlined_call_operand.vmem [shape: f32[2,1,128], index: 2, kind: input, shape index: {}]
  %s3 = inlined_call_operand.vmem [shape: f32[1,1,128], index: 3, kind: input, shape index: {}]
  %s4 = inlined_call_operand.vmem [shape: f32[1,1,128], index: 4, kind: input, shape index: {}]
  %s5 = inlined_call_operand.vmem [shape: bf16[2,256,128], index: 5, kind: output, shape index: {}]
  %s6 = sld [smem:[#allocation0]]
  $region53: #{down_conv_forward.11} parent=0
    _
  %s8 = ssub.s32 1, %s6
  %s9 = scalar_select 0, %s8, %s6
  loop: start=0, step=1, limit=4
  $region2: #{down_conv_forward.11} parent=0 // loop_pre_header
    _
  $region3: #{down_conv_forward.11} parent=0 // loop_header
    %s11 = sphi 0, %s15
    %p12 = scmp.ge.s32.totalorder %s11, 4
    %s18 = sphi 0, %s30
    %s19 = sphi 0, %s26
    %s20 = sphi 0, %s18
    %s21 = sphi 0, %s19
    %s22 = sphi 0, %s20
    %s23 = sphi 0, %s21
    %s35 = sphi 0, %s37
    %s38 = sphi 0, %s35
    %s39 = sphi 0, %s38
    %s55 = sphi 0, %s39
    %s61 = sphi 0, %s63
    %s64 = sphi 0, %s61
    %s65 = sphi 0, %s64
    %s81 = sphi 0, %s65
    %s87 = sphi 0, %s89
    %s90 = sphi 0, %s87
    %s91 = sphi 0, %s90
    %s107 = sphi 0, %s91
    %s111 = sphi 0, %s111
    %s113 = sphi 0, %s111
    %s114 = sphi 0, %s113
    %s128 = sphi 0, %s114
    %s132 = sphi 0, %s132
    %s134 = sphi 0, %s132
    %s135 = sphi 0, %s134
    %s149 = sphi 0, %s135
    %s157 = sphi 0, %s159
    %s160 = sphi 0, %s157
    %s161 = sphi 0, %s160
    %s177 = sphi 0, %s161
  $region4: #{down_conv_forward.11} parent=0 // loop_header_branch
    %14 = sbr.rel (%p12) target = $region8
  $region5: #{down_conv_forward.11} parent=0 // loop_body
    %s16 = ssub.s32 %s11, 1
    %s17 = ssub.s32 %s11, 2
    %s24 = sadd.s32 1, %s19
    %p25 = scmp.ge.s32.totalorder %s24, 1
    %s26 = scalar_select %p25, 0, %s24
    %s27 = sadd.s32 1, %s18
    %s28 = scalar_select %p25, %s27, %s18
    %p29 = scmp.ge.s32.totalorder %s28, 2
    %s30 = scalar_select %p29, 0, %s28
    %s31 = ssub.s32 %s18, %s30
    %s32 = ssub.s32 %s19, %s26
    %s33 = sor.u32 %s31, %s32
    %p34 = scmp.eq.s32.totalorder %s33, 0
    %s36 = sadd.s32 %s35, 1
    %s37 = scalar_select %p34, %s35, %s36
    %p40 = pneg %p34
    %p41 = scmp.eq.s32.totalorder %s11, 1
    %p42 = por %p40, %p41
    %p43 = scmp.ne.s32.totalorder %s35, %s38
    %p44 = scmp.eq.s32.totalorder %s11, 0
    %p45 = por %p43, %p44
    %p46 = scmp.ne.s32.totalorder %s35, %s38
    %p47 = scmp.eq.s32.totalorder %s16, 1
    %p48 = por %p46, %p47
    %p49 = scmp.ne.s32.totalorder %s38, %s39
    %p50 = scmp.eq.s32.totalorder %s16, 0
    %p51 = por %p49, %p50
    %p52 = scmp.ne.s32.totalorder %s38, %s39
    %p53 = scmp.eq.s32.totalorder %s17, 1
    %p54 = por %p52, %p53
    %p56 = scmp.ne.s32.totalorder %s39, %s55
    %p57 = scmp.eq.s32.totalorder %s17, 0
    %p58 = por %p56, %p57
    %s59 = ssub.s32 %s18, %s30
    %p60 = scmp.eq.s32.totalorder %s59, 0
    %s62 = sadd.s32 %s61, 1
    %s63 = scalar_select %p60, %s61, %s62
    %p66 = pneg %p60
    %p67 = scmp.eq.s32.totalorder %s11, 1
    %p68 = por %p66, %p67
    %p69 = scmp.ne.s32.totalorder %s61, %s64
    %p70 = scmp.eq.s32.totalorder %s11, 0
    %p71 = por %p69, %p70
    %p72 = scmp.ne.s32.totalorder %s61, %s64
    %p73 = scmp.eq.s32.totalorder %s16, 1
    %p74 = por %p72, %p73
    %p75 = scmp.ne.s32.totalorder %s64, %s65
    %p76 = scmp.eq.s32.totalorder %s16, 0
    %p77 = por %p75, %p76
    %p78 = scmp.ne.s32.totalorder %s64, %s65
    %p79 = scmp.eq.s32.totalorder %s17, 1
    %p80 = por %p78, %p79
    %p82 = scmp.ne.s32.totalorder %s65, %s81
    %p83 = scmp.eq.s32.totalorder %s17, 0
    %p84 = por %p82, %p83
    %s85 = ssub.s32 %s18, %s30
    %p86 = scmp.eq.s32.totalorder %s85, 0
    %s88 = sadd.s32 %s87, 1
    %s89 = scalar_select %p86, %s87, %s88
    %p92 = pneg %p86
    %p93 = scmp.eq.s32.totalorder %s11, 1
    %p94 = por %p92, %p93
    %p95 = scmp.ne.s32.totalorder %s87, %s90
    %p96 = scmp.eq.s32.totalorder %s11, 0
    %p97 = por %p95, %p96
    %p98 = scmp.ne.s32.totalorder %s87, %s90
    %p99 = scmp.eq.s32.totalorder %s16, 1
    %p100 = por %p98, %p99
    %p101 = scmp.ne.s32.totalorder %s90, %s91
    %p102 = scmp.eq.s32.totalorder %s16, 0
    %p103 = por %p101, %p102
    %p104 = scmp.ne.s32.totalorder %s90, %s91
    %p105 = scmp.eq.s32.totalorder %s17, 1
    %p106 = por %p104, %p105
    %p108 = scmp.ne.s32.totalorder %s91, %s107
    %p109 = scmp.eq.s32.totalorder %s17, 0
    %p110 = por %p108, %p109
    %s112 = sadd.s32 %s111, 1
    %p115 = scmp.eq.s32.totalorder %s11, 1
    %p116 = scmp.ne.s32.totalorder %s111, %s113
    %p117 = scmp.eq.s32.totalorder %s11, 0
    %p118 = por %p116, %p117
    %p119 = scmp.ne.s32.totalorder %s111, %s113
    %p120 = scmp.eq.s32.totalorder %s16, 1
    %p121 = por %p119, %p120
    %p122 = scmp.ne.s32.totalorder %s113, %s114
    %p123 = scmp.eq.s32.totalorder %s16, 0
    %p124 = por %p122, %p123
    %p125 = scmp.ne.s32.totalorder %s113, %s114
    %p126 = scmp.eq.s32.totalorder %s17, 1
    %p127 = por %p125, %p126
    %p129 = scmp.ne.s32.totalorder %s114, %s128
    %p130 = scmp.eq.s32.totalorder %s17, 0
    %p131 = por %p129, %p130
    %s133 = sadd.s32 %s132, 1
    %p136 = scmp.eq.s32.totalorder %s11, 1
    %p137 = scmp.ne.s32.totalorder %s132, %s134
    %p138 = scmp.eq.s32.totalorder %s11, 0
    %p139 = por %p137, %p138
    %p140 = scmp.ne.s32.totalorder %s132, %s134
    %p141 = scmp.eq.s32.totalorder %s16, 1
    %p142 = por %p140, %p141
    %p143 = scmp.ne.s32.totalorder %s134, %s135
    %p144 = scmp.eq.s32.totalorder %s16, 0
    %p145 = por %p143, %p144
    %p146 = scmp.ne.s32.totalorder %s134, %s135
    %p147 = scmp.eq.s32.totalorder %s17, 1
    %p148 = por %p146, %p147
    %p150 = scmp.ne.s32.totalorder %s135, %s149
    %p151 = scmp.eq.s32.totalorder %s17, 0
    %p152 = por %p150, %p151
    %s153 = ssub.s32 %s18, %s30
    %s154 = ssub.s32 %s19, %s26
    %s155 = sor.u32 %s153, %s154
    %p156 = scmp.eq.s32.totalorder %s155, 0
    %s158 = sadd.s32 %s157, 1
    %s159 = scalar_select %p156, %s157, %s158
    %p162 = pneg %p156
    %p163 = scmp.eq.s32.totalorder %s11, 1
    %p164 = por %p162, %p163
    %p165 = scmp.ne.s32.totalorder %s157, %s160
    %p166 = scmp.eq.s32.totalorder %s11, 0
    %p167 = por %p165, %p166
    %p168 = scmp.ne.s32.totalorder %s157, %s160
    %p169 = scmp.eq.s32.totalorder %s16, 1
    %p170 = por %p168, %p169
    %p171 = scmp.ne.s32.totalorder %s160, %s161
    %p172 = scmp.eq.s32.totalorder %s16, 0
    %p173 = por %p171, %p172
    %p174 = scmp.ne.s32.totalorder %s160, %s161
    %p175 = scmp.eq.s32.totalorder %s17, 1
    %p176 = por %p174, %p175
    %p178 = scmp.ne.s32.totalorder %s161, %s177
    %p179 = scmp.eq.s32.totalorder %s17, 0
    %p180 = por %p178, %p179
    %p181 = scmp.le.s32.totalorder 1, %s11
    %p182 = scmp.lt.s32.totalorder %s11, 3
    %p183 = pnand %p181, %p182
    %p184 = pneg %p183
    // Predicated region
    $region9: #{down_conv_forward.11} parent=5 // pred_check
      _
    $region10: #{down_conv_forward.11} parent=5 // pred_check_branch
      %186 = sbr.rel (%p183) target = $region12
    $region11: #{down_conv_forward.11} parent=5 // pred_region
      %s187 = ssub.s32 %s11, 1
      // Predicated region
      $region13: #{down_conv_forward.11} parent=11 // pred_check
        %p188 = pneg %p124
      $region14: #{down_conv_forward.11} parent=11 // pred_check_branch
        %190 = sbr.rel (%p188) target = $region16
      $region15: #{down_conv_forward.11} parent=11 // pred_region
        _
      $region16: #{down_conv_forward.11} parent=11 // pred_fallthru
        _
      // Predicated region
      $region17: #{down_conv_forward.11} parent=11 // pred_check
        %p191 = pneg %p145
      $region18: #{down_conv_forward.11} parent=11 // pred_check_branch
        %193 = sbr.rel (%p191) target = $region20
      $region19: #{down_conv_forward.11} parent=11 // pred_region
        _
      $region20: #{down_conv_forward.11} parent=11 // pred_fallthru
        _
    $region12: #{down_conv_forward.11} parent=5 // pred_fallthru
      _
    %p194 = scmp.lt.s32.totalorder %s11, 2
    // Predicated region
    $region21: #{down_conv_forward.11} parent=5 // pred_check
      %p195 = pneg %p194
    $region22: #{down_conv_forward.11} parent=5 // pred_check_branch
      %197 = sbr.rel (%p195) target = $region24
    $region23: #{down_conv_forward.11} parent=5 // pred_region
      // Predicated region
      $region25: #{down_conv_forward.11} parent=23 // pred_check
        %p198 = pneg %p45
      $region26: #{down_conv_forward.11} parent=23 // pred_check_branch
        %200 = sbr.rel (%p198) target = $region28
      $region27: #{down_conv_forward.11} parent=23 // pred_region
        %s201 = smul.u32 32, %s19
        %p202 = scmp.lt.s32.totalorder %s18, 1
        %s203 = scalar_select %p202, %s18, 1
        %p204 = scmp.lt.s32.totalorder %s201, 31
        %s205 = scalar_select %p204, %s201, 31
        %s206 = smul.addr %s203, 32
        %s207 = sadd.s32 %s205, %s206
        %s208 = smul.addr %s207, 8
        %s209 = scalar_lea.vmem %s0, %s208
        %s210 = smul.u32 32, %s19
      $region28: #{down_conv_forward.11} parent=23 // pred_fallthru
        _
      // Predicated region
      $region29: #{down_conv_forward.11} parent=23 // pred_check
        %p211 = pneg %p71
      $region30: #{down_conv_forward.11} parent=23 // pred_check_branch
        %213 = sbr.rel (%p211) target = $region32
      $region31: #{down_conv_forward.11} parent=23 // pred_region
        %p214 = scmp.lt.s32.totalorder %s18, 1
        %s215 = scalar_select %p214, %s18, 1
        %s216 = scalar_lea.vmem %s1, %s215
      $region32: #{down_conv_forward.11} parent=23 // pred_fallthru
        _
      // Predicated region
      $region33: #{down_conv_forward.11} parent=23 // pred_check
        %p217 = pneg %p97
      $region34: #{down_conv_forward.11} parent=23 // pred_check_branch
        %219 = sbr.rel (%p217) target = $region36
      $region35: #{down_conv_forward.11} parent=23 // pred_region
        %p220 = scmp.lt.s32.totalorder %s18, 1
        %s221 = scalar_select %p220, %s18, 1
        %s222 = scalar_lea.vmem %s2, %s221
      $region36: #{down_conv_forward.11} parent=23 // pred_fallthru
        _
    $region24: #{down_conv_forward.11} parent=5 // pred_fallthru
      _
    %p223 = scmp.le.s32.totalorder 1, %s11
    %p224 = scmp.lt.s32.totalorder %s11, 3
    %p225 = pnand %p223, %p224
    %p226 = pneg %p225
    // Predicated region
    $region37: #{down_conv_forward.11} parent=5 // pred_check
      _
    $region38: #{down_conv_forward.11} parent=5 // pred_check_branch
      %228 = sbr.rel (%p225) target = $region40
    $region39: #{down_conv_forward.11} parent=5 // pred_region
      %s229 = ssub.s32 %s11, 1
      %s230 = smul.u32 32, %s21
      %p231 = scmp.lt.s32.totalorder %s20, 1
      %s232 = scalar_select %p231, %s20, 1
      %p233 = scmp.lt.s32.totalorder %s230, 31
      %s234 = scalar_select %p233, %s230, 31
      %s235 = smul.addr %s232, 32
      %s236 = sadd.s32 %s234, %s235
      %s237 = smul.addr %s236, 8
      %s238 = scalar_lea.vmem %s0, %s237
      %p239 = pneg %p51
      %p240 = pneg %p48
      %p241 = scmp.lt.s32.totalorder %s20, 1
      %s242 = scalar_select %p241, %s20, 1
      %s243 = scalar_lea.vmem %s1, %s242
      %p244 = pneg %p77
      %p245 = pneg %p74
      %p246 = scmp.lt.s32.totalorder %s20, 1
      %s247 = scalar_select %p246, %s20, 1
      %s248 = scalar_lea.vmem %s2, %s247
      %p249 = pneg %p103
      %p250 = pneg %p100
      %p251 = pneg %p124
      %p252 = pneg %p121
      %p253 = pneg %p145
      %p254 = pneg %p142
      %p255 = pneg %p173
      %p256 = pneg %p170
      %s257 = smul.u32 32, %s21
      %p258 = scmp.lt.s32.totalorder %s20, 1
      %s259 = scalar_select %p258, %s20, 1
      %p260 = scmp.lt.s32.totalorder %s257, 31
      %s261 = scalar_select %p260, %s257, 31
      %s262 = smul.addr %s259, 32
      %s263 = sadd.s32 %s261, %s262
      %s264 = smul.addr %s263, 4
      %s265 = scalar_lea.vmem %s5, %s264
      %s266 = smul.u32 32, %s21
      %p267 = scmp.lt.s32.totalorder %s20, 1
      %s268 = scalar_select %p267, %s20, 1
      %p269 = scmp.lt.s32.totalorder %s266, 31
      %s270 = scalar_select %p269, %s266, 31
      %s271 = smul.addr %s268, 32
      %s272 = sadd.s32 %s270, %s271
      %s273 = smul.addr %s272, 8
      %s274 = scalar_lea.vmem %s0, %s273
      %s275 = smul.u32 32, %s21
      %p276 = scmp.lt.s32.totalorder %s20, 1
      %s277 = scalar_select %p276, %s20, 1
      %s278 = scalar_lea.vmem %s1, %s277
      %p279 = scmp.lt.s32.totalorder %s20, 1
      %s280 = scalar_select %p279, %s20, 1
      %s281 = scalar_lea.vmem %s2, %s280
      %s282 = smul.u32 32, %s21
      %p283 = scmp.lt.s32.totalorder %s20, 1
      %s284 = scalar_select %p283, %s20, 1
      %p285 = scmp.lt.s32.totalorder %s282, 31
      %s286 = scalar_select %p285, %s282, 31
      %s287 = smul.addr %s284, 32
      %s288 = sadd.s32 %s286, %s287
      %s289 = smul.addr %s288, 4
      %s290 = scalar_lea.vmem %s5, %s289
      %s291 = smul.u32 32, %s21
      %v292 = vld [vmem:[%s274] sm:$0xff]
      %v293 = vld [vmem:[%s274 + $0x8] sm:$0xff]
      %v294 = vld [vmem:[%s274 + $0x10] sm:$0xff]
      %v295 = vld [vmem:[%s274 + $0x18] sm:$0xff]
      %v296 = vld [vmem:[%s274 + $0x20] sm:$0xff]
      %v297 = vld [vmem:[%s274 + $0x28] sm:$0xff]
      %v298 = vld [vmem:[%s274 + $0x30] sm:$0xff]
      %v299 = vld [vmem:[%s274 + $0x38] sm:$0xff]
      %v300 = vld [vmem:[%s274 + $0x40] sm:$0xff]
      %v301 = vld [vmem:[%s274 + $0x48] sm:$0xff]
      %v302 = vld [vmem:[%s274 + $0x50] sm:$0xff]
      %v303 = vld [vmem:[%s274 + $0x58] sm:$0xff]
      %v304 = vld [vmem:[%s274 + $0x60] sm:$0xff]
      %v305 = vld [vmem:[%s274 + $0x68] sm:$0xff]
      %v306 = vld [vmem:[%s274 + $0x70] sm:$0xff]
      %v307 = vld [vmem:[%s274 + $0x78] sm:$0xff]
      %v308 = vld [vmem:[%s274 + $0x80] sm:$0xff]
      %v309 = vld [vmem:[%s274 + $0x88] sm:$0xff]
      %v310 = vld [vmem:[%s274 + $0x90] sm:$0xff]
      %v311 = vld [vmem:[%s274 + $0x98] sm:$0xff]
      %v312 = vld [vmem:[%s274 + $0xa0] sm:$0xff]
      %v313 = vld [vmem:[%s274 + $0xa8] sm:$0xff]
      %v314 = vld [vmem:[%s274 + $0xb0] sm:$0xff]
      %v315 = vld [vmem:[%s274 + $0xb8] sm:$0xff]
      %v316 = vld [vmem:[%s274 + $0xc0] sm:$0xff]
      %v317 = vld [vmem:[%s274 + $0xc8] sm:$0xff]
      %v318 = vld [vmem:[%s274 + $0xd0] sm:$0xff]
      %v319 = vld [vmem:[%s274 + $0xd8] sm:$0xff]
      %v320 = vld [vmem:[%s274 + $0xe0] sm:$0xff]
      %v321 = vld [vmem:[%s274 + $0xe8] sm:$0xff]
      %v322 = vld [vmem:[%s274 + $0xf0] sm:$0xff]
      %v323 = vld [vmem:[%s274 + $0xf8] sm:$0xff]
      %v324 = vld [vmem:[%s278] sm:$0x1]
      %v325 = vld [vmem:[%s281] sm:$0x1]
      %v326 = vld [vmem:[%s3] sm:$0x1]
      %v327 = vld [vmem:[%s4] sm:$0x1]
      %v329 = vlaneseq
      %v330 = vshrl.u32 %v329, 7
      %v331 = vsub.s32 0, %v330
      %v332 = vrot.slane %v324, %v331
      %v334 = vsub.f32 %v292, %v332
      %v335 = vsub.f32 %v293, %v332
      %v336 = vsub.f32 %v294, %v332
      %v337 = vsub.f32 %v295, %v332
      %v338 = vsub.f32 %v296, %v332
      %v339 = vsub.f32 %v297, %v332
      %v340 = vsub.f32 %v298, %v332
      %v341 = vsub.f32 %v299, %v332
      %v342 = vsub.f32 %v300, %v332
      %v343 = vsub.f32 %v301, %v332
      %v344 = vsub.f32 %v302, %v332
      %v345 = vsub.f32 %v303, %v332
      %v346 = vsub.f32 %v304, %v332
      %v347 = vsub.f32 %v305, %v332
      %v348 = vsub.f32 %v306, %v332
      %v349 = vsub.f32 %v307, %v332
      %v350 = vsub.f32 %v308, %v332
      %v351 = vsub.f32 %v309, %v332
      %v352 = vsub.f32 %v310, %v332
      %v353 = vsub.f32 %v311, %v332
      %v354 = vsub.f32 %v312, %v332
      %v355 = vsub.f32 %v313, %v332
      %v356 = vsub.f32 %v314, %v332
      %v357 = vsub.f32 %v315, %v332
      %v358 = vsub.f32 %v316, %v332
      %v359 = vsub.f32 %v317, %v332
      %v360 = vsub.f32 %v318, %v332
      %v361 = vsub.f32 %v319, %v332
      %v362 = vsub.f32 %v320, %v332
      %v363 = vsub.f32 %v321, %v332
      %v364 = vsub.f32 %v322, %v332
      %v365 = vsub.f32 %v323, %v332
      %v366 = vmul.f32 %v325, %v326
      %v368 = vlaneseq
      %v369 = vshrl.u32 %v368, 7
      %v370 = vsub.s32 0, %v369
      %v371 = vrot.slane %v366, %v370
      %v373 = vmul.f32 %v334, %v371
      %v374 = vmul.f32 %v335, %v371
      %v375 = vmul.f32 %v336, %v371
      %v376 = vmul.f32 %v337, %v371
      %v377 = vmul.f32 %v338, %v371
      %v378 = vmul.f32 %v339, %v371
      %v379 = vmul.f32 %v340, %v371
      %v380 = vmul.f32 %v341, %v371
      %v381 = vmul.f32 %v342, %v371
      %v382 = vmul.f32 %v343, %v371
      %v383 = vmul.f32 %v344, %v371
      %v384 = vmul.f32 %v345, %v371
      %v385 = vmul.f32 %v346, %v371
      %v386 = vmul.f32 %v347, %v371
      %v387 = vmul.f32 %v348, %v371
      %v388 = vmul.f32 %v349, %v371
      %v389 = vmul.f32 %v350, %v371
      %v390 = vmul.f32 %v351, %v371
      %v391 = vmul.f32 %v352, %v371
      %v392 = vmul.f32 %v353, %v371
      %v393 = vmul.f32 %v354, %v371
      %v394 = vmul.f32 %v355, %v371
      %v395 = vmul.f32 %v356, %v371
      %v396 = vmul.f32 %v357, %v371
      %v397 = vmul.f32 %v358, %v371
      %v398 = vmul.f32 %v359, %v371
      %v399 = vmul.f32 %v360, %v371
      %v400 = vmul.f32 %v361, %v371
      %v401 = vmul.f32 %v362, %v371
      %v402 = vmul.f32 %v363, %v371
      %v403 = vmul.f32 %v364, %v371
      %v404 = vmul.f32 %v365, %v371
      %v406 = vlaneseq
      %v407 = vshrl.u32 %v406, 7
      %v408 = vsub.s32 0, %v407
      %v409 = vrot.slane %v327, %v408
      %v411 = vadd.f32 %v373, %v409
      %v412 = vadd.f32 %v374, %v409
      %v413 = vadd.f32 %v375, %v409
      %v414 = vadd.f32 %v376, %v409
      %v415 = vadd.f32 %v377, %v409
      %v416 = vadd.f32 %v378, %v409
      %v417 = vadd.f32 %v379, %v409
      %v418 = vadd.f32 %v380, %v409
      %v419 = vadd.f32 %v381, %v409
      %v420 = vadd.f32 %v382, %v409
      %v421 = vadd.f32 %v383, %v409
      %v422 = vadd.f32 %v384, %v409
      %v423 = vadd.f32 %v385, %v409
      %v424 = vadd.f32 %v386, %v409
      %v425 = vadd.f32 %v387, %v409
      %v426 = vadd.f32 %v388, %v409
      %v427 = vadd.f32 %v389, %v409
      %v428 = vadd.f32 %v390, %v409
      %v429 = vadd.f32 %v391, %v409
      %v430 = vadd.f32 %v392, %v409
      %v431 = vadd.f32 %v393, %v409
      %v432 = vadd.f32 %v394, %v409
      %v433 = vadd.f32 %v395, %v409
      %v434 = vadd.f32 %v396, %v409
      %v435 = vadd.f32 %v397, %v409
      %v436 = vadd.f32 %v398, %v409
      %v437 = vadd.f32 %v399, %v409
      %v438 = vadd.f32 %v400, %v409
      %v439 = vadd.f32 %v401, %v409
      %v440 = vadd.f32 %v402, %v409
      %v441 = vadd.f32 %v403, %v409
      %v442 = vadd.f32 %v404, %v409
      %v443 = vmax.f32 %v411, 0.0
      %v444 = vmax.f32 %v412, 0.0
      %v445 = vmax.f32 %v413, 0.0
      %v446 = vmax.f32 %v414, 0.0
      %v447 = vmax.f32 %v415, 0.0
      %v448 = vmax.f32 %v416, 0.0
      %v449 = vmax.f32 %v417, 0.0
      %v450 = vmax.f32 %v418, 0.0
      %v451 = vmax.f32 %v419, 0.0
      %v452 = vmax.f32 %v420, 0.0
      %v453 = vmax.f32 %v421, 0.0
      %v454 = vmax.f32 %v422, 0.0
      %v455 = vmax.f32 %v423, 0.0
      %v456 = vmax.f32 %v424, 0.0
      %v457 = vmax.f32 %v425, 0.0
      %v458 = vmax.f32 %v426, 0.0
      %v459 = vmax.f32 %v427, 0.0
      %v460 = vmax.f32 %v428, 0.0
      %v461 = vmax.f32 %v429, 0.0
      %v462 = vmax.f32 %v430, 0.0
      %v463 = vmax.f32 %v431, 0.0
      %v464 = vmax.f32 %v432, 0.0
      %v465 = vmax.f32 %v433, 0.0
      %v466 = vmax.f32 %v434, 0.0
      %v467 = vmax.f32 %v435, 0.0
      %v468 = vmax.f32 %v436, 0.0
      %v469 = vmax.f32 %v437, 0.0
      %v470 = vmax.f32 %v438, 0.0
      %v471 = vmax.f32 %v439, 0.0
      %v472 = vmax.f32 %v440, 0.0
      %v473 = vmax.f32 %v441, 0.0
      %v474 = vmax.f32 %v442, 0.0
      %v475 = vpack.c.bf16 %v444, %v443
      %v476 = vpack.c.bf16 %v446, %v445
      %v477 = vpack.c.bf16 %v448, %v447
      %v478 = vpack.c.bf16 %v450, %v449
      %v479 = vpack.c.bf16 %v452, %v451
      %v480 = vpack.c.bf16 %v454, %v453
      %v481 = vpack.c.bf16 %v456, %v455
      %v482 = vpack.c.bf16 %v458, %v457
      %v483 = vpack.c.bf16 %v460, %v459
      %v484 = vpack.c.bf16 %v462, %v461
      %v485 = vpack.c.bf16 %v464, %v463
      %v486 = vpack.c.bf16 %v466, %v465
      %v487 = vpack.c.bf16 %v468, %v467
      %v488 = vpack.c.bf16 %v470, %v469
      %v489 = vpack.c.bf16 %v472, %v471
      %v490 = vpack.c.bf16 %v474, %v473
      %v507 = vunpack.c.l.b16 %v475
      %v508 = vunpack.c.h.b16 %v475
      %v509 = vunpack.c.l.b16 %v476
      %v510 = vunpack.c.h.b16 %v476
      %v511 = vunpack.c.l.b16 %v477
      %v512 = vunpack.c.h.b16 %v477
      %v513 = vunpack.c.l.b16 %v478
      %v514 = vunpack.c.h.b16 %v478
      %v515 = vunpack.c.l.b16 %v479
      %v516 = vunpack.c.h.b16 %v479
      %v517 = vunpack.c.l.b16 %v480
      %v518 = vunpack.c.h.b16 %v480
      %v519 = vunpack.c.l.b16 %v481
      %v520 = vunpack.c.h.b16 %v481
      %v521 = vunpack.c.l.b16 %v482
      %v522 = vunpack.c.h.b16 %v482
      %v523 = vunpack.c.l.b16 %v483
      %v524 = vunpack.c.h.b16 %v483
      %v525 = vunpack.c.l.b16 %v484
      %v526 = vunpack.c.h.b16 %v484
      %v527 = vunpack.c.l.b16 %v485
      %v528 = vunpack.c.h.b16 %v485
      %v529 = vunpack.c.l.b16 %v486
      %v530 = vunpack.c.h.b16 %v486
      %v531 = vunpack.c.l.b16 %v487
      %v532 = vunpack.c.h.b16 %v487
      %v533 = vunpack.c.l.b16 %v488
      %v534 = vunpack.c.h.b16 %v488
      %v535 = vunpack.c.l.b16 %v489
      %v536 = vunpack.c.h.b16 %v489
      %v537 = vunpack.c.l.b16 %v490
      %v538 = vunpack.c.h.b16 %v490
      %v539 = vpack.c.b16 %v507, %v507
      %v540 = vpack.c.b16 %v508, %v508
      %v541 = vpack.c.b16 %v509, %v509
      %v542 = vpack.c.b16 %v510, %v510
      %v543 = vpack.c.b16 %v511, %v511
      %v544 = vpack.c.b16 %v512, %v512
      %v545 = vpack.c.b16 %v513, %v513
      %v546 = vpack.c.b16 %v514, %v514
      %v547 = vpack.c.b16 %v515, %v515
      %v548 = vpack.c.b16 %v516, %v516
      %v549 = vpack.c.b16 %v517, %v517
      %v550 = vpack.c.b16 %v518, %v518
      %v551 = vpack.c.b16 %v519, %v519
      %v552 = vpack.c.b16 %v520, %v520
      %v553 = vpack.c.b16 %v521, %v521
      %v554 = vpack.c.b16 %v522, %v522
      %v555 = vpack.c.b16 %v523, %v523
      %v556 = vpack.c.b16 %v524, %v524
      %v557 = vpack.c.b16 %v525, %v525
      %v558 = vpack.c.b16 %v526, %v526
      %v559 = vpack.c.b16 %v527, %v527
      %v560 = vpack.c.b16 %v528, %v528
      %v561 = vpack.c.b16 %v529, %v529
      %v562 = vpack.c.b16 %v530, %v530
      %v563 = vpack.c.b16 %v531, %v531
      %v564 = vpack.c.b16 %v532, %v532
      %v565 = vpack.c.b16 %v533, %v533
      %v566 = vpack.c.b16 %v534, %v534
      %v567 = vpack.c.b16 %v535, %v535
      %v568 = vpack.c.b16 %v536, %v536
      %v569 = vpack.c.b16 %v537, %v537
      %v570 = vpack.c.b16 %v538, %v538
      %603 = vst [vmem:[%s290] sm:$0xf] %v539
      %604 = vst [vmem:[%s290 + $0x4] sm:$0xf] %v540
      %605 = vst [vmem:[%s290 + $0x8] sm:$0xf] %v541
      %606 = vst [vmem:[%s290 + $0xc] sm:$0xf] %v542
      %607 = vst [vmem:[%s290 + $0x10] sm:$0xf] %v543
      %608 = vst [vmem:[%s290 + $0x14] sm:$0xf] %v544
      %609 = vst [vmem:[%s290 + $0x18] sm:$0xf] %v545
      %610 = vst [vmem:[%s290 + $0x1c] sm:$0xf] %v546
      %611 = vst [vmem:[%s290 + $0x20] sm:$0xf] %v547
      %612 = vst [vmem:[%s290 + $0x24] sm:$0xf] %v548
      %613 = vst [vmem:[%s290 + $0x28] sm:$0xf] %v549
      %614 = vst [vmem:[%s290 + $0x2c] sm:$0xf] %v550
      %615 = vst [vmem:[%s290 + $0x30] sm:$0xf] %v551
      %616 = vst [vmem:[%s290 + $0x34] sm:$0xf] %v552
      %617 = vst [vmem:[%s290 + $0x38] sm:$0xf] %v553
      %618 = vst [vmem:[%s290 + $0x3c] sm:$0xf] %v554
      %619 = vst [vmem:[%s290 + $0x40] sm:$0xf] %v555
      %620 = vst [vmem:[%s290 + $0x44] sm:$0xf] %v556
      %621 = vst [vmem:[%s290 + $0x48] sm:$0xf] %v557
      %622 = vst [vmem:[%s290 + $0x4c] sm:$0xf] %v558
      %623 = vst [vmem:[%s290 + $0x50] sm:$0xf] %v559
      %624 = vst [vmem:[%s290 + $0x54] sm:$0xf] %v560
      %625 = vst [vmem:[%s290 + $0x58] sm:$0xf] %v561
      %626 = vst [vmem:[%s290 + $0x5c] sm:$0xf] %v562
      %627 = vst [vmem:[%s290 + $0x60] sm:$0xf] %v563
      %628 = vst [vmem:[%s290 + $0x64] sm:$0xf] %v564
      %629 = vst [vmem:[%s290 + $0x68] sm:$0xf] %v565
      %630 = vst [vmem:[%s290 + $0x6c] sm:$0xf] %v566
      %631 = vst [vmem:[%s290 + $0x70] sm:$0xf] %v567
      %632 = vst [vmem:[%s290 + $0x74] sm:$0xf] %v568
      %633 = vst [vmem:[%s290 + $0x78] sm:$0xf] %v569
      %634 = vst [vmem:[%s290 + $0x7c] sm:$0xf] %v570
      %s635 = smul.u32 32, %s21
      %p636 = scmp.lt.s32.totalorder %s20, 1
      %s637 = scalar_select %p636, %s20, 1
      %p638 = scmp.lt.s32.totalorder %s635, 31
      %s639 = scalar_select %p638, %s635, 31
      %s640 = smul.addr %s637, 32
      %s641 = sadd.s32 %s639, %s640
      %s642 = smul.addr %s641, 4
      %s643 = scalar_lea.vmem %s5, %s642
      // Predicated region
      $region41: #{down_conv_forward.11} parent=39 // pred_check
        %p644 = pneg %p170
      $region42: #{down_conv_forward.11} parent=39 // pred_check_branch
        %646 = sbr.rel (%p644) target = $region44
      $region43: #{down_conv_forward.11} parent=39 // pred_region
        %s647 = smul.u32 32, %s21
      $region44: #{down_conv_forward.11} parent=39 // pred_fallthru
        _
    $region40: #{down_conv_forward.11} parent=5 // pred_fallthru
      _
    %p648 = scmp.le.s32.totalorder 2, %s11
    // Predicated region
    $region45: #{down_conv_forward.11} parent=5 // pred_check
      %p649 = pneg %p648
    $region46: #{down_conv_forward.11} parent=5 // pred_check_branch
      %651 = sbr.rel (%p649) target = $region48
    $region47: #{down_conv_forward.11} parent=5 // pred_region
      %s652 = ssub.s32 %s11, 2
      // Predicated region
      $region49: #{down_conv_forward.11} parent=47 // pred_check
        %p653 = pneg %p176
      $region50: #{down_conv_forward.11} parent=47 // pred_check_branch
        %655 = sbr.rel (%p653) target = $region52
      $region51: #{down_conv_forward.11} parent=47 // pred_region
        %s656 = smul.u32 32, %s23
        %p657 = scmp.lt.s32.totalorder %s22, 1
        %s658 = scalar_select %p657, %s22, 1
        %p659 = scmp.lt.s32.totalorder %s656, 31
        %s660 = scalar_select %p659, %s656, 31
        %s661 = smul.addr %s658, 32
        %s662 = sadd.s32 %s660, %s661
        %s663 = smul.addr %s662, 4
        %s664 = scalar_lea.vmem %s5, %s663
      $region52: #{down_conv_forward.11} parent=47 // pred_fallthru
        _
    $region48: #{down_conv_forward.11} parent=5 // pred_fallthru
      _
  $region6: #{down_conv_forward.11} parent=0 // loop_footer
    %s15 = sadd.s32 1, %s11
  $region7: #{down_conv_forward.11} parent=0 // loop_footer_branch
    %10 = sbr.rel target = $region3
  $region8: #{down_conv_forward.11} parent=0 // loop_exit
    _

// kernel: down_conv_forward.13
$region0: #{down_conv_forward.13}
  #allocation0 [shape = 'u32[]', space=smem, size = 0x4, offset = 0x4, fixed_abs, tag = 'smem constant byte address 0x4 - core index']
  #allocation1 [shape = 'u32[144,128]{1,0:T(1,128)}', space=vmem, size = 0x12000, scoped, tag = 'internal scratch']
  %s0 = inlined_call_operand.vmem [shape: f32[2,64,128], index: 0, kind: input, shape index: {}]
  %s1 = inlined_call_operand.vmem [shape: f32[2,1,128], index: 1, kind: output, shape index: {0}]
  %s2 = inlined_call_operand.vmem [shape: f32[2,1,128], index: 2, kind: output, shape index: {1}]
  %3 = xla_tuple %s1, %s2
  %s4 = sld [smem:[#allocation0]]
  $region53: #{down_conv_forward.13} parent=0
    _
  %s6 = ssub.s32 1, %s4
  %s7 = scalar_select 0, %s6, %s4
  loop: start=0, step=1, limit=4
  $region2: #{down_conv_forward.13} parent=0 // loop_pre_header
    _
  $region3: #{down_conv_forward.13} parent=0 // loop_header
    %s9 = sphi 0, %s13
    %p10 = scmp.ge.s32.totalorder %s9, 4
    %s16 = sphi 0, %s28
    %s17 = sphi 0, %s24
    %s18 = sphi 0, %s16
    %s19 = sphi 0, %s17
    %s20 = sphi 0, %s18
    %s21 = sphi 0, %s19
    %s33 = sphi 0, %s35
    %s36 = sphi 0, %s33
    %s37 = sphi 0, %s36
    %s53 = sphi 0, %s37
    %s59 = sphi 0, %s61
    %s62 = sphi 0, %s59
    %s63 = sphi 0, %s62
    %s79 = sphi 0, %s63
    %s85 = sphi 0, %s87
    %s88 = sphi 0, %s85
    %s89 = sphi 0, %s88
    %s105 = sphi 0, %s89
  $region4: #{down_conv_forward.13} parent=0 // loop_header_branch
    %12 = sbr.rel (%p10) target = $region8
  $region5: #{down_conv_forward.13} parent=0 // loop_body
    %s14 = ssub.s32 %s9, 1
    %s15 = ssub.s32 %s9, 2
    %s22 = sadd.s32 1, %s17
    %p23 = scmp.ge.s32.totalorder %s22, 1
    %s24 = scalar_select %p23, 0, %s22
    %s25 = sadd.s32 1, %s16
    %s26 = scalar_select %p23, %s25, %s16
    %p27 = scmp.ge.s32.totalorder %s26, 2
    %s28 = scalar_select %p27, 0, %s26
    %s29 = ssub.s32 %s16, %s28
    %s30 = ssub.s32 %s17, %s24
    %s31 = sor.u32 %s29, %s30
    %p32 = scmp.eq.s32.totalorder %s31, 0
    %s34 = sadd.s32 %s33, 1
    %s35 = scalar_select %p32, %s33, %s34
    %p38 = pneg %p32
    %p39 = scmp.eq.s32.totalorder %s9, 1
    %p40 = por %p38, %p39
    %p41 = scmp.ne.s32.totalorder %s33, %s36
    %p42 = scmp.eq.s32.totalorder %s9, 0
    %p43 = por %p41, %p42
    %p44 = scmp.ne.s32.totalorder %s33, %s36
    %p45 = scmp.eq.s32.totalorder %s14, 1
    %p46 = por %p44, %p45
    %p47 = scmp.ne.s32.totalorder %s36, %s37
    %p48 = scmp.eq.s32.totalorder %s14, 0
    %p49 = por %p47, %p48
    %p50 = scmp.ne.s32.totalorder %s36, %s37
    %p51 = scmp.eq.s32.totalorder %s15, 1
    %p52 = por %p50, %p51
    %p54 = scmp.ne.s32.totalorder %s37, %s53
    %p55 = scmp.eq.s32.totalorder %s15, 0
    %p56 = por %p54, %p55
    %s57 = ssub.s32 %s16, %s28
    %p58 = scmp.eq.s32.totalorder %s57, 0
    %s60 = sadd.s32 %s59, 1
    %s61 = scalar_select %p58, %s59, %s60
    %p64 = pneg %p58
    %p65 = scmp.eq.s32.totalorder %s9, 1
    %p66 = por %p64, %p65
    %p67 = scmp.ne.s32.totalorder %s59, %s62
    %p68 = scmp.eq.s32.totalorder %s9, 0
    %p69 = por %p67, %p68
    %p70 = scmp.ne.s32.totalorder %s59, %s62
    %p71 = scmp.eq.s32.totalorder %s14, 1
    %p72 = por %p70, %p71
    %p73 = scmp.ne.s32.totalorder %s62, %s63
    %p74 = scmp.eq.s32.totalorder %s14, 0
    %p75 = por %p73, %p74
    %p76 = scmp.ne.s32.totalorder %s62, %s63
    %p77 = scmp.eq.s32.totalorder %s15, 1
    %p78 = por %p76, %p77
    %p80 = scmp.ne.s32.totalorder %s63, %s79
    %p81 = scmp.eq.s32.totalorder %s15, 0
    %p82 = por %p80, %p81
    %s83 = ssub.s32 %s16, %s28
    %p84 = scmp.eq.s32.totalorder %s83, 0
    %s86 = sadd.s32 %s85, 1
    %s87 = scalar_select %p84, %s85, %s86
    %p90 = pneg %p84
    %p91 = scmp.eq.s32.totalorder %s9, 1
    %p92 = por %p90, %p91
    %p93 = scmp.ne.s32.totalorder %s85, %s88
    %p94 = scmp.eq.s32.totalorder %s9, 0
    %p95 = por %p93, %p94
    %p96 = scmp.ne.s32.totalorder %s85, %s88
    %p97 = scmp.eq.s32.totalorder %s14, 1
    %p98 = por %p96, %p97
    %p99 = scmp.ne.s32.totalorder %s88, %s89
    %p100 = scmp.eq.s32.totalorder %s14, 0
    %p101 = por %p99, %p100
    %p102 = scmp.ne.s32.totalorder %s88, %s89
    %p103 = scmp.eq.s32.totalorder %s15, 1
    %p104 = por %p102, %p103
    %p106 = scmp.ne.s32.totalorder %s89, %s105
    %p107 = scmp.eq.s32.totalorder %s15, 0
    %p108 = por %p106, %p107
    %p109 = scmp.le.s32.totalorder 1, %s9
    %p110 = scmp.lt.s32.totalorder %s9, 3
    %p111 = pnand %p109, %p110
    %p112 = pneg %p111
    // Predicated region
    $region9: #{down_conv_forward.13} parent=5 // pred_check
      _
    $region10: #{down_conv_forward.13} parent=5 // pred_check_branch
      %114 = sbr.rel (%p111) target = $region12
    $region11: #{down_conv_forward.13} parent=5 // pred_region
      %s115 = ssub.s32 %s9, 1
    $region12: #{down_conv_forward.13} parent=5 // pred_fallthru
      _
    %p116 = scmp.lt.s32.totalorder %s9, 2
    // Predicated region
    $region13: #{down_conv_forward.13} parent=5 // pred_check
      %p117 = pneg %p116
    $region14: #{down_conv_forward.13} parent=5 // pred_check_branch
      %119 = sbr.rel (%p117) target = $region16
    $region15: #{down_conv_forward.13} parent=5 // pred_region
      // Predicated region
      $region17: #{down_conv_forward.13} parent=15 // pred_check
        %p120 = pneg %p43
      $region18: #{down_conv_forward.13} parent=15 // pred_check_branch
        %122 = sbr.rel (%p120) target = $region20
      $region19: #{down_conv_forward.13} parent=15 // pred_region
        %s123 = smul.u32 8, %s17
        %p124 = scmp.lt.s32.totalorder %s16, 1
        %s125 = scalar_select %p124, %s16, 1
        %p126 = scmp.lt.s32.totalorder %s123, 7
        %s127 = scalar_select %p126, %s123, 7
        %s128 = smul.addr %s125, 8
        %s129 = sadd.s32 %s127, %s128
        %s130 = smul.addr %s129, 8
        %s131 = scalar_lea.vmem %s0, %s130
        %s132 = smul.u32 8, %s17
      $region20: #{down_conv_forward.13} parent=15 // pred_fallthru
        _
    $region16: #{down_conv_forward.13} parent=5 // pred_fallthru
      _
    %p133 = scmp.le.s32.totalorder 1, %s9
    %p134 = scmp.lt.s32.totalorder %s9, 3
    %p135 = pnand %p133, %p134
    %p136 = pneg %p135
    // Predicated region
    $region21: #{down_conv_forward.13} parent=5 // pred_check
      _
    $region22: #{down_conv_forward.13} parent=5 // pred_check_branch
      %138 = sbr.rel (%p135) target = $region24
    $region23: #{down_conv_forward.13} parent=5 // pred_region
      %s139 = ssub.s32 %s9, 1
      %s140 = smul.u32 8, %s19
      %p141 = scmp.lt.s32.totalorder %s18, 1
      %s142 = scalar_select %p141, %s18, 1
      %p143 = scmp.lt.s32.totalorder %s140, 7
      %s144 = scalar_select %p143, %s140, 7
      %s145 = smul.addr %s142, 8
      %s146 = sadd.s32 %s144, %s145
      %s147 = smul.addr %s146, 8
      %s148 = scalar_lea.vmem %s0, %s147
      %p149 = pneg %p49
      %p150 = pneg %p46
      %p151 = pneg %p75
      %p152 = pneg %p72
      %p153 = scmp.lt.s32.totalorder %s18, 1
      %s154 = scalar_select %p153, %s18, 1
      %s155 = scalar_lea.vmem %s1, %s154
      %p156 = pneg %p101
      %p157 = pneg %p98
      %p158 = scmp.lt.s32.totalorder %s18, 1
      %s159 = scalar_select %p158, %s18, 1
      %s160 = scalar_lea.vmem %s2, %s159
      %s161 = smul.u32 8, %s19
      %p162 = scmp.lt.s32.totalorder %s18, 1
      %s163 = scalar_select %p162, %s18, 1
      %p164 = scmp.lt.s32.totalorder %s161, 7
      %s165 = scalar_select %p164, %s161, 7
      %s166 = smul.addr %s163, 8
      %s167 = sadd.s32 %s165, %s166
      %s168 = smul.addr %s167, 8
      %s169 = scalar_lea.vmem %s0, %s168
      %s170 = smul.u32 8, %s19
      %p171 = scmp.lt.s32.totalorder %s18, 1
      %s172 = scalar_select %p171, %s18, 1
      %s173 = scalar_lea.vmem %s1, %s172
      %p174 = scmp.lt.s32.totalorder %s18, 1
      %s175 = scalar_select %p174, %s18, 1
      %s176 = scalar_lea.vmem %s2, %s175
      %p177 = scmp.eq.s32.totalorder %s19, 0
      // Predicated region
      $region25: #{down_conv_forward.13} parent=23 // pred_check
        %p178 = pneg %p177
      $region26: #{down_conv_forward.13} parent=23 // pred_check_branch
        %180 = sbr.rel (%p178) target = $region28
      $region27: #{down_conv_forward.13} parent=23 // pred_region
        %181 = vst [vmem:[%s173] sm:$0x1] 0.0
        %182 = vst [vmem:[%s176] sm:$0x1] 0.0
      $region28: #{down_conv_forward.13} parent=23 // pred_fallthru
        _
      %v183 = vld [vmem:[%s169] sm:$0xff]
      %v184 = vld [vmem:[%s169 + $0x8] sm:$0xff]
      %v185 = vld [vmem:[%s169 + $0x10] sm:$0xff]
      %v186 = vld [vmem:[%s169 + $0x18] sm:$0xff]
      %v187 = vld [vmem:[%s169 + $0x20] sm:$0xff]
      %v188 = vld [vmem:[%s169 + $0x28] sm:$0xff]
      %v189 = vld [vmem:[%s169 + $0x30] sm:$0xff]
      %v190 = vld [vmem:[%s169 + $0x38] sm:$0xff]
      %v191 = vld [vmem:[%s173] sm:$0x1]
      %v192 = vadd.f32 %v183, %v184
      %v193 = vadd.f32 %v192, %v185
      %v194 = vadd.f32 %v193, %v186
      %v195 = vadd.f32 %v194, %v187
      %v196 = vadd.f32 %v195, %v188
      %v197 = vadd.f32 %v196, %v189
      %v198 = vadd.f32 %v197, %v190
      %v199 = vrot.slane %v198, 4
      %v200 = vadd.f32 %v198, %v199
      %v201 = vrot.slane %v200, 2
      %v202 = vadd.f32 %v200, %v201
      %v203 = vrot.slane %v202, 1
      %v204 = vadd.f32 %v202, %v203
      %v205 = vadd.f32 %v191, %v204
      %206 = vst [vmem:[%s173] sm:$0x1] %v205
      %v207 = vld [vmem:[%s176] sm:$0x1]
      %v208 = vmul.f32 %v183, %v183
      %v209 = vmul.f32 %v184, %v184
      %v210 = vmul.f32 %v185, %v185
      %v211 = vmul.f32 %v186, %v186
      %v212 = vmul.f32 %v187, %v187
      %v213 = vmul.f32 %v188, %v188
      %v214 = vmul.f32 %v189, %v189
      %v215 = vmul.f32 %v190, %v190
      %v216 = vadd.f32 %v208, %v209
      %v217 = vadd.f32 %v216, %v210
      %v218 = vadd.f32 %v217, %v211
      %v219 = vadd.f32 %v218, %v212
      %v220 = vadd.f32 %v219, %v213
      %v221 = vadd.f32 %v220, %v214
      %v222 = vadd.f32 %v221, %v215
      %v223 = vrot.slane %v222, 4
      %v224 = vadd.f32 %v222, %v223
      %v225 = vrot.slane %v224, 2
      %v226 = vadd.f32 %v224, %v225
      %v227 = vrot.slane %v226, 1
      %v228 = vadd.f32 %v226, %v227
      %v229 = vadd.f32 %v207, %v228
      %230 = vst [vmem:[%s176] sm:$0x1] %v229
      // Predicated region
      $region29: #{down_conv_forward.13} parent=23 // pred_check
        %p231 = pneg %p177
      $region30: #{down_conv_forward.13} parent=23 // pred_check_branch
        %233 = sbr.rel (%p231) target = $region32
      $region31: #{down_conv_forward.13} parent=23 // pred_region
        %v234 = vld [vmem:[%s173] sm:$0x1]
        %v235 = vld [vmem:[%s176] sm:$0x1]
        %v236 = vmul.f32 %v234, 0.015625
        %v237 = vmul.f32 %v235, 0.015625
        %v238 = vmul.f32 %v236, %v236
        %v239 = vsub.f32 %v237, %v238
        %v240 = vmax.f32 %v239, 0.0
        %241 = vst [vmem:[%s173] sm:$0x1] %v236
        %v242 = vadd.f32 %v240, 1e-05
        %v243 = vrsqrt.pop %v242
        %244 = vst [vmem:[%s176] sm:$0x1] %v243
      $region32: #{down_conv_forward.13} parent=23 // pred_fallthru
        _
      %p245 = scmp.lt.s32.totalorder %s18, 1
      %s246 = scalar_select %p245, %s18, 1
      %s247 = scalar_lea.vmem %s1, %s246
      %p248 = scmp.lt.s32.totalorder %s18, 1
      %s249 = scalar_select %p248, %s18, 1
      %s250 = scalar_lea.vmem %s2, %s249
      // Predicated region
      $region33: #{down_conv_forward.13} parent=23 // pred_check
        %p251 = pneg %p72
      $region34: #{down_conv_forward.13} parent=23 // pred_check_branch
        %253 = sbr.rel (%p251) target = $region36
      $region35: #{down_conv_forward.13} parent=23 // pred_region
        _
      $region36: #{down_conv_forward.13} parent=23 // pred_fallthru
        _
      // Predicated region
      $region37: #{down_conv_forward.13} parent=23 // pred_check
        %p254 = pneg %p98
      $region38: #{down_conv_forward.13} parent=23 // pred_check_branch
        %256 = sbr.rel (%p254) target = $region40
      $region39: #{down_conv_forward.13} parent=23 // pred_region
        _
      $region40: #{down_conv_forward.13} parent=23 // pred_fallthru
        _
    $region24: #{down_conv_forward.13} parent=5 // pred_fallthru
      _
    %p257 = scmp.le.s32.totalorder 2, %s9
    // Predicated region
    $region41: #{down_conv_forward.13} parent=5 // pred_check
      %p258 = pneg %p257
    $region42: #{down_conv_forward.13} parent=5 // pred_check_branch
      %260 = sbr.rel (%p258) target = $region44
    $region43: #{down_conv_forward.13} parent=5 // pred_region
      %s261 = ssub.s32 %s9, 2
      // Predicated region
      $region45: #{down_conv_forward.13} parent=43 // pred_check
        %p262 = pneg %p78
      $region46: #{down_conv_forward.13} parent=43 // pred_check_branch
        %264 = sbr.rel (%p262) target = $region48
      $region47: #{down_conv_forward.13} parent=43 // pred_region
        %p265 = scmp.lt.s32.totalorder %s20, 1
        %s266 = scalar_select %p265, %s20, 1
        %s267 = scalar_lea.vmem %s1, %s266
      $region48: #{down_conv_forward.13} parent=43 // pred_fallthru
        _
      // Predicated region
      $region49: #{down_conv_forward.13} parent=43 // pred_check
        %p268 = pneg %p104
      $region50: #{down_conv_forward.13} parent=43 // pred_check_branch
        %270 = sbr.rel (%p268) target = $region52
      $region51: #{down_conv_forward.13} parent=43 // pred_region
        %p271 = scmp.lt.s32.totalorder %s20, 1
        %s272 = scalar_select %p271, %s20, 1
        %s273 = scalar_lea.vmem %s2, %s272
      $region52: #{down_conv_forward.13} parent=43 // pred_fallthru
        _
    $region44: #{down_conv_forward.13} parent=5 // pred_fallthru
      _
  $region6: #{down_conv_forward.13} parent=0 // loop_footer
    %s13 = sadd.s32 1, %s9
  $region7: #{down_conv_forward.13} parent=0 // loop_footer_branch
    %8 = sbr.rel target = $region3
  $region8: #{down_conv_forward.13} parent=0 // loop_exit
    _

// kernel: down_conv_forward.14
$region0: #{down_conv_forward.14}
  #allocation0 [shape = 'u32[]', space=smem, size = 0x4, offset = 0x4, fixed_abs, tag = 'smem constant byte address 0x4 - core index']
  #allocation1 [shape = 'u32[144,128]{1,0:T(1,128)}', space=vmem, size = 0x12000, scoped, tag = 'internal scratch']
  %s0 = inlined_call_operand.vmem [shape: f32[2,64,128], index: 0, kind: input, shape index: {}]
  %s1 = inlined_call_operand.vmem [shape: f32[2,1,128], index: 1, kind: input, shape index: {}]
  %s2 = inlined_call_operand.vmem [shape: f32[2,1,128], index: 2, kind: input, shape index: {}]
  %s3 = inlined_call_operand.vmem [shape: f32[1,1,128], index: 3, kind: input, shape index: {}]
  %s4 = inlined_call_operand.vmem [shape: f32[1,1,128], index: 4, kind: input, shape index: {}]
  %s5 = inlined_call_operand.vmem [shape: bf16[2,64,128], index: 5, kind: output, shape index: {}]
  %s6 = sld [smem:[#allocation0]]
  $region53: #{down_conv_forward.14} parent=0
    _
  %s8 = ssub.s32 1, %s6
  %s9 = scalar_select 0, %s8, %s6
  loop: start=0, step=1, limit=4
  $region2: #{down_conv_forward.14} parent=0 // loop_pre_header
    _
  $region3: #{down_conv_forward.14} parent=0 // loop_header
    %s11 = sphi 0, %s15
    %p12 = scmp.ge.s32.totalorder %s11, 4
    %s18 = sphi 0, %s30
    %s19 = sphi 0, %s26
    %s20 = sphi 0, %s18
    %s21 = sphi 0, %s19
    %s22 = sphi 0, %s20
    %s23 = sphi 0, %s21
    %s35 = sphi 0, %s37
    %s38 = sphi 0, %s35
    %s39 = sphi 0, %s38
    %s55 = sphi 0, %s39
    %s61 = sphi 0, %s63
    %s64 = sphi 0, %s61
    %s65 = sphi 0, %s64
    %s81 = sphi 0, %s65
    %s87 = sphi 0, %s89
    %s90 = sphi 0, %s87
    %s91 = sphi 0, %s90
    %s107 = sphi 0, %s91
    %s111 = sphi 0, %s111
    %s113 = sphi 0, %s111
    %s114 = sphi 0, %s113
    %s128 = sphi 0, %s114
    %s132 = sphi 0, %s132
    %s134 = sphi 0, %s132
    %s135 = sphi 0, %s134
    %s149 = sphi 0, %s135
    %s157 = sphi 0, %s159
    %s160 = sphi 0, %s157
    %s161 = sphi 0, %s160
    %s177 = sphi 0, %s161
  $region4: #{down_conv_forward.14} parent=0 // loop_header_branch
    %14 = sbr.rel (%p12) target = $region8
  $region5: #{down_conv_forward.14} parent=0 // loop_body
    %s16 = ssub.s32 %s11, 1
    %s17 = ssub.s32 %s11, 2
    %s24 = sadd.s32 1, %s19
    %p25 = scmp.ge.s32.totalorder %s24, 1
    %s26 = scalar_select %p25, 0, %s24
    %s27 = sadd.s32 1, %s18
    %s28 = scalar_select %p25, %s27, %s18
    %p29 = scmp.ge.s32.totalorder %s28, 2
    %s30 = scalar_select %p29, 0, %s28
    %s31 = ssub.s32 %s18, %s30
    %s32 = ssub.s32 %s19, %s26
    %s33 = sor.u32 %s31, %s32
    %p34 = scmp.eq.s32.totalorder %s33, 0
    %s36 = sadd.s32 %s35, 1
    %s37 = scalar_select %p34, %s35, %s36
    %p40 = pneg %p34
    %p41 = scmp.eq.s32.totalorder %s11, 1
    %p42 = por %p40, %p41
    %p43 = scmp.ne.s32.totalorder %s35, %s38
    %p44 = scmp.eq.s32.totalorder %s11, 0
    %p45 = por %p43, %p44
    %p46 = scmp.ne.s32.totalorder %s35, %s38
    %p47 = scmp.eq.s32.totalorder %s16, 1
    %p48 = por %p46, %p47
    %p49 = scmp.ne.s32.totalorder %s38, %s39
    %p50 = scmp.eq.s32.totalorder %s16, 0
    %p51 = por %p49, %p50
    %p52 = scmp.ne.s32.totalorder %s38, %s39
    %p53 = scmp.eq.s32.totalorder %s17, 1
    %p54 = por %p52, %p53
    %p56 = scmp.ne.s32.totalorder %s39, %s55
    %p57 = scmp.eq.s32.totalorder %s17, 0
    %p58 = por %p56, %p57
    %s59 = ssub.s32 %s18, %s30
    %p60 = scmp.eq.s32.totalorder %s59, 0
    %s62 = sadd.s32 %s61, 1
    %s63 = scalar_select %p60, %s61, %s62
    %p66 = pneg %p60
    %p67 = scmp.eq.s32.totalorder %s11, 1
    %p68 = por %p66, %p67
    %p69 = scmp.ne.s32.totalorder %s61, %s64
    %p70 = scmp.eq.s32.totalorder %s11, 0
    %p71 = por %p69, %p70
    %p72 = scmp.ne.s32.totalorder %s61, %s64
    %p73 = scmp.eq.s32.totalorder %s16, 1
    %p74 = por %p72, %p73
    %p75 = scmp.ne.s32.totalorder %s64, %s65
    %p76 = scmp.eq.s32.totalorder %s16, 0
    %p77 = por %p75, %p76
    %p78 = scmp.ne.s32.totalorder %s64, %s65
    %p79 = scmp.eq.s32.totalorder %s17, 1
    %p80 = por %p78, %p79
    %p82 = scmp.ne.s32.totalorder %s65, %s81
    %p83 = scmp.eq.s32.totalorder %s17, 0
    %p84 = por %p82, %p83
    %s85 = ssub.s32 %s18, %s30
    %p86 = scmp.eq.s32.totalorder %s85, 0
    %s88 = sadd.s32 %s87, 1
    %s89 = scalar_select %p86, %s87, %s88
    %p92 = pneg %p86
    %p93 = scmp.eq.s32.totalorder %s11, 1
    %p94 = por %p92, %p93
    %p95 = scmp.ne.s32.totalorder %s87, %s90
    %p96 = scmp.eq.s32.totalorder %s11, 0
    %p97 = por %p95, %p96
    %p98 = scmp.ne.s32.totalorder %s87, %s90
    %p99 = scmp.eq.s32.totalorder %s16, 1
    %p100 = por %p98, %p99
    %p101 = scmp.ne.s32.totalorder %s90, %s91
    %p102 = scmp.eq.s32.totalorder %s16, 0
    %p103 = por %p101, %p102
    %p104 = scmp.ne.s32.totalorder %s90, %s91
    %p105 = scmp.eq.s32.totalorder %s17, 1
    %p106 = por %p104, %p105
    %p108 = scmp.ne.s32.totalorder %s91, %s107
    %p109 = scmp.eq.s32.totalorder %s17, 0
    %p110 = por %p108, %p109
    %s112 = sadd.s32 %s111, 1
    %p115 = scmp.eq.s32.totalorder %s11, 1
    %p116 = scmp.ne.s32.totalorder %s111, %s113
    %p117 = scmp.eq.s32.totalorder %s11, 0
    %p118 = por %p116, %p117
    %p119 = scmp.ne.s32.totalorder %s111, %s113
    %p120 = scmp.eq.s32.totalorder %s16, 1
    %p121 = por %p119, %p120
    %p122 = scmp.ne.s32.totalorder %s113, %s114
    %p123 = scmp.eq.s32.totalorder %s16, 0
    %p124 = por %p122, %p123
    %p125 = scmp.ne.s32.totalorder %s113, %s114
    %p126 = scmp.eq.s32.totalorder %s17, 1
    %p127 = por %p125, %p126
    %p129 = scmp.ne.s32.totalorder %s114, %s128
    %p130 = scmp.eq.s32.totalorder %s17, 0
    %p131 = por %p129, %p130
    %s133 = sadd.s32 %s132, 1
    %p136 = scmp.eq.s32.totalorder %s11, 1
    %p137 = scmp.ne.s32.totalorder %s132, %s134
    %p138 = scmp.eq.s32.totalorder %s11, 0
    %p139 = por %p137, %p138
    %p140 = scmp.ne.s32.totalorder %s132, %s134
    %p141 = scmp.eq.s32.totalorder %s16, 1
    %p142 = por %p140, %p141
    %p143 = scmp.ne.s32.totalorder %s134, %s135
    %p144 = scmp.eq.s32.totalorder %s16, 0
    %p145 = por %p143, %p144
    %p146 = scmp.ne.s32.totalorder %s134, %s135
    %p147 = scmp.eq.s32.totalorder %s17, 1
    %p148 = por %p146, %p147
    %p150 = scmp.ne.s32.totalorder %s135, %s149
    %p151 = scmp.eq.s32.totalorder %s17, 0
    %p152 = por %p150, %p151
    %s153 = ssub.s32 %s18, %s30
    %s154 = ssub.s32 %s19, %s26
    %s155 = sor.u32 %s153, %s154
    %p156 = scmp.eq.s32.totalorder %s155, 0
    %s158 = sadd.s32 %s157, 1
    %s159 = scalar_select %p156, %s157, %s158
    %p162 = pneg %p156
    %p163 = scmp.eq.s32.totalorder %s11, 1
    %p164 = por %p162, %p163
    %p165 = scmp.ne.s32.totalorder %s157, %s160
    %p166 = scmp.eq.s32.totalorder %s11, 0
    %p167 = por %p165, %p166
    %p168 = scmp.ne.s32.totalorder %s157, %s160
    %p169 = scmp.eq.s32.totalorder %s16, 1
    %p170 = por %p168, %p169
    %p171 = scmp.ne.s32.totalorder %s160, %s161
    %p172 = scmp.eq.s32.totalorder %s16, 0
    %p173 = por %p171, %p172
    %p174 = scmp.ne.s32.totalorder %s160, %s161
    %p175 = scmp.eq.s32.totalorder %s17, 1
    %p176 = por %p174, %p175
    %p178 = scmp.ne.s32.totalorder %s161, %s177
    %p179 = scmp.eq.s32.totalorder %s17, 0
    %p180 = por %p178, %p179
    %p181 = scmp.le.s32.totalorder 1, %s11
    %p182 = scmp.lt.s32.totalorder %s11, 3
    %p183 = pnand %p181, %p182
    %p184 = pneg %p183
    // Predicated region
    $region9: #{down_conv_forward.14} parent=5 // pred_check
      _
    $region10: #{down_conv_forward.14} parent=5 // pred_check_branch
      %186 = sbr.rel (%p183) target = $region12
    $region11: #{down_conv_forward.14} parent=5 // pred_region
      %s187 = ssub.s32 %s11, 1
      // Predicated region
      $region13: #{down_conv_forward.14} parent=11 // pred_check
        %p188 = pneg %p124
      $region14: #{down_conv_forward.14} parent=11 // pred_check_branch
        %190 = sbr.rel (%p188) target = $region16
      $region15: #{down_conv_forward.14} parent=11 // pred_region
        _
      $region16: #{down_conv_forward.14} parent=11 // pred_fallthru
        _
      // Predicated region
      $region17: #{down_conv_forward.14} parent=11 // pred_check
        %p191 = pneg %p145
      $region18: #{down_conv_forward.14} parent=11 // pred_check_branch
        %193 = sbr.rel (%p191) target = $region20
      $region19: #{down_conv_forward.14} parent=11 // pred_region
        _
      $region20: #{down_conv_forward.14} parent=11 // pred_fallthru
        _
    $region12: #{down_conv_forward.14} parent=5 // pred_fallthru
      _
    %p194 = scmp.lt.s32.totalorder %s11, 2
    // Predicated region
    $region21: #{down_conv_forward.14} parent=5 // pred_check
      %p195 = pneg %p194
    $region22: #{down_conv_forward.14} parent=5 // pred_check_branch
      %197 = sbr.rel (%p195) target = $region24
    $region23: #{down_conv_forward.14} parent=5 // pred_region
      // Predicated region
      $region25: #{down_conv_forward.14} parent=23 // pred_check
        %p198 = pneg %p45
      $region26: #{down_conv_forward.14} parent=23 // pred_check_branch
        %200 = sbr.rel (%p198) target = $region28
      $region27: #{down_conv_forward.14} parent=23 // pred_region
        %s201 = smul.u32 8, %s19
        %p202 = scmp.lt.s32.totalorder %s18, 1
        %s203 = scalar_select %p202, %s18, 1
        %p204 = scmp.lt.s32.totalorder %s201, 7
        %s205 = scalar_select %p204, %s201, 7
        %s206 = smul.addr %s203, 8
        %s207 = sadd.s32 %s205, %s206
        %s208 = smul.addr %s207, 8
        %s209 = scalar_lea.vmem %s0, %s208
        %s210 = smul.u32 8, %s19
      $region28: #{down_conv_forward.14} parent=23 // pred_fallthru
        _
      // Predicated region
      $region29: #{down_conv_forward.14} parent=23 // pred_check
        %p211 = pneg %p71
      $region30: #{down_conv_forward.14} parent=23 // pred_check_branch
        %213 = sbr.rel (%p211) target = $region32
      $region31: #{down_conv_forward.14} parent=23 // pred_region
        %p214 = scmp.lt.s32.totalorder %s18, 1
        %s215 = scalar_select %p214, %s18, 1
        %s216 = scalar_lea.vmem %s1, %s215
      $region32: #{down_conv_forward.14} parent=23 // pred_fallthru
        _
      // Predicated region
      $region33: #{down_conv_forward.14} parent=23 // pred_check
        %p217 = pneg %p97
      $region34: #{down_conv_forward.14} parent=23 // pred_check_branch
        %219 = sbr.rel (%p217) target = $region36
      $region35: #{down_conv_forward.14} parent=23 // pred_region
        %p220 = scmp.lt.s32.totalorder %s18, 1
        %s221 = scalar_select %p220, %s18, 1
        %s222 = scalar_lea.vmem %s2, %s221
      $region36: #{down_conv_forward.14} parent=23 // pred_fallthru
        _
    $region24: #{down_conv_forward.14} parent=5 // pred_fallthru
      _
    %p223 = scmp.le.s32.totalorder 1, %s11
    %p224 = scmp.lt.s32.totalorder %s11, 3
    %p225 = pnand %p223, %p224
    %p226 = pneg %p225
    // Predicated region
    $region37: #{down_conv_forward.14} parent=5 // pred_check
      _
    $region38: #{down_conv_forward.14} parent=5 // pred_check_branch
      %228 = sbr.rel (%p225) target = $region40
    $region39: #{down_conv_forward.14} parent=5 // pred_region
      %s229 = ssub.s32 %s11, 1
      %s230 = smul.u32 8, %s21
      %p231 = scmp.lt.s32.totalorder %s20, 1
      %s232 = scalar_select %p231, %s20, 1
      %p233 = scmp.lt.s32.totalorder %s230, 7
      %s234 = scalar_select %p233, %s230, 7
      %s235 = smul.addr %s232, 8
      %s236 = sadd.s32 %s234, %s235
      %s237 = smul.addr %s236, 8
      %s238 = scalar_lea.vmem %s0, %s237
      %p239 = pneg %p51
      %p240 = pneg %p48
      %p241 = scmp.lt.s32.totalorder %s20, 1
      %s242 = scalar_select %p241, %s20, 1
      %s243 = scalar_lea.vmem %s1, %s242
      %p244 = pneg %p77
      %p245 = pneg %p74
      %p246 = scmp.lt.s32.totalorder %s20, 1
      %s247 = scalar_select %p246, %s20, 1
      %s248 = scalar_lea.vmem %s2, %s247
      %p249 = pneg %p103
      %p250 = pneg %p100
      %p251 = pneg %p124
      %p252 = pneg %p121
      %p253 = pneg %p145
      %p254 = pneg %p142
      %p255 = pneg %p173
      %p256 = pneg %p170
      %s257 = smul.u32 8, %s21
      %p258 = scmp.lt.s32.totalorder %s20, 1
      %s259 = scalar_select %p258, %s20, 1
      %p260 = scmp.lt.s32.totalorder %s257, 7
      %s261 = scalar_select %p260, %s257, 7
      %s262 = smul.addr %s259, 8
      %s263 = sadd.s32 %s261, %s262
      %s264 = smul.addr %s263, 4
      %s265 = scalar_lea.vmem %s5, %s264
      %s266 = smul.u32 8, %s21
      %p267 = scmp.lt.s32.totalorder %s20, 1
      %s268 = scalar_select %p267, %s20, 1
      %p269 = scmp.lt.s32.totalorder %s266, 7
      %s270 = scalar_select %p269, %s266, 7
      %s271 = smul.addr %s268, 8
      %s272 = sadd.s32 %s270, %s271
      %s273 = smul.addr %s272, 8
      %s274 = scalar_lea.vmem %s0, %s273
      %s275 = smul.u32 8, %s21
      %p276 = scmp.lt.s32.totalorder %s20, 1
      %s277 = scalar_select %p276, %s20, 1
      %s278 = scalar_lea.vmem %s1, %s277
      %p279 = scmp.lt.s32.totalorder %s20, 1
      %s280 = scalar_select %p279, %s20, 1
      %s281 = scalar_lea.vmem %s2, %s280
      %s282 = smul.u32 8, %s21
      %p283 = scmp.lt.s32.totalorder %s20, 1
      %s284 = scalar_select %p283, %s20, 1
      %p285 = scmp.lt.s32.totalorder %s282, 7
      %s286 = scalar_select %p285, %s282, 7
      %s287 = smul.addr %s284, 8
      %s288 = sadd.s32 %s286, %s287
      %s289 = smul.addr %s288, 4
      %s290 = scalar_lea.vmem %s5, %s289
      %s291 = smul.u32 8, %s21
      %v292 = vld [vmem:[%s274] sm:$0xff]
      %v293 = vld [vmem:[%s274 + $0x8] sm:$0xff]
      %v294 = vld [vmem:[%s274 + $0x10] sm:$0xff]
      %v295 = vld [vmem:[%s274 + $0x18] sm:$0xff]
      %v296 = vld [vmem:[%s274 + $0x20] sm:$0xff]
      %v297 = vld [vmem:[%s274 + $0x28] sm:$0xff]
      %v298 = vld [vmem:[%s274 + $0x30] sm:$0xff]
      %v299 = vld [vmem:[%s274 + $0x38] sm:$0xff]
      %v300 = vld [vmem:[%s278] sm:$0x1]
      %v301 = vld [vmem:[%s281] sm:$0x1]
      %v302 = vld [vmem:[%s3] sm:$0x1]
      %v303 = vld [vmem:[%s4] sm:$0x1]
      %v305 = vlaneseq
      %v306 = vshrl.u32 %v305, 7
      %v307 = vsub.s32 0, %v306
      %v308 = vrot.slane %v300, %v307
      %v310 = vsub.f32 %v292, %v308
      %v311 = vsub.f32 %v293, %v308
      %v312 = vsub.f32 %v294, %v308
      %v313 = vsub.f32 %v295, %v308
      %v314 = vsub.f32 %v296, %v308
      %v315 = vsub.f32 %v297, %v308
      %v316 = vsub.f32 %v298, %v308
      %v317 = vsub.f32 %v299, %v308
      %v318 = vmul.f32 %v301, %v302
      %v320 = vlaneseq
      %v321 = vshrl.u32 %v320, 7
      %v322 = vsub.s32 0, %v321
      %v323 = vrot.slane %v318, %v322
      %v325 = vmul.f32 %v310, %v323
      %v326 = vmul.f32 %v311, %v323
      %v327 = vmul.f32 %v312, %v323
      %v328 = vmul.f32 %v313, %v323
      %v329 = vmul.f32 %v314, %v323
      %v330 = vmul.f32 %v315, %v323
      %v331 = vmul.f32 %v316, %v323
      %v332 = vmul.f32 %v317, %v323
      %v334 = vlaneseq
      %v335 = vshrl.u32 %v334, 7
      %v336 = vsub.s32 0, %v335
      %v337 = vrot.slane %v303, %v336
      %v339 = vadd.f32 %v325, %v337
      %v340 = vadd.f32 %v326, %v337
      %v341 = vadd.f32 %v327, %v337
      %v342 = vadd.f32 %v328, %v337
      %v343 = vadd.f32 %v329, %v337
      %v344 = vadd.f32 %v330, %v337
      %v345 = vadd.f32 %v331, %v337
      %v346 = vadd.f32 %v332, %v337
      %v347 = vmax.f32 %v339, 0.0
      %v348 = vmax.f32 %v340, 0.0
      %v349 = vmax.f32 %v341, 0.0
      %v350 = vmax.f32 %v342, 0.0
      %v351 = vmax.f32 %v343, 0.0
      %v352 = vmax.f32 %v344, 0.0
      %v353 = vmax.f32 %v345, 0.0
      %v354 = vmax.f32 %v346, 0.0
      %v355 = vpack.c.bf16 %v348, %v347
      %v356 = vpack.c.bf16 %v350, %v349
      %v357 = vpack.c.bf16 %v352, %v351
      %v358 = vpack.c.bf16 %v354, %v353
      %v363 = vunpack.c.l.b16 %v355
      %v364 = vunpack.c.h.b16 %v355
      %v365 = vunpack.c.l.b16 %v356
      %v366 = vunpack.c.h.b16 %v356
      %v367 = vunpack.c.l.b16 %v357
      %v368 = vunpack.c.h.b16 %v357
      %v369 = vunpack.c.l.b16 %v358
      %v370 = vunpack.c.h.b16 %v358
      %v371 = vpack.c.b16 %v363, %v363
      %v372 = vpack.c.b16 %v364, %v364
      %v373 = vpack.c.b16 %v365, %v365
      %v374 = vpack.c.b16 %v366, %v366
      %v375 = vpack.c.b16 %v367, %v367
      %v376 = vpack.c.b16 %v368, %v368
      %v377 = vpack.c.b16 %v369, %v369
      %v378 = vpack.c.b16 %v370, %v370
      %387 = vst [vmem:[%s290] sm:$0xf] %v371
      %388 = vst [vmem:[%s290 + $0x4] sm:$0xf] %v372
      %389 = vst [vmem:[%s290 + $0x8] sm:$0xf] %v373
      %390 = vst [vmem:[%s290 + $0xc] sm:$0xf] %v374
      %391 = vst [vmem:[%s290 + $0x10] sm:$0xf] %v375
      %392 = vst [vmem:[%s290 + $0x14] sm:$0xf] %v376
      %393 = vst [vmem:[%s290 + $0x18] sm:$0xf] %v377
      %394 = vst [vmem:[%s290 + $0x1c] sm:$0xf] %v378
      %s395 = smul.u32 8, %s21
      %p396 = scmp.lt.s32.totalorder %s20, 1
      %s397 = scalar_select %p396, %s20, 1
      %p398 = scmp.lt.s32.totalorder %s395, 7
      %s399 = scalar_select %p398, %s395, 7
      %s400 = smul.addr %s397, 8
      %s401 = sadd.s32 %s399, %s400
      %s402 = smul.addr %s401, 4
      %s403 = scalar_lea.vmem %s5, %s402
      // Predicated region
      $region41: #{down_conv_forward.14} parent=39 // pred_check
        %p404 = pneg %p170
      $region42: #{down_conv_forward.14} parent=39 // pred_check_branch
        %406 = sbr.rel (%p404) target = $region44
      $region43: #{down_conv_forward.14} parent=39 // pred_region
        %s407 = smul.u32 8, %s21
      $region44: #{down_conv_forward.14} parent=39 // pred_fallthru
        _
    $region40: #{down_conv_forward.14} parent=5 // pred_fallthru
      _
    %p408 = scmp.le.s32.totalorder 2, %s11
    // Predicated region
    $region45: #{down_conv_forward.14} parent=5 // pred_check
      %p409 = pneg %p408
    $region46: #{down_conv_forward.14} parent=5 // pred_check_branch
      %411 = sbr.rel (%p409) target = $region48
    $region47: #{down_conv_forward.14} parent=5 // pred_region
      %s412 = ssub.s32 %s11, 2
      // Predicated region
      $region49: #{down_conv_forward.14} parent=47 // pred_check
        %p413 = pneg %p176
      $region50: #{down_conv_forward.14} parent=47 // pred_check_branch
        %415 = sbr.rel (%p413) target = $region52
      $region51: #{down_conv_forward.14} parent=47 // pred_region
        %s416 = smul.u32 8, %s23
        %p417 = scmp.lt.s32.totalorder %s22, 1
        %s418 = scalar_select %p417, %s22, 1
        %p419 = scmp.lt.s32.totalorder %s416, 7
        %s420 = scalar_select %p419, %s416, 7
        %s421 = smul.addr %s418, 8
        %s422 = sadd.s32 %s420, %s421
        %s423 = smul.addr %s422, 4
        %s424 = scalar_lea.vmem %s5, %s423
      $region52: #{down_conv_forward.14} parent=47 // pred_fallthru
        _
    $region48: #{down_conv_forward.14} parent=5 // pred_fallthru
      _
  $region6: #{down_conv_forward.14} parent=0 // loop_footer
    %s15 = sadd.s32 1, %s11
  $region7: #{down_conv_forward.14} parent=0 // loop_footer_branch
    %10 = sbr.rel target = $region3
  $region8: #{down_conv_forward.14} parent=0 // loop_exit
    _

// kernel: down_conv_forward.12
$region0: #{down_conv_forward.12}
  #allocation0 [shape = 'u32[]', space=smem, size = 0x4, offset = 0x4, fixed_abs, tag = 'smem constant byte address 0x4 - core index']
  #allocation1 [shape = 'u32[144,128]{1,0:T(1,128)}', space=vmem, size = 0x12000, scoped, tag = 'internal scratch']
  %s0 = inlined_call_operand.vmem [shape: bf16[128,1152], index: 0, kind: input, shape index: {}]
  %s1 = inlined_call_operand.vmem [shape: bf16[1152,128], index: 1, kind: input, shape index: {}]
  %s2 = inlined_call_operand.vmem [shape: f32[128,128], index: 2, kind: output, shape index: {}]
  %s3 = sld [smem:[#allocation0]]
  $region18: #{down_conv_forward.12} parent=0
    _
  %s5 = ssub.s32 1, %s3
  %s6 = scalar_select 0, %s5, %s3
  // Predicated region
  $region2: #{down_conv_forward.12} parent=0 // pred_check
    _
  $region3: #{down_conv_forward.12} parent=0 // pred_check_branch
    %8 = sbr.rel (0) target = $region5
  $region4: #{down_conv_forward.12} parent=0 // pred_region
    _
  $region5: #{down_conv_forward.12} parent=0 // pred_fallthru
    _
  // Predicated region
  $region6: #{down_conv_forward.12} parent=0 // pred_check
    _
  $region7: #{down_conv_forward.12} parent=0 // pred_check_branch
    %10 = sbr.rel (0) target = $region9
  $region8: #{down_conv_forward.12} parent=0 // pred_region
    _
  $region9: #{down_conv_forward.12} parent=0 // pred_fallthru
    _
  %v12 = vld [vmem:[%s0] sm:$0xff]
  %v13 = vld [vmem:[%s0 + $0x8] sm:$0xff]
  %v14 = vld [vmem:[%s0 + $0x10] sm:$0xff]
  %v15 = vld [vmem:[%s0 + $0x18] sm:$0xff]
  %v16 = vld [vmem:[%s0 + $0x20] sm:$0xf]
  %v17 = vld [vmem:[%s0 + $0x24] sm:$0xff]
  %v18 = vld [vmem:[%s0 + $0x2c] sm:$0xff]
  %v19 = vld [vmem:[%s0 + $0x34] sm:$0xff]
  %v20 = vld [vmem:[%s0 + $0x3c] sm:$0xff]
  %v21 = vld [vmem:[%s0 + $0x44] sm:$0xf]
  %v22 = vld [vmem:[%s0 + $0x48] sm:$0xff]
  %v23 = vld [vmem:[%s0 + $0x50] sm:$0xff]
  %v24 = vld [vmem:[%s0 + $0x58] sm:$0xff]
  %v25 = vld [vmem:[%s0 + $0x60] sm:$0xff]
  %v26 = vld [vmem:[%s0 + $0x68] sm:$0xf]
  %v27 = vld [vmem:[%s0 + $0x6c] sm:$0xff]
  %v28 = vld [vmem:[%s0 + $0x74] sm:$0xff]
  %v29 = vld [vmem:[%s0 + $0x7c] sm:$0xff]
  %v30 = vld [vmem:[%s0 + $0x84] sm:$0xff]
  %v31 = vld [vmem:[%s0 + $0x8c] sm:$0xf]
  %v32 = vld [vmem:[%s0 + $0x90] sm:$0xff]
  %v33 = vld [vmem:[%s0 + $0x98] sm:$0xff]
  %v34 = vld [vmem:[%s0 + $0xa0] sm:$0xff]
  %v35 = vld [vmem:[%s0 + $0xa8] sm:$0xff]
  %v36 = vld [vmem:[%s0 + $0xb0] sm:$0xf]
  %v37 = vld [vmem:[%s0 + $0xb4] sm:$0xff]
  %v38 = vld [vmem:[%s0 + $0xbc] sm:$0xff]
  %v39 = vld [vmem:[%s0 + $0xc4] sm:$0xff]
  %v40 = vld [vmem:[%s0 + $0xcc] sm:$0xff]
  %v41 = vld [vmem:[%s0 + $0xd4] sm:$0xf]
  %v42 = vld [vmem:[%s0 + $0xd8] sm:$0xff]
  %v43 = vld [vmem:[%s0 + $0xe0] sm:$0xff]
  %v44 = vld [vmem:[%s0 + $0xe8] sm:$0xff]
  %v45 = vld [vmem:[%s0 + $0xf0] sm:$0xff]
  %v46 = vld [vmem:[%s0 + $0xf8] sm:$0xf]
  %v47 = vld [vmem:[%s0 + $0xfc] sm:$0xff]
  %v48 = vld [vmem:[%s0 + $0x104] sm:$0xff]
  %v49 = vld [vmem:[%s0 + $0x10c] sm:$0xff]
  %v50 = vld [vmem:[%s0 + $0x114] sm:$0xff]
  %v51 = vld [vmem:[%s0 + $0x11c] sm:$0xf]
  %v52 = vld [vmem:[%s0 + $0x120] sm:$0xff]
  %v53 = vld [vmem:[%s0 + $0x128] sm:$0xff]
  %v54 = vld [vmem:[%s0 + $0x130] sm:$0xff]
  %v55 = vld [vmem:[%s0 + $0x138] sm:$0xff]
  %v56 = vld [vmem:[%s0 + $0x140] sm:$0xf]
  %v57 = vld [vmem:[%s0 + $0x144] sm:$0xff]
  %v58 = vld [vmem:[%s0 + $0x14c] sm:$0xff]
  %v59 = vld [vmem:[%s0 + $0x154] sm:$0xff]
  %v60 = vld [vmem:[%s0 + $0x15c] sm:$0xff]
  %v61 = vld [vmem:[%s0 + $0x164] sm:$0xf]
  %v62 = vld [vmem:[%s0 + $0x168] sm:$0xff]
  %v63 = vld [vmem:[%s0 + $0x170] sm:$0xff]
  %v64 = vld [vmem:[%s0 + $0x178] sm:$0xff]
  %v65 = vld [vmem:[%s0 + $0x180] sm:$0xff]
  %v66 = vld [vmem:[%s0 + $0x188] sm:$0xf]
  %v67 = vld [vmem:[%s0 + $0x18c] sm:$0xff]
  %v68 = vld [vmem:[%s0 + $0x194] sm:$0xff]
  %v69 = vld [vmem:[%s0 + $0x19c] sm:$0xff]
  %v70 = vld [vmem:[%s0 + $0x1a4] sm:$0xff]
  %v71 = vld [vmem:[%s0 + $0x1ac] sm:$0xf]
  %v72 = vld [vmem:[%s0 + $0x1b0] sm:$0xff]
  %v73 = vld [vmem:[%s0 + $0x1b8] sm:$0xff]
  %v74 = vld [vmem:[%s0 + $0x1c0] sm:$0xff]
  %v75 = vld [vmem:[%s0 + $0x1c8] sm:$0xff]
  %v76 = vld [vmem:[%s0 + $0x1d0] sm:$0xf]
  %v77 = vld [vmem:[%s0 + $0x1d4] sm:$0xff]
  %v78 = vld [vmem:[%s0 + $0x1dc] sm:$0xff]
  %v79 = vld [vmem:[%s0 + $0x1e4] sm:$0xff]
  %v80 = vld [vmem:[%s0 + $0x1ec] sm:$0xff]
  %v81 = vld [vmem:[%s0 + $0x1f4] sm:$0xf]
  %v82 = vld [vmem:[%s0 + $0x1f8] sm:$0xff]
  %v83 = vld [vmem:[%s0 + $0x200] sm:$0xff]
  %v84 = vld [vmem:[%s0 + $0x208] sm:$0xff]
  %v85 = vld [vmem:[%s0 + $0x210] sm:$0xff]
  %v86 = vld [vmem:[%s0 + $0x218] sm:$0xf]
  %v87 = vld [vmem:[%s0 + $0x21c] sm:$0xff]
  %v88 = vld [vmem:[%s0 + $0x224] sm:$0xff]
  %v89 = vld [vmem:[%s0 + $0x22c] sm:$0xff]
  %v90 = vld [vmem:[%s0 + $0x234] sm:$0xff]
  %v91 = vld [vmem:[%s0 + $0x23c] sm:$0xf]
  %v92 = vld [vmem:[%s1] sm:$0xf]
  %v93 = vld [vmem:[%s1 + $0x4] sm:$0xf]
  %v94 = vld [vmem:[%s1 + $0x8] sm:$0xf]
  %v95 = vld [vmem:[%s1 + $0xc] sm:$0xf]
  %v96 = vld [vmem:[%s1 + $0x10] sm:$0xf]
  %v97 = vld [vmem:[%s1 + $0x14] sm:$0xf]
  %v98 = vld [vmem:[%s1 + $0x18] sm:$0xf]
  %v99 = vld [vmem:[%s1 + $0x1c] sm:$0xf]
  %v100 = vld [vmem:[%s1 + $0x20] sm:$0xf]
  %v101 = vld [vmem:[%s1 + $0x24] sm:$0xf]
  %v102 = vld [vmem:[%s1 + $0x28] sm:$0xf]
  %v103 = vld [vmem:[%s1 + $0x2c] sm:$0xf]
  %v104 = vld [vmem:[%s1 + $0x30] sm:$0xf]
  %v105 = vld [vmem:[%s1 + $0x34] sm:$0xf]
  %v106 = vld [vmem:[%s1 + $0x38] sm:$0xf]
  %v107 = vld [vmem:[%s1 + $0x3c] sm:$0xf]
  %v108 = vld [vmem:[%s1 + $0x40] sm:$0xf]
  %v109 = vld [vmem:[%s1 + $0x44] sm:$0xf]
  %v110 = vld [vmem:[%s1 + $0x48] sm:$0xf]
  %v111 = vld [vmem:[%s1 + $0x4c] sm:$0xf]
  %v112 = vld [vmem:[%s1 + $0x50] sm:$0xf]
  %v113 = vld [vmem:[%s1 + $0x54] sm:$0xf]
  %v114 = vld [vmem:[%s1 + $0x58] sm:$0xf]
  %v115 = vld [vmem:[%s1 + $0x5c] sm:$0xf]
  %v116 = vld [vmem:[%s1 + $0x60] sm:$0xf]
  %v117 = vld [vmem:[%s1 + $0x64] sm:$0xf]
  %v118 = vld [vmem:[%s1 + $0x68] sm:$0xf]
  %v119 = vld [vmem:[%s1 + $0x6c] sm:$0xf]
  %v120 = vld [vmem:[%s1 + $0x70] sm:$0xf]
  %v121 = vld [vmem:[%s1 + $0x74] sm:$0xf]
  %v122 = vld [vmem:[%s1 + $0x78] sm:$0xf]
  %v123 = vld [vmem:[%s1 + $0x7c] sm:$0xf]
  %v124 = vld [vmem:[%s1 + $0x80] sm:$0xf]
  %v125 = vld [vmem:[%s1 + $0x84] sm:$0xf]
  %v126 = vld [vmem:[%s1 + $0x88] sm:$0xf]
  %v127 = vld [vmem:[%s1 + $0x8c] sm:$0xf]
  %v128 = vld [vmem:[%s1 + $0x90] sm:$0xf]
  %v129 = vld [vmem:[%s1 + $0x94] sm:$0xf]
  %v130 = vld [vmem:[%s1 + $0x98] sm:$0xf]
  %v131 = vld [vmem:[%s1 + $0x9c] sm:$0xf]
  %v132 = vld [vmem:[%s1 + $0xa0] sm:$0xf]
  %v133 = vld [vmem:[%s1 + $0xa4] sm:$0xf]
  %v134 = vld [vmem:[%s1 + $0xa8] sm:$0xf]
  %v135 = vld [vmem:[%s1 + $0xac] sm:$0xf]
  %v136 = vld [vmem:[%s1 + $0xb0] sm:$0xf]
  %v137 = vld [vmem:[%s1 + $0xb4] sm:$0xf]
  %v138 = vld [vmem:[%s1 + $0xb8] sm:$0xf]
  %v139 = vld [vmem:[%s1 + $0xbc] sm:$0xf]
  %v140 = vld [vmem:[%s1 + $0xc0] sm:$0xf]
  %v141 = vld [vmem:[%s1 + $0xc4] sm:$0xf]
  %v142 = vld [vmem:[%s1 + $0xc8] sm:$0xf]
  %v143 = vld [vmem:[%s1 + $0xcc] sm:$0xf]
  %v144 = vld [vmem:[%s1 + $0xd0] sm:$0xf]
  %v145 = vld [vmem:[%s1 + $0xd4] sm:$0xf]
  %v146 = vld [vmem:[%s1 + $0xd8] sm:$0xf]
  %v147 = vld [vmem:[%s1 + $0xdc] sm:$0xf]
  %v148 = vld [vmem:[%s1 + $0xe0] sm:$0xf]
  %v149 = vld [vmem:[%s1 + $0xe4] sm:$0xf]
  %v150 = vld [vmem:[%s1 + $0xe8] sm:$0xf]
  %v151 = vld [vmem:[%s1 + $0xec] sm:$0xf]
  %v152 = vld [vmem:[%s1 + $0xf0] sm:$0xf]
  %v153 = vld [vmem:[%s1 + $0xf4] sm:$0xf]
  %v154 = vld [vmem:[%s1 + $0xf8] sm:$0xf]
  %v155 = vld [vmem:[%s1 + $0xfc] sm:$0xf]
  %v156 = vld [vmem:[%s1 + $0x100] sm:$0xf]
  %v157 = vld [vmem:[%s1 + $0x104] sm:$0xf]
  %v158 = vld [vmem:[%s1 + $0x108] sm:$0xf]
  %v159 = vld [vmem:[%s1 + $0x10c] sm:$0xf]
  %v160 = vld [vmem:[%s1 + $0x110] sm:$0xf]
  %v161 = vld [vmem:[%s1 + $0x114] sm:$0xf]
  %v162 = vld [vmem:[%s1 + $0x118] sm:$0xf]
  %v163 = vld [vmem:[%s1 + $0x11c] sm:$0xf]
  %v164 = vld [vmem:[%s1 + $0x120] sm:$0xf]
  %v165 = vld [vmem:[%s1 + $0x124] sm:$0xf]
  %v166 = vld [vmem:[%s1 + $0x128] sm:$0xf]
  %v167 = vld [vmem:[%s1 + $0x12c] sm:$0xf]
  %v168 = vld [vmem:[%s1 + $0x130] sm:$0xf]
  %v169 = vld [vmem:[%s1 + $0x134] sm:$0xf]
  %v170 = vld [vmem:[%s1 + $0x138] sm:$0xf]
  %v171 = vld [vmem:[%s1 + $0x13c] sm:$0xf]
  %v172 = vld [vmem:[%s1 + $0x140] sm:$0xf]
  %v173 = vld [vmem:[%s1 + $0x144] sm:$0xf]
  %v174 = vld [vmem:[%s1 + $0x148] sm:$0xf]
  %v175 = vld [vmem:[%s1 + $0x14c] sm:$0xf]
  %v176 = vld [vmem:[%s1 + $0x150] sm:$0xf]
  %v177 = vld [vmem:[%s1 + $0x154] sm:$0xf]
  %v178 = vld [vmem:[%s1 + $0x158] sm:$0xf]
  %v179 = vld [vmem:[%s1 + $0x15c] sm:$0xf]
  %v180 = vld [vmem:[%s1 + $0x160] sm:$0xf]
  %v181 = vld [vmem:[%s1 + $0x164] sm:$0xf]
  %v182 = vld [vmem:[%s1 + $0x168] sm:$0xf]
  %v183 = vld [vmem:[%s1 + $0x16c] sm:$0xf]
  %v184 = vld [vmem:[%s1 + $0x170] sm:$0xf]
  %v185 = vld [vmem:[%s1 + $0x174] sm:$0xf]
  %v186 = vld [vmem:[%s1 + $0x178] sm:$0xf]
  %v187 = vld [vmem:[%s1 + $0x17c] sm:$0xf]
  %v188 = vld [vmem:[%s1 + $0x180] sm:$0xf]
  %v189 = vld [vmem:[%s1 + $0x184] sm:$0xf]
  %v190 = vld [vmem:[%s1 + $0x188] sm:$0xf]
  %v191 = vld [vmem:[%s1 + $0x18c] sm:$0xf]
  %v192 = vld [vmem:[%s1 + $0x190] sm:$0xf]
  %v193 = vld [vmem:[%s1 + $0x194] sm:$0xf]
  %v194 = vld [vmem:[%s1 + $0x198] sm:$0xf]
  %v195 = vld [vmem:[%s1 + $0x19c] sm:$0xf]
  %v196 = vld [vmem:[%s1 + $0x1a0] sm:$0xf]
  %v197 = vld [vmem:[%s1 + $0x1a4] sm:$0xf]
  %v198 = vld [vmem:[%s1 + $0x1a8] sm:$0xf]
  %v199 = vld [vmem:[%s1 + $0x1ac] sm:$0xf]
  %v200 = vld [vmem:[%s1 + $0x1b0] sm:$0xf]
  %v201 = vld [vmem:[%s1 + $0x1b4] sm:$0xf]
  %v202 = vld [vmem:[%s1 + $0x1b8] sm:$0xf]
  %v203 = vld [vmem:[%s1 + $0x1bc] sm:$0xf]
  %v204 = vld [vmem:[%s1 + $0x1c0] sm:$0xf]
  %v205 = vld [vmem:[%s1 + $0x1c4] sm:$0xf]
  %v206 = vld [vmem:[%s1 + $0x1c8] sm:$0xf]
  %v207 = vld [vmem:[%s1 + $0x1cc] sm:$0xf]
  %v208 = vld [vmem:[%s1 + $0x1d0] sm:$0xf]
  %v209 = vld [vmem:[%s1 + $0x1d4] sm:$0xf]
  %v210 = vld [vmem:[%s1 + $0x1d8] sm:$0xf]
  %v211 = vld [vmem:[%s1 + $0x1dc] sm:$0xf]
  %v212 = vld [vmem:[%s1 + $0x1e0] sm:$0xf]
  %v213 = vld [vmem:[%s1 + $0x1e4] sm:$0xf]
  %v214 = vld [vmem:[%s1 + $0x1e8] sm:$0xf]
  %v215 = vld [vmem:[%s1 + $0x1ec] sm:$0xf]
  %v216 = vld [vmem:[%s1 + $0x1f0] sm:$0xf]
  %v217 = vld [vmem:[%s1 + $0x1f4] sm:$0xf]
  %v218 = vld [vmem:[%s1 + $0x1f8] sm:$0xf]
  %v219 = vld [vmem:[%s1 + $0x1fc] sm:$0xf]
  %v220 = vld [vmem:[%s1 + $0x200] sm:$0xf]
  %v221 = vld [vmem:[%s1 + $0x204] sm:$0xf]
  %v222 = vld [vmem:[%s1 + $0x208] sm:$0xf]
  %v223 = vld [vmem:[%s1 + $0x20c] sm:$0xf]
  %v224 = vld [vmem:[%s1 + $0x210] sm:$0xf]
  %v225 = vld [vmem:[%s1 + $0x214] sm:$0xf]
  %v226 = vld [vmem:[%s1 + $0x218] sm:$0xf]
  %v227 = vld [vmem:[%s1 + $0x21c] sm:$0xf]
  %v228 = vld [vmem:[%s1 + $0x220] sm:$0xf]
  %v229 = vld [vmem:[%s1 + $0x224] sm:$0xf]
  %v230 = vld [vmem:[%s1 + $0x228] sm:$0xf]
  %v231 = vld [vmem:[%s1 + $0x22c] sm:$0xf]
  %v232 = vld [vmem:[%s1 + $0x230] sm:$0xf]
  %v233 = vld [vmem:[%s1 + $0x234] sm:$0xf]
  %v234 = vld [vmem:[%s1 + $0x238] sm:$0xf]
  %v235 = vld [vmem:[%s1 + $0x23c] sm:$0xf]
  %v316 = vunpack.c.l.b16 %v12
  %v317 = vunpack.c.h.b16 %v12
  %v318 = vunpack.c.l.b16 %v13
  %v319 = vunpack.c.h.b16 %v13
  %v320 = vunpack.c.l.b16 %v14
  %v321 = vunpack.c.h.b16 %v14
  %v322 = vunpack.c.l.b16 %v15
  %v323 = vunpack.c.h.b16 %v15
  %v324 = vunpack.c.l.b16 %v16
  %v325 = vunpack.c.l.b16 %v17
  %v326 = vunpack.c.h.b16 %v17
  %v327 = vunpack.c.l.b16 %v18
  %v328 = vunpack.c.h.b16 %v18
  %v329 = vunpack.c.l.b16 %v19
  %v330 = vunpack.c.h.b16 %v19
  %v331 = vunpack.c.l.b16 %v20
  %v332 = vunpack.c.h.b16 %v20
  %v333 = vunpack.c.l.b16 %v21
  %v334 = vunpack.c.l.b16 %v22
  %v335 = vunpack.c.h.b16 %v22
  %v336 = vunpack.c.l.b16 %v23
  %v337 = vunpack.c.h.b16 %v23
  %v338 = vunpack.c.l.b16 %v24
  %v339 = vunpack.c.h.b16 %v24
  %v340 = vunpack.c.l.b16 %v25
  %v341 = vunpack.c.h.b16 %v25
  %v342 = vunpack.c.l.b16 %v26
  %v343 = vunpack.c.l.b16 %v27
  %v344 = vunpack.c.h.b16 %v27
  %v345 = vunpack.c.l.b16 %v28
  %v346 = vunpack.c.h.b16 %v28
  %v347 = vunpack.c.l.b16 %v29
  %v348 = vunpack.c.h.b16 %v29
  %v349 = vunpack.c.l.b16 %v30
  %v350 = vunpack.c.h.b16 %v30
  %v351 = vunpack.c.l.b16 %v31
  %v352 = vunpack.c.l.b16 %v32
  %v353 = vunpack.c.h.b16 %v32
  %v354 = vunpack.c.l.b16 %v33
  %v355 = vunpack.c.h.b16 %v33
  %v356 = vunpack.c.l.b16 %v34
  %v357 = vunpack.c.h.b16 %v34
  %v358 = vunpack.c.l.b16 %v35
  %v359 = vunpack.c.h.b16 %v35
  %v360 = vunpack.c.l.b16 %v36
  %v361 = vunpack.c.l.b16 %v37
  %v362 = vunpack.c.h.b16 %v37
  %v363 = vunpack.c.l.b16 %v38
  %v364 = vunpack.c.h.b16 %v38
  %v365 = vunpack.c.l.b16 %v39
  %v366 = vunpack.c.h.b16 %v39
  %v367 = vunpack.c.l.b16 %v40
  %v368 = vunpack.c.h.b16 %v40
  %v369 = vunpack.c.l.b16 %v41
  %v370 = vunpack.c.l.b16 %v42
  %v371 = vunpack.c.h.b16 %v42
  %v372 = vunpack.c.l.b16 %v43
  %v373 = vunpack.c.h.b16 %v43
  %v374 = vunpack.c.l.b16 %v44
  %v375 = vunpack.c.h.b16 %v44
  %v376 = vunpack.c.l.b16 %v45
  %v377 = vunpack.c.h.b16 %v45
  %v378 = vunpack.c.l.b16 %v46
  %v379 = vunpack.c.l.b16 %v47
  %v380 = vunpack.c.h.b16 %v47
  %v381 = vunpack.c.l.b16 %v48
  %v382 = vunpack.c.h.b16 %v48
  %v383 = vunpack.c.l.b16 %v49
  %v384 = vunpack.c.h.b16 %v49
  %v385 = vunpack.c.l.b16 %v50
  %v386 = vunpack.c.h.b16 %v50
  %v387 = vunpack.c.l.b16 %v51
  %v388 = vunpack.c.l.b16 %v52
  %v389 = vunpack.c.h.b16 %v52
  %v390 = vunpack.c.l.b16 %v53
  %v391 = vunpack.c.h.b16 %v53
  %v392 = vunpack.c.l.b16 %v54
  %v393 = vunpack.c.h.b16 %v54
  %v394 = vunpack.c.l.b16 %v55
  %v395 = vunpack.c.h.b16 %v55
  %v396 = vunpack.c.l.b16 %v56
  %v397 = vunpack.c.l.b16 %v57
  %v398 = vunpack.c.h.b16 %v57
  %v399 = vunpack.c.l.b16 %v58
  %v400 = vunpack.c.h.b16 %v58
  %v401 = vunpack.c.l.b16 %v59
  %v402 = vunpack.c.h.b16 %v59
  %v403 = vunpack.c.l.b16 %v60
  %v404 = vunpack.c.h.b16 %v60
  %v405 = vunpack.c.l.b16 %v61
  %v406 = vunpack.c.l.b16 %v62
  %v407 = vunpack.c.h.b16 %v62
  %v408 = vunpack.c.l.b16 %v63
  %v409 = vunpack.c.h.b16 %v63
  %v410 = vunpack.c.l.b16 %v64
  %v411 = vunpack.c.h.b16 %v64
  %v412 = vunpack.c.l.b16 %v65
  %v413 = vunpack.c.h.b16 %v65
  %v414 = vunpack.c.l.b16 %v66
  %v415 = vunpack.c.l.b16 %v67
  %v416 = vunpack.c.h.b16 %v67
  %v417 = vunpack.c.l.b16 %v68
  %v418 = vunpack.c.h.b16 %v68
  %v419 = vunpack.c.l.b16 %v69
  %v420 = vunpack.c.h.b16 %v69
  %v421 = vunpack.c.l.b16 %v70
  %v422 = vunpack.c.h.b16 %v70
  %v423 = vunpack.c.l.b16 %v71
  %v424 = vunpack.c.l.b16 %v72
  %v425 = vunpack.c.h.b16 %v72
  %v426 = vunpack.c.l.b16 %v73
  %v427 = vunpack.c.h.b16 %v73
  %v428 = vunpack.c.l.b16 %v74
  %v429 = vunpack.c.h.b16 %v74
  %v430 = vunpack.c.l.b16 %v75
  %v431 = vunpack.c.h.b16 %v75
  %v432 = vunpack.c.l.b16 %v76
  %v433 = vunpack.c.l.b16 %v77
  %v434 = vunpack.c.h.b16 %v77
  %v435 = vunpack.c.l.b16 %v78
  %v436 = vunpack.c.h.b16 %v78
  %v437 = vunpack.c.l.b16 %v79
  %v438 = vunpack.c.h.b16 %v79
  %v439 = vunpack.c.l.b16 %v80
  %v440 = vunpack.c.h.b16 %v80
  %v441 = vunpack.c.l.b16 %v81
  %v442 = vunpack.c.l.b16 %v82
  %v443 = vunpack.c.h.b16 %v82
  %v444 = vunpack.c.l.b16 %v83
  %v445 = vunpack.c.h.b16 %v83
  %v446 = vunpack.c.l.b16 %v84
  %v447 = vunpack.c.h.b16 %v84
  %v448 = vunpack.c.l.b16 %v85
  %v449 = vunpack.c.h.b16 %v85
  %v450 = vunpack.c.l.b16 %v86
  %v451 = vunpack.c.l.b16 %v87
  %v452 = vunpack.c.h.b16 %v87
  %v453 = vunpack.c.l.b16 %v88
  %v454 = vunpack.c.h.b16 %v88
  %v455 = vunpack.c.l.b16 %v89
  %v456 = vunpack.c.h.b16 %v89
  %v457 = vunpack.c.l.b16 %v90
  %v458 = vunpack.c.h.b16 %v90
  %v459 = vunpack.c.l.b16 %v91
  %v460 = vpack.c.b16 %v325, %v316
  %v461 = vpack.c.b16 %v326, %v317
  %v462 = vpack.c.b16 %v327, %v318
  %v463 = vpack.c.b16 %v328, %v319
  %v464 = vpack.c.b16 %v329, %v320
  %v465 = vpack.c.b16 %v330, %v321
  %v466 = vpack.c.b16 %v331, %v322
  %v467 = vpack.c.b16 %v332, %v323
  %v468 = vpack.c.b16 %v333, %v324
  %v469 = vpack.c.b16 %v343, %v334
  %v470 = vpack.c.b16 %v344, %v335
  %v471 = vpack.c.b16 %v345, %v336
  %v472 = vpack.c.b16 %v346, %v337
  %v473 = vpack.c.b16 %v347, %v338
  %v474 = vpack.c.b16 %v348, %v339
  %v475 = vpack.c.b16 %v349, %v340
  %v476 = vpack.c.b16 %v350, %v341
  %v477 = vpack.c.b16 %v351, %v342
  %v478 = vpack.c.b16 %v361, %v352
  %v479 = vpack.c.b16 %v362, %v353
  %v480 = vpack.c.b16 %v363, %v354
  %v481 = vpack.c.b16 %v364, %v355
  %v482 = vpack.c.b16 %v365, %v356
  %v483 = vpack.c.b16 %v366, %v357
  %v484 = vpack.c.b16 %v367, %v358
  %v485 = vpack.c.b16 %v368, %v359
  %v486 = vpack.c.b16 %v369, %v360
  %v487 = vpack.c.b16 %v379, %v370
  %v488 = vpack.c.b16 %v380, %v371
  %v489 = vpack.c.b16 %v381, %v372
  %v490 = vpack.c.b16 %v382, %v373
  %v491 = vpack.c.b16 %v383, %v374
  %v492 = vpack.c.b16 %v384, %v375
  %v493 = vpack.c.b16 %v385, %v376
  %v494 = vpack.c.b16 %v386, %v377
  %v495 = vpack.c.b16 %v387, %v378
  %v496 = vpack.c.b16 %v397, %v388
  %v497 = vpack.c.b16 %v398, %v389
  %v498 = vpack.c.b16 %v399, %v390
  %v499 = vpack.c.b16 %v400, %v391
  %v500 = vpack.c.b16 %v401, %v392
  %v501 = vpack.c.b16 %v402, %v393
  %v502 = vpack.c.b16 %v403, %v394
  %v503 = vpack.c.b16 %v404, %v395
  %v504 = vpack.c.b16 %v405, %v396
  %v505 = vpack.c.b16 %v415, %v406
  %v506 = vpack.c.b16 %v416, %v407
  %v507 = vpack.c.b16 %v417, %v408
  %v508 = vpack.c.b16 %v418, %v409
  %v509 = vpack.c.b16 %v419, %v410
  %v510 = vpack.c.b16 %v420, %v411
  %v511 = vpack.c.b16 %v421, %v412
  %v512 = vpack.c.b16 %v422, %v413
  %v513 = vpack.c.b16 %v423, %v414
  %v514 = vpack.c.b16 %v433, %v424
  %v515 = vpack.c.b16 %v434, %v425
  %v516 = vpack.c.b16 %v435, %v426
  %v517 = vpack.c.b16 %v436, %v427
  %v518 = vpack.c.b16 %v437, %v428
  %v519 = vpack.c.b16 %v438, %v429
  %v520 = vpack.c.b16 %v439, %v430
  %v521 = vpack.c.b16 %v440, %v431
  %v522 = vpack.c.b16 %v441, %v432
  %v523 = vpack.c.b16 %v451, %v442
  %v524 = vpack.c.b16 %v452, %v443
  %v525 = vpack.c.b16 %v453, %v444
  %v526 = vpack.c.b16 %v454, %v445
  %v527 = vpack.c.b16 %v455, %v446
  %v528 = vpack.c.b16 %v456, %v447
  %v529 = vpack.c.b16 %v457, %v448
  %v530 = vpack.c.b16 %v458, %v449
  %v531 = vpack.c.b16 %v459, %v450
  %v748 = vunpack.c.l.b16 %v92
  %v749 = vunpack.c.l.b16 %v93
  %v750 = vunpack.c.l.b16 %v94
  %v751 = vunpack.c.l.b16 %v95
  %v752 = vunpack.c.l.b16 %v96
  %v753 = vunpack.c.l.b16 %v97
  %v754 = vunpack.c.l.b16 %v98
  %v755 = vunpack.c.l.b16 %v99
  %v756 = vunpack.c.l.b16 %v100
  %v757 = vunpack.c.l.b16 %v101
  %v758 = vunpack.c.l.b16 %v102
  %v759 = vunpack.c.l.b16 %v103
  %v760 = vunpack.c.l.b16 %v104
  %v761 = vunpack.c.l.b16 %v105
  %v762 = vunpack.c.l.b16 %v106
  %v763 = vunpack.c.l.b16 %v107
  %v764 = vunpack.c.l.b16 %v108
  %v765 = vunpack.c.l.b16 %v109
  %v766 = vunpack.c.l.b16 %v110
  %v767 = vunpack.c.l.b16 %v111
  %v768 = vunpack.c.l.b16 %v112
  %v769 = vunpack.c.l.b16 %v113
  %v770 = vunpack.c.l.b16 %v114
  %v771 = vunpack.c.l.b16 %v115
  %v772 = vunpack.c.l.b16 %v116
  %v773 = vunpack.c.l.b16 %v117
  %v774 = vunpack.c.l.b16 %v118
  %v775 = vunpack.c.l.b16 %v119
  %v776 = vunpack.c.l.b16 %v120
  %v777 = vunpack.c.l.b16 %v121
  %v778 = vunpack.c.l.b16 %v122
  %v779 = vunpack.c.l.b16 %v123
  %v780 = vunpack.c.l.b16 %v124
  %v781 = vunpack.c.l.b16 %v125
  %v782 = vunpack.c.l.b16 %v126
  %v783 = vunpack.c.l.b16 %v127
  %v784 = vunpack.c.l.b16 %v128
  %v785 = vunpack.c.l.b16 %v129
  %v786 = vunpack.c.l.b16 %v130
  %v787 = vunpack.c.l.b16 %v131
  %v788 = vunpack.c.l.b16 %v132
  %v789 = vunpack.c.l.b16 %v133
  %v790 = vunpack.c.l.b16 %v134
  %v791 = vunpack.c.l.b16 %v135
  %v792 = vunpack.c.l.b16 %v136
  %v793 = vunpack.c.l.b16 %v137
  %v794 = vunpack.c.l.b16 %v138
  %v795 = vunpack.c.l.b16 %v139
  %v796 = vunpack.c.l.b16 %v140
  %v797 = vunpack.c.l.b16 %v141
  %v798 = vunpack.c.l.b16 %v142
  %v799 = vunpack.c.l.b16 %v143
  %v800 = vunpack.c.l.b16 %v144
  %v801 = vunpack.c.l.b16 %v145
  %v802 = vunpack.c.l.b16 %v146
  %v803 = vunpack.c.l.b16 %v147
  %v804 = vunpack.c.l.b16 %v148
  %v805 = vunpack.c.l.b16 %v149
  %v806 = vunpack.c.l.b16 %v150
  %v807 = vunpack.c.l.b16 %v151
  %v808 = vunpack.c.l.b16 %v152
  %v809 = vunpack.c.l.b16 %v153
  %v810 = vunpack.c.l.b16 %v154
  %v811 = vunpack.c.l.b16 %v155
  %v812 = vunpack.c.l.b16 %v156
  %v813 = vunpack.c.l.b16 %v157
  %v814 = vunpack.c.l.b16 %v158
  %v815 = vunpack.c.l.b16 %v159
  %v816 = vunpack.c.l.b16 %v160
  %v817 = vunpack.c.l.b16 %v161
  %v818 = vunpack.c.l.b16 %v162
  %v819 = vunpack.c.l.b16 %v163
  %v820 = vunpack.c.l.b16 %v164
  %v821 = vunpack.c.l.b16 %v165
  %v822 = vunpack.c.l.b16 %v166
  %v823 = vunpack.c.l.b16 %v167
  %v824 = vunpack.c.l.b16 %v168
  %v825 = vunpack.c.l.b16 %v169
  %v826 = vunpack.c.l.b16 %v170
  %v827 = vunpack.c.l.b16 %v171
  %v828 = vunpack.c.l.b16 %v172
  %v829 = vunpack.c.l.b16 %v173
  %v830 = vunpack.c.l.b16 %v174
  %v831 = vunpack.c.l.b16 %v175
  %v832 = vunpack.c.l.b16 %v176
  %v833 = vunpack.c.l.b16 %v177
  %v834 = vunpack.c.l.b16 %v178
  %v835 = vunpack.c.l.b16 %v179
  %v836 = vunpack.c.l.b16 %v180
  %v837 = vunpack.c.l.b16 %v181
  %v838 = vunpack.c.l.b16 %v182
  %v839 = vunpack.c.l.b16 %v183
  %v840 = vunpack.c.l.b16 %v184
  %v841 = vunpack.c.l.b16 %v185
  %v842 = vunpack.c.l.b16 %v186
  %v843 = vunpack.c.l.b16 %v187
  %v844 = vunpack.c.l.b16 %v188
  %v845 = vunpack.c.l.b16 %v189
  %v846 = vunpack.c.l.b16 %v190
  %v847 = vunpack.c.l.b16 %v191
  %v848 = vunpack.c.l.b16 %v192
  %v849 = vunpack.c.l.b16 %v193
  %v850 = vunpack.c.l.b16 %v194
  %v851 = vunpack.c.l.b16 %v195
  %v852 = vunpack.c.l.b16 %v196
  %v853 = vunpack.c.l.b16 %v197
  %v854 = vunpack.c.l.b16 %v198
  %v855 = vunpack.c.l.b16 %v199
  %v856 = vunpack.c.l.b16 %v200
  %v857 = vunpack.c.l.b16 %v201
  %v858 = vunpack.c.l.b16 %v202
  %v859 = vunpack.c.l.b16 %v203
  %v860 = vunpack.c.l.b16 %v204
  %v861 = vunpack.c.l.b16 %v205
  %v862 = vunpack.c.l.b16 %v206
  %v863 = vunpack.c.l.b16 %v207
  %v864 = vunpack.c.l.b16 %v208
  %v865 = vunpack.c.l.b16 %v209
  %v866 = vunpack.c.l.b16 %v210
  %v867 = vunpack.c.l.b16 %v211
  %v868 = vunpack.c.l.b16 %v212
  %v869 = vunpack.c.l.b16 %v213
  %v870 = vunpack.c.l.b16 %v214
  %v871 = vunpack.c.l.b16 %v215
  %v872 = vunpack.c.l.b16 %v216
  %v873 = vunpack.c.l.b16 %v217
  %v874 = vunpack.c.l.b16 %v218
  %v875 = vunpack.c.l.b16 %v219
  %v876 = vunpack.c.l.b16 %v220
  %v877 = vunpack.c.l.b16 %v221
  %v878 = vunpack.c.l.b16 %v222
  %v879 = vunpack.c.l.b16 %v223
  %v880 = vunpack.c.l.b16 %v224
  %v881 = vunpack.c.l.b16 %v225
  %v882 = vunpack.c.l.b16 %v226
  %v883 = vunpack.c.l.b16 %v227
  %v884 = vunpack.c.l.b16 %v228
  %v885 = vunpack.c.l.b16 %v229
  %v886 = vunpack.c.l.b16 %v230
  %v887 = vunpack.c.l.b16 %v231
  %v888 = vunpack.c.l.b16 %v232
  %v889 = vunpack.c.l.b16 %v233
  %v890 = vunpack.c.l.b16 %v234
  %v891 = vunpack.c.l.b16 %v235
  %v892 = vpack.c.b16 %v749, %v748
  %v893 = vpack.c.b16 %v751, %v750
  %v894 = vpack.c.b16 %v753, %v752
  %v895 = vpack.c.b16 %v755, %v754
  %v896 = vpack.c.b16 %v757, %v756
  %v897 = vpack.c.b16 %v759, %v758
  %v898 = vpack.c.b16 %v761, %v760
  %v899 = vpack.c.b16 %v763, %v762
  %v900 = vpack.c.b16 %v765, %v764
  %v901 = vpack.c.b16 %v767, %v766
  %v902 = vpack.c.b16 %v769, %v768
  %v903 = vpack.c.b16 %v771, %v770
  %v904 = vpack.c.b16 %v773, %v772
  %v905 = vpack.c.b16 %v775, %v774
  %v906 = vpack.c.b16 %v777, %v776
  %v907 = vpack.c.b16 %v779, %v778
  %v908 = vpack.c.b16 %v781, %v780
  %v909 = vpack.c.b16 %v783, %v782
  %v910 = vpack.c.b16 %v785, %v784
  %v911 = vpack.c.b16 %v787, %v786
  %v912 = vpack.c.b16 %v789, %v788
  %v913 = vpack.c.b16 %v791, %v790
  %v914 = vpack.c.b16 %v793, %v792
  %v915 = vpack.c.b16 %v795, %v794
  %v916 = vpack.c.b16 %v797, %v796
  %v917 = vpack.c.b16 %v799, %v798
  %v918 = vpack.c.b16 %v801, %v800
  %v919 = vpack.c.b16 %v803, %v802
  %v920 = vpack.c.b16 %v805, %v804
  %v921 = vpack.c.b16 %v807, %v806
  %v922 = vpack.c.b16 %v809, %v808
  %v923 = vpack.c.b16 %v811, %v810
  %v924 = vpack.c.b16 %v813, %v812
  %v925 = vpack.c.b16 %v815, %v814
  %v926 = vpack.c.b16 %v817, %v816
  %v927 = vpack.c.b16 %v819, %v818
  %v928 = vpack.c.b16 %v821, %v820
  %v929 = vpack.c.b16 %v823, %v822
  %v930 = vpack.c.b16 %v825, %v824
  %v931 = vpack.c.b16 %v827, %v826
  %v932 = vpack.c.b16 %v829, %v828
  %v933 = vpack.c.b16 %v831, %v830
  %v934 = vpack.c.b16 %v833, %v832
  %v935 = vpack.c.b16 %v835, %v834
  %v936 = vpack.c.b16 %v837, %v836
  %v937 = vpack.c.b16 %v839, %v838
  %v938 = vpack.c.b16 %v841, %v840
  %v939 = vpack.c.b16 %v843, %v842
  %v940 = vpack.c.b16 %v845, %v844
  %v941 = vpack.c.b16 %v847, %v846
  %v942 = vpack.c.b16 %v849, %v848
  %v943 = vpack.c.b16 %v851, %v850
  %v944 = vpack.c.b16 %v853, %v852
  %v945 = vpack.c.b16 %v855, %v854
  %v946 = vpack.c.b16 %v857, %v856
  %v947 = vpack.c.b16 %v859, %v858
  %v948 = vpack.c.b16 %v861, %v860
  %v949 = vpack.c.b16 %v863, %v862
  %v950 = vpack.c.b16 %v865, %v864
  %v951 = vpack.c.b16 %v867, %v866
  %v952 = vpack.c.b16 %v869, %v868
  %v953 = vpack.c.b16 %v871, %v870
  %v954 = vpack.c.b16 %v873, %v872
  %v955 = vpack.c.b16 %v875, %v874
  %v956 = vpack.c.b16 %v877, %v876
  %v957 = vpack.c.b16 %v879, %v878
  %v958 = vpack.c.b16 %v881, %v880
  %v959 = vpack.c.b16 %v883, %v882
  %v960 = vpack.c.b16 %v885, %v884
  %v961 = vpack.c.b16 %v887, %v886
  %v962 = vpack.c.b16 %v889, %v888
  %v963 = vpack.c.b16 %v891, %v890
  %1036 = vmatprep.subr.bf16.mxu0 0
  %1037 = vmatpush1.bf16.msra.mxu0 %v892
  %1038 = vmatprep.subr.bf16.mxu0 0
  %1039 = vmatpush1.bf16.msra.mxu0 %v893
  %1040 = vmatprep.subr.bf16.mxu0 0
  %1041 = vmatpush1.bf16.msra.mxu0 %v894
  %1042 = vmatprep.subr.bf16.mxu0 0
  %1043 = vmatpush1.bf16.msra.mxu0 %v895
  %1044 = vmatprep.subr.bf16.mxu0 0
  %1045 = vmatpush1.bf16.msra.mxu0 %v896
  %1046 = vmatprep.subr.bf16.mxu0 0
  %1047 = vmatpush1.bf16.msra.mxu0 %v897
  %1048 = vmatprep.subr.bf16.mxu0 0
  %1049 = vmatpush1.bf16.msra.mxu0 %v898
  %1050 = vmatprep.subr.bf16.mxu0 0
  %1051 = vmatpush1.bf16.msra.mxu0 %v899
  %1052 = vmatprep.subr.bf16.mxu0 0
  %1053 = vmatpush1.bf16.msra.mxu0 %v900
  %1054 = vmatprep.subr.bf16.mxu0 0
  %1055 = vmatpush1.bf16.msra.mxu0 %v901
  %1056 = vmatprep.subr.bf16.mxu0 0
  %1057 = vmatpush1.bf16.msra.mxu0 %v902
  %1058 = vmatprep.subr.bf16.mxu0 0
  %1059 = vmatpush1.bf16.msra.mxu0 %v903
  %1060 = vmatprep.subr.bf16.mxu0 0
  %1061 = vmatpush1.bf16.msra.mxu0 %v904
  %1062 = vmatprep.subr.bf16.mxu0 0
  %1063 = vmatpush1.bf16.msra.mxu0 %v905
  %1064 = vmatprep.subr.bf16.mxu0 0
  %1065 = vmatpush1.bf16.msra.mxu0 %v906
  %1066 = vmatprep.subr.bf16.mxu0 0
  %1067 = vmatpush1.bf16.msra.mxu0 %v907
  %1068 = vmatprep.mubr.bf16.mxu0 %v461
  %1069 = vmatmul.mubr.bf16.gmra.mrb[0].mxu0 %v460
  %v1070 = vpop.f32.mrb[0].mxu0
  %v1071 = vadd.f32 0.0, %v1070
  %v1072 = vpop.f32.mrb[0].mxu0
  %v1073 = vpop.f32.mrb[0].mxu0
  %v1074 = vadd.f32 0.0, %v1073
  %v1075 = vpop.f32.mrb[0].mxu0
  %1076 = vmatprep.mubr.bf16.mxu0 %v470
  %1077 = vmatmul.mubr.bf16.gmra.mrb[0].mxu0 %v469
  %v1078 = vpop.f32.mrb[0].mxu0
  %v1079 = vadd.f32 0.0, %v1078
  %v1080 = vpop.f32.mrb[0].mxu0
  %v1081 = vpop.f32.mrb[0].mxu0
  %v1082 = vadd.f32 0.0, %v1081
  %v1083 = vpop.f32.mrb[0].mxu0
  %1084 = vmatprep.mubr.bf16.mxu0 %v479
  %1085 = vmatmul.mubr.bf16.gmra.mrb[0].mxu0 %v478
  %v1086 = vpop.f32.mrb[0].mxu0
  %v1087 = vadd.f32 0.0, %v1086
  %v1088 = vpop.f32.mrb[0].mxu0
  %v1089 = vpop.f32.mrb[0].mxu0
  %v1090 = vadd.f32 0.0, %v1089
  %v1091 = vpop.f32.mrb[0].mxu0
  %1092 = vmatprep.mubr.bf16.mxu0 %v488
  %1093 = vmatmul.mubr.bf16.gmra.mrb[0].mxu0 %v487
  %v1094 = vpop.f32.mrb[0].mxu0
  %v1095 = vadd.f32 0.0, %v1094
  %v1096 = vpop.f32.mrb[0].mxu0
  %v1097 = vpop.f32.mrb[0].mxu0
  %v1098 = vadd.f32 0.0, %v1097
  %v1099 = vpop.f32.mrb[0].mxu0
  %1100 = vmatprep.mubr.bf16.mxu0 %v497
  %1101 = vmatmul.mubr.bf16.gmra.mrb[0].mxu0 %v496
  %v1102 = vpop.f32.mrb[0].mxu0
  %v1103 = vadd.f32 0.0, %v1102
  %v1104 = vpop.f32.mrb[0].mxu0
  %v1105 = vpop.f32.mrb[0].mxu0
  %v1106 = vadd.f32 0.0, %v1105
  %v1107 = vpop.f32.mrb[0].mxu0
  %1108 = vmatprep.mubr.bf16.mxu0 %v506
  %1109 = vmatmul.mubr.bf16.gmra.mrb[0].mxu0 %v505
  %v1110 = vpop.f32.mrb[0].mxu0
  %v1111 = vadd.f32 0.0, %v1110
  %v1112 = vpop.f32.mrb[0].mxu0
  %v1113 = vpop.f32.mrb[0].mxu0
  %v1114 = vadd.f32 0.0, %v1113
  %v1115 = vpop.f32.mrb[0].mxu0
  %1116 = vmatprep.mubr.bf16.mxu0 %v515
  %1117 = vmatmul.mubr.bf16.gmra.mrb[0].mxu0 %v514
  %v1118 = vpop.f32.mrb[0].mxu0
  %v1119 = vadd.f32 0.0, %v1118
  %v1120 = vpop.f32.mrb[0].mxu0
  %v1121 = vpop.f32.mrb[0].mxu0
  %v1122 = vadd.f32 0.0, %v1121
  %v1123 = vpop.f32.mrb[0].mxu0
  %1124 = vmatprep.mubr.bf16.mxu0 %v524
  %1125 = vmatmul.mubr.bf16.gmra.mrb[0].mxu0 %v523
  %v1126 = vpop.f32.mrb[0].mxu0
  %v1127 = vadd.f32 0.0, %v1126
  %v1128 = vpop.f32.mrb[0].mxu0
  %v1129 = vpop.f32.mrb[0].mxu0
  %v1130 = vadd.f32 0.0, %v1129
  %v1131 = vpop.f32.mrb[0].mxu0
  %1132 = vdwg.mxu0
  %1133 = vmatprep.subr.bf16.mxu0 0
  %1134 = vmatpush1.bf16.msra.mxu0 %v908
  %1135 = vmatprep.subr.bf16.mxu0 0
  %1136 = vmatpush1.bf16.msra.mxu0 %v909
  %1137 = vmatprep.subr.bf16.mxu0 0
  %1138 = vmatpush1.bf16.msra.mxu0 %v910
  %1139 = vmatprep.subr.bf16.mxu0 0
  %1140 = vmatpush1.bf16.msra.mxu0 %v911
  %1141 = vmatprep.subr.bf16.mxu0 0
  %1142 = vmatpush1.bf16.msra.mxu0 %v912
  %1143 = vmatprep.subr.bf16.mxu0 0
  %1144 = vmatpush1.bf16.msra.mxu0 %v913
  %1145 = vmatprep.subr.bf16.mxu0 0
  %1146 = vmatpush1.bf16.msra.mxu0 %v914
  %1147 = vmatprep.subr.bf16.mxu0 0
  %1148 = vmatpush1.bf16.msra.mxu0 %v915
  %1149 = vmatprep.subr.bf16.mxu0 0
  %1150 = vmatpush1.bf16.msra.mxu0 %v916
  %1151 = vmatprep.subr.bf16.mxu0 0
  %1152 = vmatpush1.bf16.msra.mxu0 %v917
  %1153 = vmatprep.subr.bf16.mxu0 0
  %1154 = vmatpush1.bf16.msra.mxu0 %v918
  %1155 = vmatprep.subr.bf16.mxu0 0
  %1156 = vmatpush1.bf16.msra.mxu0 %v919
  %1157 = vmatprep.subr.bf16.mxu0 0
  %1158 = vmatpush1.bf16.msra.mxu0 %v920
  %1159 = vmatprep.subr.bf16.mxu0 0
  %1160 = vmatpush1.bf16.msra.mxu0 %v921
  %1161 = vmatprep.subr.bf16.mxu0 0
  %1162 = vmatpush1.bf16.msra.mxu0 %v922
  %1163 = vmatprep.subr.bf16.mxu0 0
  %1164 = vmatpush1.bf16.msra.mxu0 %v923
  %1165 = vmatprep.mubr.bf16.mxu0 %v463
  %1166 = vmatmul.mubr.bf16.gmra.mrb[0].mxu0 %v462
  %v1167 = vpop.f32.mrb[0].mxu0
  %v1168 = vadd.f32 %v1071, %v1167
  %v1169 = vpop.f32.mrb[0].mxu0
  %v1170 = vpop.f32.mrb[0].mxu0
  %v1171 = vadd.f32 %v1074, %v1170
  %v1172 = vpop.f32.mrb[0].mxu0
  %1173 = vmatprep.mubr.bf16.mxu0 %v472
  %1174 = vmatmul.mubr.bf16.gmra.mrb[0].mxu0 %v471
  %v1175 = vpop.f32.mrb[0].mxu0
  %v1176 = vadd.f32 %v1079, %v1175
  %v1177 = vpop.f32.mrb[0].mxu0
  %v1178 = vpop.f32.mrb[0].mxu0
  %v1179 = vadd.f32 %v1082, %v1178
  %v1180 = vpop.f32.mrb[0].mxu0
  %1181 = vmatprep.mubr.bf16.mxu0 %v481
  %1182 = vmatmul.mubr.bf16.gmra.mrb[0].mxu0 %v480
  %v1183 = vpop.f32.mrb[0].mxu0
  %v1184 = vadd.f32 %v1087, %v1183
  %v1185 = vpop.f32.mrb[0].mxu0
  %v1186 = vpop.f32.mrb[0].mxu0
  %v1187 = vadd.f32 %v1090, %v1186
  %v1188 = vpop.f32.mrb[0].mxu0
  %1189 = vmatprep.mubr.bf16.mxu0 %v490
  %1190 = vmatmul.mubr.bf16.gmra.mrb[0].mxu0 %v489
  %v1191 = vpop.f32.mrb[0].mxu0
  %v1192 = vadd.f32 %v1095, %v1191
  %v1193 = vpop.f32.mrb[0].mxu0
  %v1194 = vpop.f32.mrb[0].mxu0
  %v1195 = vadd.f32 %v1098, %v1194
  %v1196 = vpop.f32.mrb[0].mxu0
  %1197 = vmatprep.mubr.bf16.mxu0 %v499
  %1198 = vmatmul.mubr.bf16.gmra.mrb[0].mxu0 %v498
  %v1199 = vpop.f32.mrb[0].mxu0
  %v1200 = vadd.f32 %v1103, %v1199
  %v1201 = vpop.f32.mrb[0].mxu0
  %v1202 = vpop.f32.mrb[0].mxu0
  %v1203 = vadd.f32 %v1106, %v1202
  %v1204 = vpop.f32.mrb[0].mxu0
  %1205 = vmatprep.mubr.bf16.mxu0 %v508
  %1206 = vmatmul.mubr.bf16.gmra.mrb[0].mxu0 %v507
  %v1207 = vpop.f32.mrb[0].mxu0
  %v1208 = vadd.f32 %v1111, %v1207
  %v1209 = vpop.f32.mrb[0].mxu0
  %v1210 = vpop.f32.mrb[0].mxu0
  %v1211 = vadd.f32 %v1114, %v1210
  %v1212 = vpop.f32.mrb[0].mxu0
  %1213 = vmatprep.mubr.bf16.mxu0 %v517
  %1214 = vmatmul.mubr.bf16.gmra.mrb[0].mxu0 %v516
  %v1215 = vpop.f32.mrb[0].mxu0
  %v1216 = vadd.f32 %v1119, %v1215
  %v1217 = vpop.f32.mrb[0].mxu0
  %v1218 = vpop.f32.mrb[0].mxu0
  %v1219 = vadd.f32 %v1122, %v1218
  %v1220 = vpop.f32.mrb[0].mxu0
  %1221 = vmatprep.mubr.bf16.mxu0 %v526
  %1222 = vmatmul.mubr.bf16.gmra.mrb[0].mxu0 %v525
  %v1223 = vpop.f32.mrb[0].mxu0
  %v1224 = vadd.f32 %v1127, %v1223
  %v1225 = vpop.f32.mrb[0].mxu0
  %v1226 = vpop.f32.mrb[0].mxu0
  %v1227 = vadd.f32 %v1130, %v1226
  %v1228 = vpop.f32.mrb[0].mxu0
  %1229 = vdwg.mxu0
  %1230 = vmatprep.subr.bf16.mxu0 0
  %1231 = vmatpush1.bf16.msra.mxu0 %v924
  %1232 = vmatprep.subr.bf16.mxu0 0
  %1233 = vmatpush1.bf16.msra.mxu0 %v925
  %1234 = vmatprep.subr.bf16.mxu0 0
  %1235 = vmatpush1.bf16.msra.mxu0 %v926
  %1236 = vmatprep.subr.bf16.mxu0 0
  %1237 = vmatpush1.bf16.msra.mxu0 %v927
  %1238 = vmatprep.subr.bf16.mxu0 0
  %1239 = vmatpush1.bf16.msra.mxu0 %v928
  %1240 = vmatprep.subr.bf16.mxu0 0
  %1241 = vmatpush1.bf16.msra.mxu0 %v929
  %1242 = vmatprep.subr.bf16.mxu0 0
  %1243 = vmatpush1.bf16.msra.mxu0 %v930
  %1244 = vmatprep.subr.bf16.mxu0 0
  %1245 = vmatpush1.bf16.msra.mxu0 %v931
  %1246 = vmatprep.subr.bf16.mxu0 0
  %1247 = vmatpush1.bf16.msra.mxu0 %v932
  %1248 = vmatprep.subr.bf16.mxu0 0
  %1249 = vmatpush1.bf16.msra.mxu0 %v933
  %1250 = vmatprep.subr.bf16.mxu0 0
  %1251 = vmatpush1.bf16.msra.mxu0 %v934
  %1252 = vmatprep.subr.bf16.mxu0 0
  %1253 = vmatpush1.bf16.msra.mxu0 %v935
  %1254 = vmatprep.subr.bf16.mxu0 0
  %1255 = vmatpush1.bf16.msra.mxu0 %v936
  %1256 = vmatprep.subr.bf16.mxu0 0
  %1257 = vmatpush1.bf16.msra.mxu0 %v937
  %1258 = vmatprep.subr.bf16.mxu0 0
  %1259 = vmatpush1.bf16.msra.mxu0 %v938
  %1260 = vmatprep.subr.bf16.mxu0 0
  %1261 = vmatpush1.bf16.msra.mxu0 %v939
  %1262 = vmatprep.mubr.bf16.mxu0 %v465
  %1263 = vmatmul.mubr.bf16.gmra.mrb[0].mxu0 %v464
  %v1264 = vpop.f32.mrb[0].mxu0
  %v1265 = vadd.f32 %v1168, %v1264
  %v1266 = vpop.f32.mrb[0].mxu0
  %v1267 = vpop.f32.mrb[0].mxu0
  %v1268 = vadd.f32 %v1171, %v1267
  %v1269 = vpop.f32.mrb[0].mxu0
  %1270 = vmatprep.mubr.bf16.mxu0 %v474
  %1271 = vmatmul.mubr.bf16.gmra.mrb[0].mxu0 %v473
  %v1272 = vpop.f32.mrb[0].mxu0
  %v1273 = vadd.f32 %v1176, %v1272
  %v1274 = vpop.f32.mrb[0].mxu0
  %v1275 = vpop.f32.mrb[0].mxu0
  %v1276 = vadd.f32 %v1179, %v1275
  %v1277 = vpop.f32.mrb[0].mxu0
  %1278 = vmatprep.mubr.bf16.mxu0 %v483
  %1279 = vmatmul.mubr.bf16.gmra.mrb[0].mxu0 %v482
  %v1280 = vpop.f32.mrb[0].mxu0
  %v1281 = vadd.f32 %v1184, %v1280
  %v1282 = vpop.f32.mrb[0].mxu0
  %v1283 = vpop.f32.mrb[0].mxu0
  %v1284 = vadd.f32 %v1187, %v1283
  %v1285 = vpop.f32.mrb[0].mxu0
  %1286 = vmatprep.mubr.bf16.mxu0 %v492
  %1287 = vmatmul.mubr.bf16.gmra.mrb[0].mxu0 %v491
  %v1288 = vpop.f32.mrb[0].mxu0
  %v1289 = vadd.f32 %v1192, %v1288
  %v1290 = vpop.f32.mrb[0].mxu0
  %v1291 = vpop.f32.mrb[0].mxu0
  %v1292 = vadd.f32 %v1195, %v1291
  %v1293 = vpop.f32.mrb[0].mxu0
  %1294 = vmatprep.mubr.bf16.mxu0 %v501
  %1295 = vmatmul.mubr.bf16.gmra.mrb[0].mxu0 %v500
  %v1296 = vpop.f32.mrb[0].mxu0
  %v1297 = vadd.f32 %v1200, %v1296
  %v1298 = vpop.f32.mrb[0].mxu0
  %v1299 = vpop.f32.mrb[0].mxu0
  %v1300 = vadd.f32 %v1203, %v1299
  %v1301 = vpop.f32.mrb[0].mxu0
  %1302 = vmatprep.mubr.bf16.mxu0 %v510
  %1303 = vmatmul.mubr.bf16.gmra.mrb[0].mxu0 %v509
  %v1304 = vpop.f32.mrb[0].mxu0
  %v1305 = vadd.f32 %v1208, %v1304
  %v1306 = vpop.f32.mrb[0].mxu0
  %v1307 = vpop.f32.mrb[0].mxu0
  %v1308 = vadd.f32 %v1211, %v1307
  %v1309 = vpop.f32.mrb[0].mxu0
  %1310 = vmatprep.mubr.bf16.mxu0 %v519
  %1311 = vmatmul.mubr.bf16.gmra.mrb[0].mxu0 %v518
  %v1312 = vpop.f32.mrb[0].mxu0
  %v1313 = vadd.f32 %v1216, %v1312
  %v1314 = vpop.f32.mrb[0].mxu0
  %v1315 = vpop.f32.mrb[0].mxu0
  %v1316 = vadd.f32 %v1219, %v1315
  %v1317 = vpop.f32.mrb[0].mxu0
  %1318 = vmatprep.mubr.bf16.mxu0 %v528
  %1319 = vmatmul.mubr.bf16.gmra.mrb[0].mxu0 %v527
  %v1320 = vpop.f32.mrb[0].mxu0
  %v1321 = vadd.f32 %v1224, %v1320
  %v1322 = vpop.f32.mrb[0].mxu0
  %v1323 = vpop.f32.mrb[0].mxu0
  %v1324 = vadd.f32 %v1227, %v1323
  %v1325 = vpop.f32.mrb[0].mxu0
  %1326 = vdwg.mxu0
  %1327 = vmatprep.subr.bf16.mxu0 0
  %1328 = vmatpush1.bf16.msra.mxu0 %v940
  %1329 = vmatprep.subr.bf16.mxu0 0
  %1330 = vmatpush1.bf16.msra.mxu0 %v941
  %1331 = vmatprep.subr.bf16.mxu0 0
  %1332 = vmatpush1.bf16.msra.mxu0 %v942
  %1333 = vmatprep.subr.bf16.mxu0 0
  %1334 = vmatpush1.bf16.msra.mxu0 %v943
  %1335 = vmatprep.subr.bf16.mxu0 0
  %1336 = vmatpush1.bf16.msra.mxu0 %v944
  %1337 = vmatprep.subr.bf16.mxu0 0
  %1338 = vmatpush1.bf16.msra.mxu0 %v945
  %1339 = vmatprep.subr.bf16.mxu0 0
  %1340 = vmatpush1.bf16.msra.mxu0 %v946
  %1341 = vmatprep.subr.bf16.mxu0 0
  %1342 = vmatpush1.bf16.msra.mxu0 %v947
  %1343 = vmatprep.subr.bf16.mxu0 0
  %1344 = vmatpush1.bf16.msra.mxu0 %v948
  %1345 = vmatprep.subr.bf16.mxu0 0
  %1346 = vmatpush1.bf16.msra.mxu0 %v949
  %1347 = vmatprep.subr.bf16.mxu0 0
  %1348 = vmatpush1.bf16.msra.mxu0 %v950
  %1349 = vmatprep.subr.bf16.mxu0 0
  %1350 = vmatpush1.bf16.msra.mxu0 %v951
  %1351 = vmatprep.subr.bf16.mxu0 0
  %1352 = vmatpush1.bf16.msra.mxu0 %v952
  %1353 = vmatprep.subr.bf16.mxu0 0
  %1354 = vmatpush1.bf16.msra.mxu0 %v953
  %1355 = vmatprep.subr.bf16.mxu0 0
  %1356 = vmatpush1.bf16.msra.mxu0 %v954
  %1357 = vmatprep.subr.bf16.mxu0 0
  %1358 = vmatpush1.bf16.msra.mxu0 %v955
  %1359 = vmatprep.mubr.bf16.mxu0 %v467
  %1360 = vmatmul.mubr.bf16.gmra.mrb[0].mxu0 %v466
  %v1361 = vpop.f32.mrb[0].mxu0
  %v1362 = vadd.f32 %v1265, %v1361
  %v1363 = vpop.f32.mrb[0].mxu0
  %v1364 = vpop.f32.mrb[0].mxu0
  %v1365 = vadd.f32 %v1268, %v1364
  %v1366 = vpop.f32.mrb[0].mxu0
  %1367 = vmatprep.mubr.bf16.mxu0 %v476
  %1368 = vmatmul.mubr.bf16.gmra.mrb[0].mxu0 %v475
  %v1369 = vpop.f32.mrb[0].mxu0
  %v1370 = vadd.f32 %v1273, %v1369
  %v1371 = vpop.f32.mrb[0].mxu0
  %v1372 = vpop.f32.mrb[0].mxu0
  %v1373 = vadd.f32 %v1276, %v1372
  %v1374 = vpop.f32.mrb[0].mxu0
  %1375 = vmatprep.mubr.bf16.mxu0 %v485
  %1376 = vmatmul.mubr.bf16.gmra.mrb[0].mxu0 %v484
  %v1377 = vpop.f32.mrb[0].mxu0
  %v1378 = vadd.f32 %v1281, %v1377
  %v1379 = vpop.f32.mrb[0].mxu0
  %v1380 = vpop.f32.mrb[0].mxu0
  %v1381 = vadd.f32 %v1284, %v1380
  %v1382 = vpop.f32.mrb[0].mxu0
  %1383 = vmatprep.mubr.bf16.mxu0 %v494
  %1384 = vmatmul.mubr.bf16.gmra.mrb[0].mxu0 %v493
  %v1385 = vpop.f32.mrb[0].mxu0
  %v1386 = vadd.f32 %v1289, %v1385
  %v1387 = vpop.f32.mrb[0].mxu0
  %v1388 = vpop.f32.mrb[0].mxu0
  %v1389 = vadd.f32 %v1292, %v1388
  %v1390 = vpop.f32.mrb[0].mxu0
  %1391 = vmatprep.mubr.bf16.mxu0 %v503
  %1392 = vmatmul.mubr.bf16.gmra.mrb[0].mxu0 %v502
  %v1393 = vpop.f32.mrb[0].mxu0
  %v1394 = vadd.f32 %v1297, %v1393
  %v1395 = vpop.f32.mrb[0].mxu0
  %v1396 = vpop.f32.mrb[0].mxu0
  %v1397 = vadd.f32 %v1300, %v1396
  %v1398 = vpop.f32.mrb[0].mxu0
  %1399 = vmatprep.mubr.bf16.mxu0 %v512
  %1400 = vmatmul.mubr.bf16.gmra.mrb[0].mxu0 %v511
  %v1401 = vpop.f32.mrb[0].mxu0
  %v1402 = vadd.f32 %v1305, %v1401
  %v1403 = vpop.f32.mrb[0].mxu0
  %v1404 = vpop.f32.mrb[0].mxu0
  %v1405 = vadd.f32 %v1308, %v1404
  %v1406 = vpop.f32.mrb[0].mxu0
  %1407 = vmatprep.mubr.bf16.mxu0 %v521
  %1408 = vmatmul.mubr.bf16.gmra.mrb[0].mxu0 %v520
  %v1409 = vpop.f32.mrb[0].mxu0
  %v1410 = vadd.f32 %v1313, %v1409
  %v1411 = vpop.f32.mrb[0].mxu0
  %v1412 = vpop.f32.mrb[0].mxu0
  %v1413 = vadd.f32 %v1316, %v1412
  %v1414 = vpop.f32.mrb[0].mxu0
  %1415 = vmatprep.mubr.bf16.mxu0 %v530
  %1416 = vmatmul.mubr.bf16.gmra.mrb[0].mxu0 %v529
  %v1417 = vpop.f32.mrb[0].mxu0
  %v1418 = vadd.f32 %v1321, %v1417
  %v1419 = vpop.f32.mrb[0].mxu0
  %v1420 = vpop.f32.mrb[0].mxu0
  %v1421 = vadd.f32 %v1324, %v1420
  %v1422 = vpop.f32.mrb[0].mxu0
  %1423 = vdwg.mxu0
  %1424 = vmatprep.subr.bf16.mxu0 0
  %1425 = vmatpush1.bf16.msra.mxu0 %v956
  %1426 = vmatprep.subr.bf16.mxu0 0
  %1427 = vmatpush1.bf16.msra.mxu0 %v957
  %1428 = vmatprep.subr.bf16.mxu0 0
  %1429 = vmatpush1.bf16.msra.mxu0 %v958
  %1430 = vmatprep.subr.bf16.mxu0 0
  %1431 = vmatpush1.bf16.msra.mxu0 %v959
  %1432 = vmatprep.subr.bf16.mxu0 0
  %1433 = vmatpush1.bf16.msra.mxu0 %v960
  %1434 = vmatprep.subr.bf16.mxu0 0
  %1435 = vmatpush1.bf16.msra.mxu0 %v961
  %1436 = vmatprep.subr.bf16.mxu0 0
  %1437 = vmatpush1.bf16.msra.mxu0 %v962
  %1438 = vmatprep.subr.bf16.mxu0 0
  %1439 = vmatpush1.bf16.msra.mxu0 %v963
  %1440 = vmatprep.subr.bf16.mxu0 0
  %1441 = vmatpush1.bf16.msra.mxu0 0
  %1442 = vmatprep.subr.bf16.mxu0 0
  %1443 = vmatpush1.bf16.msra.mxu0 0
  %1444 = vmatprep.subr.bf16.mxu0 0
  %1445 = vmatpush1.bf16.msra.mxu0 0
  %1446 = vmatprep.subr.bf16.mxu0 0
  %1447 = vmatpush1.bf16.msra.mxu0 0
  %1448 = vmatprep.subr.bf16.mxu0 0
  %1449 = vmatpush1.bf16.msra.mxu0 0
  %1450 = vmatprep.subr.bf16.mxu0 0
  %1451 = vmatpush1.bf16.msra.mxu0 0
  %1452 = vmatprep.subr.bf16.mxu0 0
  %1453 = vmatpush1.bf16.msra.mxu0 0
  %1454 = vmatprep.subr.bf16.mxu0 0
  %1455 = vmatpush1.bf16.msra.mxu0 0
  %1456 = vmatprep.mubr.bf16.mxu0 0
  %1457 = vmatmul.mubr.bf16.gmra.mrb[0].mxu0 %v468
  %v1458 = vpop.f32.mrb[0].mxu0
  %v1459 = vadd.f32 %v1362, %v1458
  %v1460 = vpop.f32.mrb[0].mxu0
  %v1461 = vpop.f32.mrb[0].mxu0
  %v1462 = vadd.f32 %v1365, %v1461
  %v1463 = vpop.f32.mrb[0].mxu0
  %1464 = vmatprep.mubr.bf16.mxu0 0
  %1465 = vmatmul.mubr.bf16.gmra.mrb[0].mxu0 %v477
  %v1466 = vpop.f32.mrb[0].mxu0
  %v1467 = vadd.f32 %v1370, %v1466
  %v1468 = vpop.f32.mrb[0].mxu0
  %v1469 = vpop.f32.mrb[0].mxu0
  %v1470 = vadd.f32 %v1373, %v1469
  %v1471 = vpop.f32.mrb[0].mxu0
  %1472 = vmatprep.mubr.bf16.mxu0 0
  %1473 = vmatmul.mubr.bf16.gmra.mrb[0].mxu0 %v486
  %v1474 = vpop.f32.mrb[0].mxu0
  %v1475 = vadd.f32 %v1378, %v1474
  %v1476 = vpop.f32.mrb[0].mxu0
  %v1477 = vpop.f32.mrb[0].mxu0
  %v1478 = vadd.f32 %v1381, %v1477
  %v1479 = vpop.f32.mrb[0].mxu0
  %1480 = vmatprep.mubr.bf16.mxu0 0
  %1481 = vmatmul.mubr.bf16.gmra.mrb[0].mxu0 %v495
  %v1482 = vpop.f32.mrb[0].mxu0
  %v1483 = vadd.f32 %v1386, %v1482
  %v1484 = vpop.f32.mrb[0].mxu0
  %v1485 = vpop.f32.mrb[0].mxu0
  %v1486 = vadd.f32 %v1389, %v1485
  %v1487 = vpop.f32.mrb[0].mxu0
  %1488 = vmatprep.mubr.bf16.mxu0 0
  %1489 = vmatmul.mubr.bf16.gmra.mrb[0].mxu0 %v504
  %v1490 = vpop.f32.mrb[0].mxu0
  %v1491 = vadd.f32 %v1394, %v1490
  %v1492 = vpop.f32.mrb[0].mxu0
  %v1493 = vpop.f32.mrb[0].mxu0
  %v1494 = vadd.f32 %v1397, %v1493
  %v1495 = vpop.f32.mrb[0].mxu0
  %1496 = vmatprep.mubr.bf16.mxu0 0
  %1497 = vmatmul.mubr.bf16.gmra.mrb[0].mxu0 %v513
  %v1498 = vpop.f32.mrb[0].mxu0
  %v1499 = vadd.f32 %v1402, %v1498
  %v1500 = vpop.f32.mrb[0].mxu0
  %v1501 = vpop.f32.mrb[0].mxu0
  %v1502 = vadd.f32 %v1405, %v1501
  %v1503 = vpop.f32.mrb[0].mxu0
  %1504 = vmatprep.mubr.bf16.mxu0 0
  %1505 = vmatmul.mubr.bf16.gmra.mrb[0].mxu0 %v522
  %v1506 = vpop.f32.mrb[0].mxu0
  %v1507 = vadd.f32 %v1410, %v1506
  %v1508 = vpop.f32.mrb[0].mxu0
  %v1509 = vpop.f32.mrb[0].mxu0
  %v1510 = vadd.f32 %v1413, %v1509
  %v1511 = vpop.f32.mrb[0].mxu0
  %1512 = vmatprep.mubr.bf16.mxu0 0
  %1513 = vmatmul.mubr.bf16.gmra.mrb[0].mxu0 %v531
  %v1514 = vpop.f32.mrb[0].mxu0
  %v1515 = vadd.f32 %v1418, %v1514
  %v1516 = vpop.f32.mrb[0].mxu0
  %v1517 = vpop.f32.mrb[0].mxu0
  %v1518 = vadd.f32 %v1421, %v1517
  %v1519 = vpop.f32.mrb[0].mxu0
  %1520 = vdwg.mxu0
  %1521 = vst [vmem:[%s2] sm:$0xff] %v1459
  %1522 = vst [vmem:[%s2 + $0x8] sm:$0xff] %v1462
  %1523 = vst [vmem:[%s2 + $0x10] sm:$0xff] %v1467
  %1524 = vst [vmem:[%s2 + $0x18] sm:$0xff] %v1470
  %1525 = vst [vmem:[%s2 + $0x20] sm:$0xff] %v1475
  %1526 = vst [vmem:[%s2 + $0x28] sm:$0xff] %v1478
  %1527 = vst [vmem:[%s2 + $0x30] sm:$0xff] %v1483
  %1528 = vst [vmem:[%s2 + $0x38] sm:$0xff] %v1486
  %1529 = vst [vmem:[%s2 + $0x40] sm:$0xff] %v1491
  %1530 = vst [vmem:[%s2 + $0x48] sm:$0xff] %v1494
  %1531 = vst [vmem:[%s2 + $0x50] sm:$0xff] %v1499
  %1532 = vst [vmem:[%s2 + $0x58] sm:$0xff] %v1502
  %1533 = vst [vmem:[%s2 + $0x60] sm:$0xff] %v1507
  %1534 = vst [vmem:[%s2 + $0x68] sm:$0xff] %v1510
  %1535 = vst [vmem:[%s2 + $0x70] sm:$0xff] %v1515
  %1536 = vst [vmem:[%s2 + $0x78] sm:$0xff] %v1518
  // Predicated region
  $region10: #{down_conv_forward.12} parent=0 // pred_check
    _
  $region11: #{down_conv_forward.12} parent=0 // pred_check_branch
    %1538 = sbr.rel (0) target = $region13
  $region12: #{down_conv_forward.12} parent=0 // pred_region
    _
  $region13: #{down_conv_forward.12} parent=0 // pred_fallthru
    _
  // Predicated region
  $region14: #{down_conv_forward.12} parent=0 // pred_check
    _
  $region15: #{down_conv_forward.12} parent=0 // pred_check_branch
    %1540 = sbr.rel (0) target = $region17
  $region16: #{down_conv_forward.12} parent=0 // pred_region
    _
  $region17: #{down_conv_forward.12} parent=0 // pred_fallthru
    _

// kernel: down_conv_forward.15
$region0: #{down_conv_forward.15}
  #allocation0 [shape = 'u32[]', space=smem, size = 0x4, offset = 0x4, fixed_abs, tag = 'smem constant byte address 0x4 - core index']
  #allocation1 [shape = 'u32[144,128]{1,0:T(1,128)}', space=vmem, size = 0x12000, scoped, tag = 'internal scratch']
  %s0 = inlined_call_operand.vmem [shape: bf16[32,1152], index: 0, kind: input, shape index: {}]
  %s1 = inlined_call_operand.vmem [shape: bf16[1152,128], index: 1, kind: input, shape index: {}]
  %s2 = inlined_call_operand.vmem [shape: f32[32,128], index: 2, kind: output, shape index: {}]
  %s3 = sld [smem:[#allocation0]]
  $region18: #{down_conv_forward.15} parent=0
    _
  %s5 = ssub.s32 1, %s3
  %s6 = scalar_select 0, %s5, %s3
  // Predicated region
  $region2: #{down_conv_forward.15} parent=0 // pred_check
    _
  $region3: #{down_conv_forward.15} parent=0 // pred_check_branch
    %8 = sbr.rel (0) target = $region5
  $region4: #{down_conv_forward.15} parent=0 // pred_region
    _
  $region5: #{down_conv_forward.15} parent=0 // pred_fallthru
    _
  // Predicated region
  $region6: #{down_conv_forward.15} parent=0 // pred_check
    _
  $region7: #{down_conv_forward.15} parent=0 // pred_check_branch
    %10 = sbr.rel (0) target = $region9
  $region8: #{down_conv_forward.15} parent=0 // pred_region
    _
  $region9: #{down_conv_forward.15} parent=0 // pred_fallthru
    _
  %v12 = vld [vmem:[%s0] sm:$0xff]
  %v13 = vld [vmem:[%s0 + $0x8] sm:$0xff]
  %v14 = vld [vmem:[%s0 + $0x10] sm:$0xff]
  %v15 = vld [vmem:[%s0 + $0x18] sm:$0xff]
  %v16 = vld [vmem:[%s0 + $0x20] sm:$0xf]
  %v17 = vld [vmem:[%s0 + $0x24] sm:$0xff]
  %v18 = vld [vmem:[%s0 + $0x2c] sm:$0xff]
  %v19 = vld [vmem:[%s0 + $0x34] sm:$0xff]
  %v20 = vld [vmem:[%s0 + $0x3c] sm:$0xff]
  %v21 = vld [vmem:[%s0 + $0x44] sm:$0xf]
  %v22 = vld [vmem:[%s0 + $0x48] sm:$0xff]
  %v23 = vld [vmem:[%s0 + $0x50] sm:$0xff]
  %v24 = vld [vmem:[%s0 + $0x58] sm:$0xff]
  %v25 = vld [vmem:[%s0 + $0x60] sm:$0xff]
  %v26 = vld [vmem:[%s0 + $0x68] sm:$0xf]
  %v27 = vld [vmem:[%s0 + $0x6c] sm:$0xff]
  %v28 = vld [vmem:[%s0 + $0x74] sm:$0xff]
  %v29 = vld [vmem:[%s0 + $0x7c] sm:$0xff]
  %v30 = vld [vmem:[%s0 + $0x84] sm:$0xff]
  %v31 = vld [vmem:[%s0 + $0x8c] sm:$0xf]
  %v32 = vld [vmem:[%s1] sm:$0xf]
  %v33 = vld [vmem:[%s1 + $0x4] sm:$0xf]
  %v34 = vld [vmem:[%s1 + $0x8] sm:$0xf]
  %v35 = vld [vmem:[%s1 + $0xc] sm:$0xf]
  %v36 = vld [vmem:[%s1 + $0x10] sm:$0xf]
  %v37 = vld [vmem:[%s1 + $0x14] sm:$0xf]
  %v38 = vld [vmem:[%s1 + $0x18] sm:$0xf]
  %v39 = vld [vmem:[%s1 + $0x1c] sm:$0xf]
  %v40 = vld [vmem:[%s1 + $0x20] sm:$0xf]
  %v41 = vld [vmem:[%s1 + $0x24] sm:$0xf]
  %v42 = vld [vmem:[%s1 + $0x28] sm:$0xf]
  %v43 = vld [vmem:[%s1 + $0x2c] sm:$0xf]
  %v44 = vld [vmem:[%s1 + $0x30] sm:$0xf]
  %v45 = vld [vmem:[%s1 + $0x34] sm:$0xf]
  %v46 = vld [vmem:[%s1 + $0x38] sm:$0xf]
  %v47 = vld [vmem:[%s1 + $0x3c] sm:$0xf]
  %v48 = vld [vmem:[%s1 + $0x40] sm:$0xf]
  %v49 = vld [vmem:[%s1 + $0x44] sm:$0xf]
  %v50 = vld [vmem:[%s1 + $0x48] sm:$0xf]
  %v51 = vld [vmem:[%s1 + $0x4c] sm:$0xf]
  %v52 = vld [vmem:[%s1 + $0x50] sm:$0xf]
  %v53 = vld [vmem:[%s1 + $0x54] sm:$0xf]
  %v54 = vld [vmem:[%s1 + $0x58] sm:$0xf]
  %v55 = vld [vmem:[%s1 + $0x5c] sm:$0xf]
  %v56 = vld [vmem:[%s1 + $0x60] sm:$0xf]
  %v57 = vld [vmem:[%s1 + $0x64] sm:$0xf]
  %v58 = vld [vmem:[%s1 + $0x68] sm:$0xf]
  %v59 = vld [vmem:[%s1 + $0x6c] sm:$0xf]
  %v60 = vld [vmem:[%s1 + $0x70] sm:$0xf]
  %v61 = vld [vmem:[%s1 + $0x74] sm:$0xf]
  %v62 = vld [vmem:[%s1 + $0x78] sm:$0xf]
  %v63 = vld [vmem:[%s1 + $0x7c] sm:$0xf]
  %v64 = vld [vmem:[%s1 + $0x80] sm:$0xf]
  %v65 = vld [vmem:[%s1 + $0x84] sm:$0xf]
  %v66 = vld [vmem:[%s1 + $0x88] sm:$0xf]
  %v67 = vld [vmem:[%s1 + $0x8c] sm:$0xf]
  %v68 = vld [vmem:[%s1 + $0x90] sm:$0xf]
  %v69 = vld [vmem:[%s1 + $0x94] sm:$0xf]
  %v70 = vld [vmem:[%s1 + $0x98] sm:$0xf]
  %v71 = vld [vmem:[%s1 + $0x9c] sm:$0xf]
  %v72 = vld [vmem:[%s1 + $0xa0] sm:$0xf]
  %v73 = vld [vmem:[%s1 + $0xa4] sm:$0xf]
  %v74 = vld [vmem:[%s1 + $0xa8] sm:$0xf]
  %v75 = vld [vmem:[%s1 + $0xac] sm:$0xf]
  %v76 = vld [vmem:[%s1 + $0xb0] sm:$0xf]
  %v77 = vld [vmem:[%s1 + $0xb4] sm:$0xf]
  %v78 = vld [vmem:[%s1 + $0xb8] sm:$0xf]
  %v79 = vld [vmem:[%s1 + $0xbc] sm:$0xf]
  %v80 = vld [vmem:[%s1 + $0xc0] sm:$0xf]
  %v81 = vld [vmem:[%s1 + $0xc4] sm:$0xf]
  %v82 = vld [vmem:[%s1 + $0xc8] sm:$0xf]
  %v83 = vld [vmem:[%s1 + $0xcc] sm:$0xf]
  %v84 = vld [vmem:[%s1 + $0xd0] sm:$0xf]
  %v85 = vld [vmem:[%s1 + $0xd4] sm:$0xf]
  %v86 = vld [vmem:[%s1 + $0xd8] sm:$0xf]
  %v87 = vld [vmem:[%s1 + $0xdc] sm:$0xf]
  %v88 = vld [vmem:[%s1 + $0xe0] sm:$0xf]
  %v89 = vld [vmem:[%s1 + $0xe4] sm:$0xf]
  %v90 = vld [vmem:[%s1 + $0xe8] sm:$0xf]
  %v91 = vld [vmem:[%s1 + $0xec] sm:$0xf]
  %v92 = vld [vmem:[%s1 + $0xf0] sm:$0xf]
  %v93 = vld [vmem:[%s1 + $0xf4] sm:$0xf]
  %v94 = vld [vmem:[%s1 + $0xf8] sm:$0xf]
  %v95 = vld [vmem:[%s1 + $0xfc] sm:$0xf]
  %v96 = vld [vmem:[%s1 + $0x100] sm:$0xf]
  %v97 = vld [vmem:[%s1 + $0x104] sm:$0xf]
  %v98 = vld [vmem:[%s1 + $0x108] sm:$0xf]
  %v99 = vld [vmem:[%s1 + $0x10c] sm:$0xf]
  %v100 = vld [vmem:[%s1 + $0x110] sm:$0xf]
  %v101 = vld [vmem:[%s1 + $0x114] sm:$0xf]
  %v102 = vld [vmem:[%s1 + $0x118] sm:$0xf]
  %v103 = vld [vmem:[%s1 + $0x11c] sm:$0xf]
  %v104 = vld [vmem:[%s1 + $0x120] sm:$0xf]
  %v105 = vld [vmem:[%s1 + $0x124] sm:$0xf]
  %v106 = vld [vmem:[%s1 + $0x128] sm:$0xf]
  %v107 = vld [vmem:[%s1 + $0x12c] sm:$0xf]
  %v108 = vld [vmem:[%s1 + $0x130] sm:$0xf]
  %v109 = vld [vmem:[%s1 + $0x134] sm:$0xf]
  %v110 = vld [vmem:[%s1 + $0x138] sm:$0xf]
  %v111 = vld [vmem:[%s1 + $0x13c] sm:$0xf]
  %v112 = vld [vmem:[%s1 + $0x140] sm:$0xf]
  %v113 = vld [vmem:[%s1 + $0x144] sm:$0xf]
  %v114 = vld [vmem:[%s1 + $0x148] sm:$0xf]
  %v115 = vld [vmem:[%s1 + $0x14c] sm:$0xf]
  %v116 = vld [vmem:[%s1 + $0x150] sm:$0xf]
  %v117 = vld [vmem:[%s1 + $0x154] sm:$0xf]
  %v118 = vld [vmem:[%s1 + $0x158] sm:$0xf]
  %v119 = vld [vmem:[%s1 + $0x15c] sm:$0xf]
  %v120 = vld [vmem:[%s1 + $0x160] sm:$0xf]
  %v121 = vld [vmem:[%s1 + $0x164] sm:$0xf]
  %v122 = vld [vmem:[%s1 + $0x168] sm:$0xf]
  %v123 = vld [vmem:[%s1 + $0x16c] sm:$0xf]
  %v124 = vld [vmem:[%s1 + $0x170] sm:$0xf]
  %v125 = vld [vmem:[%s1 + $0x174] sm:$0xf]
  %v126 = vld [vmem:[%s1 + $0x178] sm:$0xf]
  %v127 = vld [vmem:[%s1 + $0x17c] sm:$0xf]
  %v128 = vld [vmem:[%s1 + $0x180] sm:$0xf]
  %v129 = vld [vmem:[%s1 + $0x184] sm:$0xf]
  %v130 = vld [vmem:[%s1 + $0x188] sm:$0xf]
  %v131 = vld [vmem:[%s1 + $0x18c] sm:$0xf]
  %v132 = vld [vmem:[%s1 + $0x190] sm:$0xf]
  %v133 = vld [vmem:[%s1 + $0x194] sm:$0xf]
  %v134 = vld [vmem:[%s1 + $0x198] sm:$0xf]
  %v135 = vld [vmem:[%s1 + $0x19c] sm:$0xf]
  %v136 = vld [vmem:[%s1 + $0x1a0] sm:$0xf]
  %v137 = vld [vmem:[%s1 + $0x1a4] sm:$0xf]
  %v138 = vld [vmem:[%s1 + $0x1a8] sm:$0xf]
  %v139 = vld [vmem:[%s1 + $0x1ac] sm:$0xf]
  %v140 = vld [vmem:[%s1 + $0x1b0] sm:$0xf]
  %v141 = vld [vmem:[%s1 + $0x1b4] sm:$0xf]
  %v142 = vld [vmem:[%s1 + $0x1b8] sm:$0xf]
  %v143 = vld [vmem:[%s1 + $0x1bc] sm:$0xf]
  %v144 = vld [vmem:[%s1 + $0x1c0] sm:$0xf]
  %v145 = vld [vmem:[%s1 + $0x1c4] sm:$0xf]
  %v146 = vld [vmem:[%s1 + $0x1c8] sm:$0xf]
  %v147 = vld [vmem:[%s1 + $0x1cc] sm:$0xf]
  %v148 = vld [vmem:[%s1 + $0x1d0] sm:$0xf]
  %v149 = vld [vmem:[%s1 + $0x1d4] sm:$0xf]
  %v150 = vld [vmem:[%s1 + $0x1d8] sm:$0xf]
  %v151 = vld [vmem:[%s1 + $0x1dc] sm:$0xf]
  %v152 = vld [vmem:[%s1 + $0x1e0] sm:$0xf]
  %v153 = vld [vmem:[%s1 + $0x1e4] sm:$0xf]
  %v154 = vld [vmem:[%s1 + $0x1e8] sm:$0xf]
  %v155 = vld [vmem:[%s1 + $0x1ec] sm:$0xf]
  %v156 = vld [vmem:[%s1 + $0x1f0] sm:$0xf]
  %v157 = vld [vmem:[%s1 + $0x1f4] sm:$0xf]
  %v158 = vld [vmem:[%s1 + $0x1f8] sm:$0xf]
  %v159 = vld [vmem:[%s1 + $0x1fc] sm:$0xf]
  %v160 = vld [vmem:[%s1 + $0x200] sm:$0xf]
  %v161 = vld [vmem:[%s1 + $0x204] sm:$0xf]
  %v162 = vld [vmem:[%s1 + $0x208] sm:$0xf]
  %v163 = vld [vmem:[%s1 + $0x20c] sm:$0xf]
  %v164 = vld [vmem:[%s1 + $0x210] sm:$0xf]
  %v165 = vld [vmem:[%s1 + $0x214] sm:$0xf]
  %v166 = vld [vmem:[%s1 + $0x218] sm:$0xf]
  %v167 = vld [vmem:[%s1 + $0x21c] sm:$0xf]
  %v168 = vld [vmem:[%s1 + $0x220] sm:$0xf]
  %v169 = vld [vmem:[%s1 + $0x224] sm:$0xf]
  %v170 = vld [vmem:[%s1 + $0x228] sm:$0xf]
  %v171 = vld [vmem:[%s1 + $0x22c] sm:$0xf]
  %v172 = vld [vmem:[%s1 + $0x230] sm:$0xf]
  %v173 = vld [vmem:[%s1 + $0x234] sm:$0xf]
  %v174 = vld [vmem:[%s1 + $0x238] sm:$0xf]
  %v175 = vld [vmem:[%s1 + $0x23c] sm:$0xf]
  %v196 = vunpack.c.l.b16 %v12
  %v197 = vunpack.c.h.b16 %v12
  %v198 = vunpack.c.l.b16 %v13
  %v199 = vunpack.c.h.b16 %v13
  %v200 = vunpack.c.l.b16 %v14
  %v201 = vunpack.c.h.b16 %v14
  %v202 = vunpack.c.l.b16 %v15
  %v203 = vunpack.c.h.b16 %v15
  %v204 = vunpack.c.l.b16 %v16
  %v205 = vunpack.c.l.b16 %v17
  %v206 = vunpack.c.h.b16 %v17
  %v207 = vunpack.c.l.b16 %v18
  %v208 = vunpack.c.h.b16 %v18
  %v209 = vunpack.c.l.b16 %v19
  %v210 = vunpack.c.h.b16 %v19
  %v211 = vunpack.c.l.b16 %v20
  %v212 = vunpack.c.h.b16 %v20
  %v213 = vunpack.c.l.b16 %v21
  %v214 = vunpack.c.l.b16 %v22
  %v215 = vunpack.c.h.b16 %v22
  %v216 = vunpack.c.l.b16 %v23
  %v217 = vunpack.c.h.b16 %v23
  %v218 = vunpack.c.l.b16 %v24
  %v219 = vunpack.c.h.b16 %v24
  %v220 = vunpack.c.l.b16 %v25
  %v221 = vunpack.c.h.b16 %v25
  %v222 = vunpack.c.l.b16 %v26
  %v223 = vunpack.c.l.b16 %v27
  %v224 = vunpack.c.h.b16 %v27
  %v225 = vunpack.c.l.b16 %v28
  %v226 = vunpack.c.h.b16 %v28
  %v227 = vunpack.c.l.b16 %v29
  %v228 = vunpack.c.h.b16 %v29
  %v229 = vunpack.c.l.b16 %v30
  %v230 = vunpack.c.h.b16 %v30
  %v231 = vunpack.c.l.b16 %v31
  %v232 = vpack.c.b16 %v205, %v196
  %v233 = vpack.c.b16 %v206, %v197
  %v234 = vpack.c.b16 %v207, %v198
  %v235 = vpack.c.b16 %v208, %v199
  %v236 = vpack.c.b16 %v209, %v200
  %v237 = vpack.c.b16 %v210, %v201
  %v238 = vpack.c.b16 %v211, %v202
  %v239 = vpack.c.b16 %v212, %v203
  %v240 = vpack.c.b16 %v213, %v204
  %v241 = vpack.c.b16 %v223, %v214
  %v242 = vpack.c.b16 %v224, %v215
  %v243 = vpack.c.b16 %v225, %v216
  %v244 = vpack.c.b16 %v226, %v217
  %v245 = vpack.c.b16 %v227, %v218
  %v246 = vpack.c.b16 %v228, %v219
  %v247 = vpack.c.b16 %v229, %v220
  %v248 = vpack.c.b16 %v230, %v221
  %v249 = vpack.c.b16 %v231, %v222
  %v412 = vunpack.c.l.b16 %v32
  %v413 = vunpack.c.l.b16 %v33
  %v414 = vunpack.c.l.b16 %v34
  %v415 = vunpack.c.l.b16 %v35
  %v416 = vunpack.c.l.b16 %v36
  %v417 = vunpack.c.l.b16 %v37
  %v418 = vunpack.c.l.b16 %v38
  %v419 = vunpack.c.l.b16 %v39
  %v420 = vunpack.c.l.b16 %v40
  %v421 = vunpack.c.l.b16 %v41
  %v422 = vunpack.c.l.b16 %v42
  %v423 = vunpack.c.l.b16 %v43
  %v424 = vunpack.c.l.b16 %v44
  %v425 = vunpack.c.l.b16 %v45
  %v426 = vunpack.c.l.b16 %v46
  %v427 = vunpack.c.l.b16 %v47
  %v428 = vunpack.c.l.b16 %v48
  %v429 = vunpack.c.l.b16 %v49
  %v430 = vunpack.c.l.b16 %v50
  %v431 = vunpack.c.l.b16 %v51
  %v432 = vunpack.c.l.b16 %v52
  %v433 = vunpack.c.l.b16 %v53
  %v434 = vunpack.c.l.b16 %v54
  %v435 = vunpack.c.l.b16 %v55
  %v436 = vunpack.c.l.b16 %v56
  %v437 = vunpack.c.l.b16 %v57
  %v438 = vunpack.c.l.b16 %v58
  %v439 = vunpack.c.l.b16 %v59
  %v440 = vunpack.c.l.b16 %v60
  %v441 = vunpack.c.l.b16 %v61
  %v442 = vunpack.c.l.b16 %v62
  %v443 = vunpack.c.l.b16 %v63
  %v444 = vunpack.c.l.b16 %v64
  %v445 = vunpack.c.l.b16 %v65
  %v446 = vunpack.c.l.b16 %v66
  %v447 = vunpack.c.l.b16 %v67
  %v448 = vunpack.c.l.b16 %v68
  %v449 = vunpack.c.l.b16 %v69
  %v450 = vunpack.c.l.b16 %v70
  %v451 = vunpack.c.l.b16 %v71
  %v452 = vunpack.c.l.b16 %v72
  %v453 = vunpack.c.l.b16 %v73
  %v454 = vunpack.c.l.b16 %v74
  %v455 = vunpack.c.l.b16 %v75
  %v456 = vunpack.c.l.b16 %v76
  %v457 = vunpack.c.l.b16 %v77
  %v458 = vunpack.c.l.b16 %v78
  %v459 = vunpack.c.l.b16 %v79
  %v460 = vunpack.c.l.b16 %v80
  %v461 = vunpack.c.l.b16 %v81
  %v462 = vunpack.c.l.b16 %v82
  %v463 = vunpack.c.l.b16 %v83
  %v464 = vunpack.c.l.b16 %v84
  %v465 = vunpack.c.l.b16 %v85
  %v466 = vunpack.c.l.b16 %v86
  %v467 = vunpack.c.l.b16 %v87
  %v468 = vunpack.c.l.b16 %v88
  %v469 = vunpack.c.l.b16 %v89
  %v470 = vunpack.c.l.b16 %v90
  %v471 = vunpack.c.l.b16 %v91
  %v472 = vunpack.c.l.b16 %v92
  %v473 = vunpack.c.l.b16 %v93
  %v474 = vunpack.c.l.b16 %v94
  %v475 = vunpack.c.l.b16 %v95
  %v476 = vunpack.c.l.b16 %v96
  %v477 = vunpack.c.l.b16 %v97
  %v478 = vunpack.c.l.b16 %v98
  %v479 = vunpack.c.l.b16 %v99
  %v480 = vunpack.c.l.b16 %v100
  %v481 = vunpack.c.l.b16 %v101
  %v482 = vunpack.c.l.b16 %v102
  %v483 = vunpack.c.l.b16 %v103
  %v484 = vunpack.c.l.b16 %v104
  %v485 = vunpack.c.l.b16 %v105
  %v486 = vunpack.c.l.b16 %v106
  %v487 = vunpack.c.l.b16 %v107
  %v488 = vunpack.c.l.b16 %v108
  %v489 = vunpack.c.l.b16 %v109
  %v490 = vunpack.c.l.b16 %v110
  %v491 = vunpack.c.l.b16 %v111
  %v492 = vunpack.c.l.b16 %v112
  %v493 = vunpack.c.l.b16 %v113
  %v494 = vunpack.c.l.b16 %v114
  %v495 = vunpack.c.l.b16 %v115
  %v496 = vunpack.c.l.b16 %v116
  %v497 = vunpack.c.l.b16 %v117
  %v498 = vunpack.c.l.b16 %v118
  %v499 = vunpack.c.l.b16 %v119
  %v500 = vunpack.c.l.b16 %v120
  %v501 = vunpack.c.l.b16 %v121
  %v502 = vunpack.c.l.b16 %v122
  %v503 = vunpack.c.l.b16 %v123
  %v504 = vunpack.c.l.b16 %v124
  %v505 = vunpack.c.l.b16 %v125
  %v506 = vunpack.c.l.b16 %v126
  %v507 = vunpack.c.l.b16 %v127
  %v508 = vunpack.c.l.b16 %v128
  %v509 = vunpack.c.l.b16 %v129
  %v510 = vunpack.c.l.b16 %v130
  %v511 = vunpack.c.l.b16 %v131
  %v512 = vunpack.c.l.b16 %v132
  %v513 = vunpack.c.l.b16 %v133
  %v514 = vunpack.c.l.b16 %v134
  %v515 = vunpack.c.l.b16 %v135
  %v516 = vunpack.c.l.b16 %v136
  %v517 = vunpack.c.l.b16 %v137
  %v518 = vunpack.c.l.b16 %v138
  %v519 = vunpack.c.l.b16 %v139
  %v520 = vunpack.c.l.b16 %v140
  %v521 = vunpack.c.l.b16 %v141
  %v522 = vunpack.c.l.b16 %v142
  %v523 = vunpack.c.l.b16 %v143
  %v524 = vunpack.c.l.b16 %v144
  %v525 = vunpack.c.l.b16 %v145
  %v526 = vunpack.c.l.b16 %v146
  %v527 = vunpack.c.l.b16 %v147
  %v528 = vunpack.c.l.b16 %v148
  %v529 = vunpack.c.l.b16 %v149
  %v530 = vunpack.c.l.b16 %v150
  %v531 = vunpack.c.l.b16 %v151
  %v532 = vunpack.c.l.b16 %v152
  %v533 = vunpack.c.l.b16 %v153
  %v534 = vunpack.c.l.b16 %v154
  %v535 = vunpack.c.l.b16 %v155
  %v536 = vunpack.c.l.b16 %v156
  %v537 = vunpack.c.l.b16 %v157
  %v538 = vunpack.c.l.b16 %v158
  %v539 = vunpack.c.l.b16 %v159
  %v540 = vunpack.c.l.b16 %v160
  %v541 = vunpack.c.l.b16 %v161
  %v542 = vunpack.c.l.b16 %v162
  %v543 = vunpack.c.l.b16 %v163
  %v544 = vunpack.c.l.b16 %v164
  %v545 = vunpack.c.l.b16 %v165
  %v546 = vunpack.c.l.b16 %v166
  %v547 = vunpack.c.l.b16 %v167
  %v548 = vunpack.c.l.b16 %v168
  %v549 = vunpack.c.l.b16 %v169
  %v550 = vunpack.c.l.b16 %v170
  %v551 = vunpack.c.l.b16 %v171
  %v552 = vunpack.c.l.b16 %v172
  %v553 = vunpack.c.l.b16 %v173
  %v554 = vunpack.c.l.b16 %v174
  %v555 = vunpack.c.l.b16 %v175
  %v556 = vpack.c.b16 %v413, %v412
  %v557 = vpack.c.b16 %v415, %v414
  %v558 = vpack.c.b16 %v417, %v416
  %v559 = vpack.c.b16 %v419, %v418
  %v560 = vpack.c.b16 %v421, %v420
  %v561 = vpack.c.b16 %v423, %v422
  %v562 = vpack.c.b16 %v425, %v424
  %v563 = vpack.c.b16 %v427, %v426
  %v564 = vpack.c.b16 %v429, %v428
  %v565 = vpack.c.b16 %v431, %v430
  %v566 = vpack.c.b16 %v433, %v432
  %v567 = vpack.c.b16 %v435, %v434
  %v568 = vpack.c.b16 %v437, %v436
  %v569 = vpack.c.b16 %v439, %v438
  %v570 = vpack.c.b16 %v441, %v440
  %v571 = vpack.c.b16 %v443, %v442
  %v572 = vpack.c.b16 %v445, %v444
  %v573 = vpack.c.b16 %v447, %v446
  %v574 = vpack.c.b16 %v449, %v448
  %v575 = vpack.c.b16 %v451, %v450
  %v576 = vpack.c.b16 %v453, %v452
  %v577 = vpack.c.b16 %v455, %v454
  %v578 = vpack.c.b16 %v457, %v456
  %v579 = vpack.c.b16 %v459, %v458
  %v580 = vpack.c.b16 %v461, %v460
  %v581 = vpack.c.b16 %v463, %v462
  %v582 = vpack.c.b16 %v465, %v464
  %v583 = vpack.c.b16 %v467, %v466
  %v584 = vpack.c.b16 %v469, %v468
  %v585 = vpack.c.b16 %v471, %v470
  %v586 = vpack.c.b16 %v473, %v472
  %v587 = vpack.c.b16 %v475, %v474
  %v588 = vpack.c.b16 %v477, %v476
  %v589 = vpack.c.b16 %v479, %v478
  %v590 = vpack.c.b16 %v481, %v480
  %v591 = vpack.c.b16 %v483, %v482
  %v592 = vpack.c.b16 %v485, %v484
  %v593 = vpack.c.b16 %v487, %v486
  %v594 = vpack.c.b16 %v489, %v488
  %v595 = vpack.c.b16 %v491, %v490
  %v596 = vpack.c.b16 %v493, %v492
  %v597 = vpack.c.b16 %v495, %v494
  %v598 = vpack.c.b16 %v497, %v496
  %v599 = vpack.c.b16 %v499, %v498
  %v600 = vpack.c.b16 %v501, %v500
  %v601 = vpack.c.b16 %v503, %v502
  %v602 = vpack.c.b16 %v505, %v504
  %v603 = vpack.c.b16 %v507, %v506
  %v604 = vpack.c.b16 %v509, %v508
  %v605 = vpack.c.b16 %v511, %v510
  %v606 = vpack.c.b16 %v513, %v512
  %v607 = vpack.c.b16 %v515, %v514
  %v608 = vpack.c.b16 %v517, %v516
  %v609 = vpack.c.b16 %v519, %v518
  %v610 = vpack.c.b16 %v521, %v520
  %v611 = vpack.c.b16 %v523, %v522
  %v612 = vpack.c.b16 %v525, %v524
  %v613 = vpack.c.b16 %v527, %v526
  %v614 = vpack.c.b16 %v529, %v528
  %v615 = vpack.c.b16 %v531, %v530
  %v616 = vpack.c.b16 %v533, %v532
  %v617 = vpack.c.b16 %v535, %v534
  %v618 = vpack.c.b16 %v537, %v536
  %v619 = vpack.c.b16 %v539, %v538
  %v620 = vpack.c.b16 %v541, %v540
  %v621 = vpack.c.b16 %v543, %v542
  %v622 = vpack.c.b16 %v545, %v544
  %v623 = vpack.c.b16 %v547, %v546
  %v624 = vpack.c.b16 %v549, %v548
  %v625 = vpack.c.b16 %v551, %v550
  %v626 = vpack.c.b16 %v553, %v552
  %v627 = vpack.c.b16 %v555, %v554
  %700 = vmatprep.subr.bf16.mxu0 0
  %701 = vmatpush1.bf16.msra.mxu0 %v556
  %702 = vmatprep.subr.bf16.mxu0 0
  %703 = vmatpush1.bf16.msra.mxu0 %v557
  %704 = vmatprep.subr.bf16.mxu0 0
  %705 = vmatpush1.bf16.msra.mxu0 %v558
  %706 = vmatprep.subr.bf16.mxu0 0
  %707 = vmatpush1.bf16.msra.mxu0 %v559
  %708 = vmatprep.subr.bf16.mxu0 0
  %709 = vmatpush1.bf16.msra.mxu0 %v560
  %710 = vmatprep.subr.bf16.mxu0 0
  %711 = vmatpush1.bf16.msra.mxu0 %v561
  %712 = vmatprep.subr.bf16.mxu0 0
  %713 = vmatpush1.bf16.msra.mxu0 %v562
  %714 = vmatprep.subr.bf16.mxu0 0
  %715 = vmatpush1.bf16.msra.mxu0 %v563
  %716 = vmatprep.subr.bf16.mxu0 0
  %717 = vmatpush1.bf16.msra.mxu0 %v564
  %718 = vmatprep.subr.bf16.mxu0 0
  %719 = vmatpush1.bf16.msra.mxu0 %v565
  %720 = vmatprep.subr.bf16.mxu0 0
  %721 = vmatpush1.bf16.msra.mxu0 %v566
  %722 = vmatprep.subr.bf16.mxu0 0
  %723 = vmatpush1.bf16.msra.mxu0 %v567
  %724 = vmatprep.subr.bf16.mxu0 0
  %725 = vmatpush1.bf16.msra.mxu0 %v568
  %726 = vmatprep.subr.bf16.mxu0 0
  %727 = vmatpush1.bf16.msra.mxu0 %v569
  %728 = vmatprep.subr.bf16.mxu0 0
  %729 = vmatpush1.bf16.msra.mxu0 %v570
  %730 = vmatprep.subr.bf16.mxu0 0
  %731 = vmatpush1.bf16.msra.mxu0 %v571
  %732 = vmatprep.mubr.bf16.mxu0 %v233
  %733 = vmatmul.mubr.bf16.gmra.mrb[0].mxu0 %v232
  %v734 = vpop.f32.mrb[0].mxu0
  %v735 = vadd.f32 0.0, %v734
  %v736 = vpop.f32.mrb[0].mxu0
  %v737 = vpop.f32.mrb[0].mxu0
  %v738 = vadd.f32 0.0, %v737
  %v739 = vpop.f32.mrb[0].mxu0
  %740 = vmatprep.mubr.bf16.mxu0 %v242
  %741 = vmatmul.mubr.bf16.gmra.mrb[0].mxu0 %v241
  %v742 = vpop.f32.mrb[0].mxu0
  %v743 = vadd.f32 0.0, %v742
  %v744 = vpop.f32.mrb[0].mxu0
  %v745 = vpop.f32.mrb[0].mxu0
  %v746 = vadd.f32 0.0, %v745
  %v747 = vpop.f32.mrb[0].mxu0
  %748 = vdwg.mxu0
  %749 = vmatprep.subr.bf16.mxu0 0
  %750 = vmatpush1.bf16.msra.mxu0 %v572
  %751 = vmatprep.subr.bf16.mxu0 0
  %752 = vmatpush1.bf16.msra.mxu0 %v573
  %753 = vmatprep.subr.bf16.mxu0 0
  %754 = vmatpush1.bf16.msra.mxu0 %v574
  %755 = vmatprep.subr.bf16.mxu0 0
  %756 = vmatpush1.bf16.msra.mxu0 %v575
  %757 = vmatprep.subr.bf16.mxu0 0
  %758 = vmatpush1.bf16.msra.mxu0 %v576
  %759 = vmatprep.subr.bf16.mxu0 0
  %760 = vmatpush1.bf16.msra.mxu0 %v577
  %761 = vmatprep.subr.bf16.mxu0 0
  %762 = vmatpush1.bf16.msra.mxu0 %v578
  %763 = vmatprep.subr.bf16.mxu0 0
  %764 = vmatpush1.bf16.msra.mxu0 %v579
  %765 = vmatprep.subr.bf16.mxu0 0
  %766 = vmatpush1.bf16.msra.mxu0 %v580
  %767 = vmatprep.subr.bf16.mxu0 0
  %768 = vmatpush1.bf16.msra.mxu0 %v581
  %769 = vmatprep.subr.bf16.mxu0 0
  %770 = vmatpush1.bf16.msra.mxu0 %v582
  %771 = vmatprep.subr.bf16.mxu0 0
  %772 = vmatpush1.bf16.msra.mxu0 %v583
  %773 = vmatprep.subr.bf16.mxu0 0
  %774 = vmatpush1.bf16.msra.mxu0 %v584
  %775 = vmatprep.subr.bf16.mxu0 0
  %776 = vmatpush1.bf16.msra.mxu0 %v585
  %777 = vmatprep.subr.bf16.mxu0 0
  %778 = vmatpush1.bf16.msra.mxu0 %v586
  %779 = vmatprep.subr.bf16.mxu0 0
  %780 = vmatpush1.bf16.msra.mxu0 %v587
  %781 = vmatprep.mubr.bf16.mxu0 %v235
  %782 = vmatmul.mubr.bf16.gmra.mrb[0].mxu0 %v234
  %v783 = vpop.f32.mrb[0].mxu0
  %v784 = vadd.f32 %v735, %v783
  %v785 = vpop.f32.mrb[0].mxu0
  %v786 = vpop.f32.mrb[0].mxu0
  %v787 = vadd.f32 %v738, %v786
  %v788 = vpop.f32.mrb[0].mxu0
  %789 = vmatprep.mubr.bf16.mxu0 %v244
  %790 = vmatmul.mubr.bf16.gmra.mrb[0].mxu0 %v243
  %v791 = vpop.f32.mrb[0].mxu0
  %v792 = vadd.f32 %v743, %v791
  %v793 = vpop.f32.mrb[0].mxu0
  %v794 = vpop.f32.mrb[0].mxu0
  %v795 = vadd.f32 %v746, %v794
  %v796 = vpop.f32.mrb[0].mxu0
  %797 = vdwg.mxu0
  %798 = vmatprep.subr.bf16.mxu0 0
  %799 = vmatpush1.bf16.msra.mxu0 %v588
  %800 = vmatprep.subr.bf16.mxu0 0
  %801 = vmatpush1.bf16.msra.mxu0 %v589
  %802 = vmatprep.subr.bf16.mxu0 0
  %803 = vmatpush1.bf16.msra.mxu0 %v590
  %804 = vmatprep.subr.bf16.mxu0 0
  %805 = vmatpush1.bf16.msra.mxu0 %v591
  %806 = vmatprep.subr.bf16.mxu0 0
  %807 = vmatpush1.bf16.msra.mxu0 %v592
  %808 = vmatprep.subr.bf16.mxu0 0
  %809 = vmatpush1.bf16.msra.mxu0 %v593
  %810 = vmatprep.subr.bf16.mxu0 0
  %811 = vmatpush1.bf16.msra.mxu0 %v594
  %812 = vmatprep.subr.bf16.mxu0 0
  %813 = vmatpush1.bf16.msra.mxu0 %v595
  %814 = vmatprep.subr.bf16.mxu0 0
  %815 = vmatpush1.bf16.msra.mxu0 %v596
  %816 = vmatprep.subr.bf16.mxu0 0
  %817 = vmatpush1.bf16.msra.mxu0 %v597
  %818 = vmatprep.subr.bf16.mxu0 0
  %819 = vmatpush1.bf16.msra.mxu0 %v598
  %820 = vmatprep.subr.bf16.mxu0 0
  %821 = vmatpush1.bf16.msra.mxu0 %v599
  %822 = vmatprep.subr.bf16.mxu0 0
  %823 = vmatpush1.bf16.msra.mxu0 %v600
  %824 = vmatprep.subr.bf16.mxu0 0
  %825 = vmatpush1.bf16.msra.mxu0 %v601
  %826 = vmatprep.subr.bf16.mxu0 0
  %827 = vmatpush1.bf16.msra.mxu0 %v602
  %828 = vmatprep.subr.bf16.mxu0 0
  %829 = vmatpush1.bf16.msra.mxu0 %v603
  %830 = vmatprep.mubr.bf16.mxu0 %v237
  %831 = vmatmul.mubr.bf16.gmra.mrb[0].mxu0 %v236
  %v832 = vpop.f32.mrb[0].mxu0
  %v833 = vadd.f32 %v784, %v832
  %v834 = vpop.f32.mrb[0].mxu0
  %v835 = vpop.f32.mrb[0].mxu0
  %v836 = vadd.f32 %v787, %v835
  %v837 = vpop.f32.mrb[0].mxu0
  %838 = vmatprep.mubr.bf16.mxu0 %v246
  %839 = vmatmul.mubr.bf16.gmra.mrb[0].mxu0 %v245
  %v840 = vpop.f32.mrb[0].mxu0
  %v841 = vadd.f32 %v792, %v840
  %v842 = vpop.f32.mrb[0].mxu0
  %v843 = vpop.f32.mrb[0].mxu0
  %v844 = vadd.f32 %v795, %v843
  %v845 = vpop.f32.mrb[0].mxu0
  %846 = vdwg.mxu0
  %847 = vmatprep.subr.bf16.mxu0 0
  %848 = vmatpush1.bf16.msra.mxu0 %v604
  %849 = vmatprep.subr.bf16.mxu0 0
  %850 = vmatpush1.bf16.msra.mxu0 %v605
  %851 = vmatprep.subr.bf16.mxu0 0
  %852 = vmatpush1.bf16.msra.mxu0 %v606
  %853 = vmatprep.subr.bf16.mxu0 0
  %854 = vmatpush1.bf16.msra.mxu0 %v607
  %855 = vmatprep.subr.bf16.mxu0 0
  %856 = vmatpush1.bf16.msra.mxu0 %v608
  %857 = vmatprep.subr.bf16.mxu0 0
  %858 = vmatpush1.bf16.msra.mxu0 %v609
  %859 = vmatprep.subr.bf16.mxu0 0
  %860 = vmatpush1.bf16.msra.mxu0 %v610
  %861 = vmatprep.subr.bf16.mxu0 0
  %862 = vmatpush1.bf16.msra.mxu0 %v611
  %863 = vmatprep.subr.bf16.mxu0 0
  %864 = vmatpush1.bf16.msra.mxu0 %v612
  %865 = vmatprep.subr.bf16.mxu0 0
  %866 = vmatpush1.bf16.msra.mxu0 %v613
  %867 = vmatprep.subr.bf16.mxu0 0
  %868 = vmatpush1.bf16.msra.mxu0 %v614
  %869 = vmatprep.subr.bf16.mxu0 0
  %870 = vmatpush1.bf16.msra.mxu0 %v615
  %871 = vmatprep.subr.bf16.mxu0 0
  %872 = vmatpush1.bf16.msra.mxu0 %v616
  %873 = vmatprep.subr.bf16.mxu0 0
  %874 = vmatpush1.bf16.msra.mxu0 %v617
  %875 = vmatprep.subr.bf16.mxu0 0
  %876 = vmatpush1.bf16.msra.mxu0 %v618
  %877 = vmatprep.subr.bf16.mxu0 0
  %878 = vmatpush1.bf16.msra.mxu0 %v619
  %879 = vmatprep.mubr.bf16.mxu0 %v239
  %880 = vmatmul.mubr.bf16.gmra.mrb[0].mxu0 %v238
  %v881 = vpop.f32.mrb[0].mxu0
  %v882 = vadd.f32 %v833, %v881
  %v883 = vpop.f32.mrb[0].mxu0
  %v884 = vpop.f32.mrb[0].mxu0
  %v885 = vadd.f32 %v836, %v884
  %v886 = vpop.f32.mrb[0].mxu0
  %887 = vmatprep.mubr.bf16.mxu0 %v248
  %888 = vmatmul.mubr.bf16.gmra.mrb[0].mxu0 %v247
  %v889 = vpop.f32.mrb[0].mxu0
  %v890 = vadd.f32 %v841, %v889
  %v891 = vpop.f32.mrb[0].mxu0
  %v892 = vpop.f32.mrb[0].mxu0
  %v893 = vadd.f32 %v844, %v892
  %v894 = vpop.f32.mrb[0].mxu0
  %895 = vdwg.mxu0
  %896 = vmatprep.subr.bf16.mxu0 0
  %897 = vmatpush1.bf16.msra.mxu0 %v620
  %898 = vmatprep.subr.bf16.mxu0 0
  %899 = vmatpush1.bf16.msra.mxu0 %v621
  %900 = vmatprep.subr.bf16.mxu0 0
  %901 = vmatpush1.bf16.msra.mxu0 %v622
  %902 = vmatprep.subr.bf16.mxu0 0
  %903 = vmatpush1.bf16.msra.mxu0 %v623
  %904 = vmatprep.subr.bf16.mxu0 0
  %905 = vmatpush1.bf16.msra.mxu0 %v624
  %906 = vmatprep.subr.bf16.mxu0 0
  %907 = vmatpush1.bf16.msra.mxu0 %v625
  %908 = vmatprep.subr.bf16.mxu0 0
  %909 = vmatpush1.bf16.msra.mxu0 %v626
  %910 = vmatprep.subr.bf16.mxu0 0
  %911 = vmatpush1.bf16.msra.mxu0 %v627
  %912 = vmatprep.subr.bf16.mxu0 0
  %913 = vmatpush1.bf16.msra.mxu0 0
  %914 = vmatprep.subr.bf16.mxu0 0
  %915 = vmatpush1.bf16.msra.mxu0 0
  %916 = vmatprep.subr.bf16.mxu0 0
  %917 = vmatpush1.bf16.msra.mxu0 0
  %918 = vmatprep.subr.bf16.mxu0 0
  %919 = vmatpush1.bf16.msra.mxu0 0
  %920 = vmatprep.subr.bf16.mxu0 0
  %921 = vmatpush1.bf16.msra.mxu0 0
  %922 = vmatprep.subr.bf16.mxu0 0
  %923 = vmatpush1.bf16.msra.mxu0 0
  %924 = vmatprep.subr.bf16.mxu0 0
  %925 = vmatpush1.bf16.msra.mxu0 0
  %926 = vmatprep.subr.bf16.mxu0 0
  %927 = vmatpush1.bf16.msra.mxu0 0
  %928 = vmatprep.mubr.bf16.mxu0 0
  %929 = vmatmul.mubr.bf16.gmra.mrb[0].mxu0 %v240
  %v930 = vpop.f32.mrb[0].mxu0
  %v931 = vadd.f32 %v882, %v930
  %v932 = vpop.f32.mrb[0].mxu0
  %v933 = vpop.f32.mrb[0].mxu0
  %v934 = vadd.f32 %v885, %v933
  %v935 = vpop.f32.mrb[0].mxu0
  %936 = vmatprep.mubr.bf16.mxu0 0
  %937 = vmatmul.mubr.bf16.gmra.mrb[0].mxu0 %v249
  %v938 = vpop.f32.mrb[0].mxu0
  %v939 = vadd.f32 %v890, %v938
  %v940 = vpop.f32.mrb[0].mxu0
  %v941 = vpop.f32.mrb[0].mxu0
  %v942 = vadd.f32 %v893, %v941
  %v943 = vpop.f32.mrb[0].mxu0
  %944 = vdwg.mxu0
  %945 = vst [vmem:[%s2] sm:$0xff] %v931
  %946 = vst [vmem:[%s2 + $0x8] sm:$0xff] %v934
  %947 = vst [vmem:[%s2 + $0x10] sm:$0xff] %v939
  %948 = vst [vmem:[%s2 + $0x18] sm:$0xff] %v942
  // Predicated region
  $region10: #{down_conv_forward.15} parent=0 // pred_check
    _
  $region11: #{down_conv_forward.15} parent=0 // pred_check_branch
    %950 = sbr.rel (0) target = $region13
  $region12: #{down_conv_forward.15} parent=0 // pred_region
    _
  $region13: #{down_conv_forward.15} parent=0 // pred_fallthru
    _
  // Predicated region
  $region14: #{down_conv_forward.15} parent=0 // pred_check
    _
  $region15: #{down_conv_forward.15} parent=0 // pred_check_branch
    %952 = sbr.rel (0) target = $region17
  $region16: #{down_conv_forward.15} parent=0 // pred_region
    _
  $region17: #{down_conv_forward.15} parent=0 // pred_fallthru
    _

// kernel: down_conv_forward.16
$region0: #{down_conv_forward.16}
  #allocation0 [shape = 'u32[]', space=smem, size = 0x4, offset = 0x4, fixed_abs, tag = 'smem constant byte address 0x4 - core index']
  #allocation1 [shape = 'u32[144,128]{1,0:T(1,128)}', space=vmem, size = 0x12000, scoped, tag = 'internal scratch']
  %s0 = inlined_call_operand.vmem [shape: f32[2,16,128], index: 0, kind: input, shape index: {}]
  %s1 = inlined_call_operand.vmem [shape: f32[2,1,128], index: 1, kind: output, shape index: {0}]
  %s2 = inlined_call_operand.vmem [shape: f32[2,1,128], index: 2, kind: output, shape index: {1}]
  %3 = xla_tuple %s1, %s2
  %s4 = sld [smem:[#allocation0]]
  $region53: #{down_conv_forward.16} parent=0
    _
  %s6 = ssub.s32 1, %s4
  %s7 = scalar_select 0, %s6, %s4
  loop: start=0, step=1, limit=4
  $region2: #{down_conv_forward.16} parent=0 // loop_pre_header
    _
  $region3: #{down_conv_forward.16} parent=0 // loop_header
    %s9 = sphi 0, %s13
    %p10 = scmp.ge.s32.totalorder %s9, 4
    %s16 = sphi 0, %s28
    %s17 = sphi 0, %s24
    %s18 = sphi 0, %s16
    %s19 = sphi 0, %s17
    %s20 = sphi 0, %s18
    %s21 = sphi 0, %s19
    %s33 = sphi 0, %s35
    %s36 = sphi 0, %s33
    %s37 = sphi 0, %s36
    %s53 = sphi 0, %s37
    %s59 = sphi 0, %s61
    %s62 = sphi 0, %s59
    %s63 = sphi 0, %s62
    %s79 = sphi 0, %s63
    %s85 = sphi 0, %s87
    %s88 = sphi 0, %s85
    %s89 = sphi 0, %s88
    %s105 = sphi 0, %s89
  $region4: #{down_conv_forward.16} parent=0 // loop_header_branch
    %12 = sbr.rel (%p10) target = $region8
  $region5: #{down_conv_forward.16} parent=0 // loop_body
    %s14 = ssub.s32 %s9, 1
    %s15 = ssub.s32 %s9, 2
    %s22 = sadd.s32 1, %s17
    %p23 = scmp.ge.s32.totalorder %s22, 1
    %s24 = scalar_select %p23, 0, %s22
    %s25 = sadd.s32 1, %s16
    %s26 = scalar_select %p23, %s25, %s16
    %p27 = scmp.ge.s32.totalorder %s26, 2
    %s28 = scalar_select %p27, 0, %s26
    %s29 = ssub.s32 %s16, %s28
    %s30 = ssub.s32 %s17, %s24
    %s31 = sor.u32 %s29, %s30
    %p32 = scmp.eq.s32.totalorder %s31, 0
    %s34 = sadd.s32 %s33, 1
    %s35 = scalar_select %p32, %s33, %s34
    %p38 = pneg %p32
    %p39 = scmp.eq.s32.totalorder %s9, 1
    %p40 = por %p38, %p39
    %p41 = scmp.ne.s32.totalorder %s33, %s36
    %p42 = scmp.eq.s32.totalorder %s9, 0
    %p43 = por %p41, %p42
    %p44 = scmp.ne.s32.totalorder %s33, %s36
    %p45 = scmp.eq.s32.totalorder %s14, 1
    %p46 = por %p44, %p45
    %p47 = scmp.ne.s32.totalorder %s36, %s37
    %p48 = scmp.eq.s32.totalorder %s14, 0
    %p49 = por %p47, %p48
    %p50 = scmp.ne.s32.totalorder %s36, %s37
    %p51 = scmp.eq.s32.totalorder %s15, 1
    %p52 = por %p50, %p51
    %p54 = scmp.ne.s32.totalorder %s37, %s53
    %p55 = scmp.eq.s32.totalorder %s15, 0
    %p56 = por %p54, %p55
    %s57 = ssub.s32 %s16, %s28
    %p58 = scmp.eq.s32.totalorder %s57, 0
    %s60 = sadd.s32 %s59, 1
    %s61 = scalar_select %p58, %s59, %s60
    %p64 = pneg %p58
    %p65 = scmp.eq.s32.totalorder %s9, 1
    %p66 = por %p64, %p65
    %p67 = scmp.ne.s32.totalorder %s59, %s62
    %p68 = scmp.eq.s32.totalorder %s9, 0
    %p69 = por %p67, %p68
    %p70 = scmp.ne.s32.totalorder %s59, %s62
    %p71 = scmp.eq.s32.totalorder %s14, 1
    %p72 = por %p70, %p71
    %p73 = scmp.ne.s32.totalorder %s62, %s63
    %p74 = scmp.eq.s32.totalorder %s14, 0
    %p75 = por %p73, %p74
    %p76 = scmp.ne.s32.totalorder %s62, %s63
    %p77 = scmp.eq.s32.totalorder %s15, 1
    %p78 = por %p76, %p77
    %p80 = scmp.ne.s32.totalorder %s63, %s79
    %p81 = scmp.eq.s32.totalorder %s15, 0
    %p82 = por %p80, %p81
    %s83 = ssub.s32 %s16, %s28
    %p84 = scmp.eq.s32.totalorder %s83, 0
    %s86 = sadd.s32 %s85, 1
    %s87 = scalar_select %p84, %s85, %s86
    %p90 = pneg %p84
    %p91 = scmp.eq.s32.totalorder %s9, 1
    %p92 = por %p90, %p91
    %p93 = scmp.ne.s32.totalorder %s85, %s88
    %p94 = scmp.eq.s32.totalorder %s9, 0
    %p95 = por %p93, %p94
    %p96 = scmp.ne.s32.totalorder %s85, %s88
    %p97 = scmp.eq.s32.totalorder %s14, 1
    %p98 = por %p96, %p97
    %p99 = scmp.ne.s32.totalorder %s88, %s89
    %p100 = scmp.eq.s32.totalorder %s14, 0
    %p101 = por %p99, %p100
    %p102 = scmp.ne.s32.totalorder %s88, %s89
    %p103 = scmp.eq.s32.totalorder %s15, 1
    %p104 = por %p102, %p103
    %p106 = scmp.ne.s32.totalorder %s89, %s105
    %p107 = scmp.eq.s32.totalorder %s15, 0
    %p108 = por %p106, %p107
    %p109 = scmp.le.s32.totalorder 1, %s9
    %p110 = scmp.lt.s32.totalorder %s9, 3
    %p111 = pnand %p109, %p110
    %p112 = pneg %p111
    // Predicated region
    $region9: #{down_conv_forward.16} parent=5 // pred_check
      _
    $region10: #{down_conv_forward.16} parent=5 // pred_check_branch
      %114 = sbr.rel (%p111) target = $region12
    $region11: #{down_conv_forward.16} parent=5 // pred_region
      %s115 = ssub.s32 %s9, 1
    $region12: #{down_conv_forward.16} parent=5 // pred_fallthru
      _
    %p116 = scmp.lt.s32.totalorder %s9, 2
    // Predicated region
    $region13: #{down_conv_forward.16} parent=5 // pred_check
      %p117 = pneg %p116
    $region14: #{down_conv_forward.16} parent=5 // pred_check_branch
      %119 = sbr.rel (%p117) target = $region16
    $region15: #{down_conv_forward.16} parent=5 // pred_region
      // Predicated region
      $region17: #{down_conv_forward.16} parent=15 // pred_check
        %p120 = pneg %p43
      $region18: #{down_conv_forward.16} parent=15 // pred_check_branch
        %122 = sbr.rel (%p120) target = $region20
      $region19: #{down_conv_forward.16} parent=15 // pred_region
        %s123 = smul.u32 2, %s17
        %p124 = scmp.lt.s32.totalorder %s16, 1
        %s125 = scalar_select %p124, %s16, 1
        %p126 = scmp.lt.s32.totalorder %s123, 1
        %s127 = scalar_select %p126, %s123, 1
        %s128 = smul.addr %s125, 2
        %s129 = sadd.s32 %s127, %s128
        %s130 = smul.addr %s129, 8
        %s131 = scalar_lea.vmem %s0, %s130
        %s132 = smul.u32 2, %s17
      $region20: #{down_conv_forward.16} parent=15 // pred_fallthru
        _
    $region16: #{down_conv_forward.16} parent=5 // pred_fallthru
      _
    %p133 = scmp.le.s32.totalorder 1, %s9
    %p134 = scmp.lt.s32.totalorder %s9, 3
    %p135 = pnand %p133, %p134
    %p136 = pneg %p135
    // Predicated region
    $region21: #{down_conv_forward.16} parent=5 // pred_check
      _
    $region22: #{down_conv_forward.16} parent=5 // pred_check_branch
      %138 = sbr.rel (%p135) target = $region24
    $region23: #{down_conv_forward.16} parent=5 // pred_region
      %s139 = ssub.s32 %s9, 1
      %s140 = smul.u32 2, %s19
      %p141 = scmp.lt.s32.totalorder %s18, 1
      %s142 = scalar_select %p141, %s18, 1
      %p143 = scmp.lt.s32.totalorder %s140, 1
      %s144 = scalar_select %p143, %s140, 1
      %s145 = smul.addr %s142, 2
      %s146 = sadd.s32 %s144, %s145
      %s147 = smul.addr %s146, 8
      %s148 = scalar_lea.vmem %s0, %s147
      %p149 = pneg %p49
      %p150 = pneg %p46
      %p151 = pneg %p75
      %p152 = pneg %p72
      %p153 = scmp.lt.s32.totalorder %s18, 1
      %s154 = scalar_select %p153, %s18, 1
      %s155 = scalar_lea.vmem %s1, %s154
      %p156 = pneg %p101
      %p157 = pneg %p98
      %p158 = scmp.lt.s32.totalorder %s18, 1
      %s159 = scalar_select %p158, %s18, 1
      %s160 = scalar_lea.vmem %s2, %s159
      %s161 = smul.u32 2, %s19
      %p162 = scmp.lt.s32.totalorder %s18, 1
      %s163 = scalar_select %p162, %s18, 1
      %p164 = scmp.lt.s32.totalorder %s161, 1
      %s165 = scalar_select %p164, %s161, 1
      %s166 = smul.addr %s163, 2
      %s167 = sadd.s32 %s165, %s166
      %s168 = smul.addr %s167, 8
      %s169 = scalar_lea.vmem %s0, %s168
      %s170 = smul.u32 2, %s19
      %p171 = scmp.lt.s32.totalorder %s18, 1
      %s172 = scalar_select %p171, %s18, 1
      %s173 = scalar_lea.vmem %s1, %s172
      %p174 = scmp.lt.s32.totalorder %s18, 1
      %s175 = scalar_select %p174, %s18, 1
      %s176 = scalar_lea.vmem %s2, %s175
      %p177 = scmp.eq.s32.totalorder %s19, 0
      // Predicated region
      $region25: #{down_conv_forward.16} parent=23 // pred_check
        %p178 = pneg %p177
      $region26: #{down_conv_forward.16} parent=23 // pred_check_branch
        %180 = sbr.rel (%p178) target = $region28
      $region27: #{down_conv_forward.16} parent=23 // pred_region
        %181 = vst [vmem:[%s173] sm:$0x1] 0.0
        %182 = vst [vmem:[%s176] sm:$0x1] 0.0
      $region28: #{down_conv_forward.16} parent=23 // pred_fallthru
        _
      %v183 = vld [vmem:[%s169] sm:$0xff]
      %v184 = vld [vmem:[%s169 + $0x8] sm:$0xff]
      %v185 = vld [vmem:[%s173] sm:$0x1]
      %v186 = vadd.f32 %v183, %v184
      %v187 = vrot.slane %v186, 4
      %v188 = vadd.f32 %v186, %v187
      %v189 = vrot.slane %v188, 2
      %v190 = vadd.f32 %v188, %v189
      %v191 = vrot.slane %v190, 1
      %v192 = vadd.f32 %v190, %v191
      %v193 = vadd.f32 %v185, %v192
      %194 = vst [vmem:[%s173] sm:$0x1] %v193
      %v195 = vld [vmem:[%s176] sm:$0x1]
      %v196 = vmul.f32 %v183, %v183
      %v197 = vmul.f32 %v184, %v184
      %v198 = vadd.f32 %v196, %v197
      %v199 = vrot.slane %v198, 4
      %v200 = vadd.f32 %v198, %v199
      %v201 = vrot.slane %v200, 2
      %v202 = vadd.f32 %v200, %v201
      %v203 = vrot.slane %v202, 1
      %v204 = vadd.f32 %v202, %v203
      %v205 = vadd.f32 %v195, %v204
      %206 = vst [vmem:[%s176] sm:$0x1] %v205
      // Predicated region
      $region29: #{down_conv_forward.16} parent=23 // pred_check
        %p207 = pneg %p177
      $region30: #{down_conv_forward.16} parent=23 // pred_check_branch
        %209 = sbr.rel (%p207) target = $region32
      $region31: #{down_conv_forward.16} parent=23 // pred_region
        %v210 = vld [vmem:[%s173] sm:$0x1]
        %v211 = vld [vmem:[%s176] sm:$0x1]
        %v212 = vmul.f32 %v210, 0.0625
        %v213 = vmul.f32 %v211, 0.0625
        %v214 = vmul.f32 %v212, %v212
        %v215 = vsub.f32 %v213, %v214
        %v216 = vmax.f32 %v215, 0.0
        %217 = vst [vmem:[%s173] sm:$0x1] %v212
        %v218 = vadd.f32 %v216, 1e-05
        %v219 = vrsqrt.pop %v218
        %220 = vst [vmem:[%s176] sm:$0x1] %v219
      $region32: #{down_conv_forward.16} parent=23 // pred_fallthru
        _
      %p221 = scmp.lt.s32.totalorder %s18, 1
      %s222 = scalar_select %p221, %s18, 1
      %s223 = scalar_lea.vmem %s1, %s222
      %p224 = scmp.lt.s32.totalorder %s18, 1
      %s225 = scalar_select %p224, %s18, 1
      %s226 = scalar_lea.vmem %s2, %s225
      // Predicated region
      $region33: #{down_conv_forward.16} parent=23 // pred_check
        %p227 = pneg %p72
      $region34: #{down_conv_forward.16} parent=23 // pred_check_branch
        %229 = sbr.rel (%p227) target = $region36
      $region35: #{down_conv_forward.16} parent=23 // pred_region
        _
      $region36: #{down_conv_forward.16} parent=23 // pred_fallthru
        _
      // Predicated region
      $region37: #{down_conv_forward.16} parent=23 // pred_check
        %p230 = pneg %p98
      $region38: #{down_conv_forward.16} parent=23 // pred_check_branch
        %232 = sbr.rel (%p230) target = $region40
      $region39: #{down_conv_forward.16} parent=23 // pred_region
        _
      $region40: #{down_conv_forward.16} parent=23 // pred_fallthru
        _
    $region24: #{down_conv_forward.16} parent=5 // pred_fallthru
      _
    %p233 = scmp.le.s32.totalorder 2, %s9
    // Predicated region
    $region41: #{down_conv_forward.16} parent=5 // pred_check
      %p234 = pneg %p233
    $region42: #{down_conv_forward.16} parent=5 // pred_check_branch
      %236 = sbr.rel (%p234) target = $region44
    $region43: #{down_conv_forward.16} parent=5 // pred_region
      %s237 = ssub.s32 %s9, 2
      // Predicated region
      $region45: #{down_conv_forward.16} parent=43 // pred_check
        %p238 = pneg %p78
      $region46: #{down_conv_forward.16} parent=43 // pred_check_branch
        %240 = sbr.rel (%p238) target = $region48
      $region47: #{down_conv_forward.16} parent=43 // pred_region
        %p241 = scmp.lt.s32.totalorder %s20, 1
        %s242 = scalar_select %p241, %s20, 1
        %s243 = scalar_lea.vmem %s1, %s242
      $region48: #{down_conv_forward.16} parent=43 // pred_fallthru
        _
      // Predicated region
      $region49: #{down_conv_forward.16} parent=43 // pred_check
        %p244 = pneg %p104
      $region50: #{down_conv_forward.16} parent=43 // pred_check_branch
        %246 = sbr.rel (%p244) target = $region52
      $region51: #{down_conv_forward.16} parent=43 // pred_region
        %p247 = scmp.lt.s32.totalorder %s20, 1
        %s248 = scalar_select %p247, %s20, 1
        %s249 = scalar_lea.vmem %s2, %s248
      $region52: #{down_conv_forward.16} parent=43 // pred_fallthru
        _
    $region44: #{down_conv_forward.16} parent=5 // pred_fallthru
      _
  $region6: #{down_conv_forward.16} parent=0 // loop_footer
    %s13 = sadd.s32 1, %s9
  $region7: #{down_conv_forward.16} parent=0 // loop_footer_branch
    %8 = sbr.rel target = $region3
  $region8: #{down_conv_forward.16} parent=0 // loop_exit
    _

// kernel: down_conv_forward.17
$region0: #{down_conv_forward.17}
  #allocation0 [shape = 'u32[]', space=smem, size = 0x4, offset = 0x4, fixed_abs, tag = 'smem constant byte address 0x4 - core index']
  #allocation1 [shape = 'u32[144,128]{1,0:T(1,128)}', space=vmem, size = 0x12000, scoped, tag = 'internal scratch']
  %s0 = inlined_call_operand.vmem [shape: f32[2,16,128], index: 0, kind: input, shape index: {}]
  %s1 = inlined_call_operand.vmem [shape: f32[2,1,128], index: 1, kind: input, shape index: {}]
  %s2 = inlined_call_operand.vmem [shape: f32[2,1,128], index: 2, kind: input, shape index: {}]
  %s3 = inlined_call_operand.vmem [shape: f32[1,1,128], index: 3, kind: input, shape index: {}]
  %s4 = inlined_call_operand.vmem [shape: f32[1,1,128], index: 4, kind: input, shape index: {}]
  %s5 = inlined_call_operand.vmem [shape: f32[2,16,128], index: 5, kind: output, shape index: {}]
  %s6 = sld [smem:[#allocation0]]
  $region53: #{down_conv_forward.17} parent=0
    _
  %s8 = ssub.s32 1, %s6
  %s9 = scalar_select 0, %s8, %s6
  loop: start=0, step=1, limit=4
  $region2: #{down_conv_forward.17} parent=0 // loop_pre_header
    _
  $region3: #{down_conv_forward.17} parent=0 // loop_header
    %s11 = sphi 0, %s15
    %p12 = scmp.ge.s32.totalorder %s11, 4
    %s18 = sphi 0, %s30
    %s19 = sphi 0, %s26
    %s20 = sphi 0, %s18
    %s21 = sphi 0, %s19
    %s22 = sphi 0, %s20
    %s23 = sphi 0, %s21
    %s35 = sphi 0, %s37
    %s38 = sphi 0, %s35
    %s39 = sphi 0, %s38
    %s55 = sphi 0, %s39
    %s61 = sphi 0, %s63
    %s64 = sphi 0, %s61
    %s65 = sphi 0, %s64
    %s81 = sphi 0, %s65
    %s87 = sphi 0, %s89
    %s90 = sphi 0, %s87
    %s91 = sphi 0, %s90
    %s107 = sphi 0, %s91
    %s111 = sphi 0, %s111
    %s113 = sphi 0, %s111
    %s114 = sphi 0, %s113
    %s128 = sphi 0, %s114
    %s132 = sphi 0, %s132
    %s134 = sphi 0, %s132
    %s135 = sphi 0, %s134
    %s149 = sphi 0, %s135
    %s157 = sphi 0, %s159
    %s160 = sphi 0, %s157
    %s161 = sphi 0, %s160
    %s177 = sphi 0, %s161
  $region4: #{down_conv_forward.17} parent=0 // loop_header_branch
    %14 = sbr.rel (%p12) target = $region8
  $region5: #{down_conv_forward.17} parent=0 // loop_body
    %s16 = ssub.s32 %s11, 1
    %s17 = ssub.s32 %s11, 2
    %s24 = sadd.s32 1, %s19
    %p25 = scmp.ge.s32.totalorder %s24, 1
    %s26 = scalar_select %p25, 0, %s24
    %s27 = sadd.s32 1, %s18
    %s28 = scalar_select %p25, %s27, %s18
    %p29 = scmp.ge.s32.totalorder %s28, 2
    %s30 = scalar_select %p29, 0, %s28
    %s31 = ssub.s32 %s18, %s30
    %s32 = ssub.s32 %s19, %s26
    %s33 = sor.u32 %s31, %s32
    %p34 = scmp.eq.s32.totalorder %s33, 0
    %s36 = sadd.s32 %s35, 1
    %s37 = scalar_select %p34, %s35, %s36
    %p40 = pneg %p34
    %p41 = scmp.eq.s32.totalorder %s11, 1
    %p42 = por %p40, %p41
    %p43 = scmp.ne.s32.totalorder %s35, %s38
    %p44 = scmp.eq.s32.totalorder %s11, 0
    %p45 = por %p43, %p44
    %p46 = scmp.ne.s32.totalorder %s35, %s38
    %p47 = scmp.eq.s32.totalorder %s16, 1
    %p48 = por %p46, %p47
    %p49 = scmp.ne.s32.totalorder %s38, %s39
    %p50 = scmp.eq.s32.totalorder %s16, 0
    %p51 = por %p49, %p50
    %p52 = scmp.ne.s32.totalorder %s38, %s39
    %p53 = scmp.eq.s32.totalorder %s17, 1
    %p54 = por %p52, %p53
    %p56 = scmp.ne.s32.totalorder %s39, %s55
    %p57 = scmp.eq.s32.totalorder %s17, 0
    %p58 = por %p56, %p57
    %s59 = ssub.s32 %s18, %s30
    %p60 = scmp.eq.s32.totalorder %s59, 0
    %s62 = sadd.s32 %s61, 1
    %s63 = scalar_select %p60, %s61, %s62
    %p66 = pneg %p60
    %p67 = scmp.eq.s32.totalorder %s11, 1
    %p68 = por %p66, %p67
    %p69 = scmp.ne.s32.totalorder %s61, %s64
    %p70 = scmp.eq.s32.totalorder %s11, 0
    %p71 = por %p69, %p70
    %p72 = scmp.ne.s32.totalorder %s61, %s64
    %p73 = scmp.eq.s32.totalorder %s16, 1
    %p74 = por %p72, %p73
    %p75 = scmp.ne.s32.totalorder %s64, %s65
    %p76 = scmp.eq.s32.totalorder %s16, 0
    %p77 = por %p75, %p76
    %p78 = scmp.ne.s32.totalorder %s64, %s65
    %p79 = scmp.eq.s32.totalorder %s17, 1
    %p80 = por %p78, %p79
    %p82 = scmp.ne.s32.totalorder %s65, %s81
    %p83 = scmp.eq.s32.totalorder %s17, 0
    %p84 = por %p82, %p83
    %s85 = ssub.s32 %s18, %s30
    %p86 = scmp.eq.s32.totalorder %s85, 0
    %s88 = sadd.s32 %s87, 1
    %s89 = scalar_select %p86, %s87, %s88
    %p92 = pneg %p86
    %p93 = scmp.eq.s32.totalorder %s11, 1
    %p94 = por %p92, %p93
    %p95 = scmp.ne.s32.totalorder %s87, %s90
    %p96 = scmp.eq.s32.totalorder %s11, 0
    %p97 = por %p95, %p96
    %p98 = scmp.ne.s32.totalorder %s87, %s90
    %p99 = scmp.eq.s32.totalorder %s16, 1
    %p100 = por %p98, %p99
    %p101 = scmp.ne.s32.totalorder %s90, %s91
    %p102 = scmp.eq.s32.totalorder %s16, 0
    %p103 = por %p101, %p102
    %p104 = scmp.ne.s32.totalorder %s90, %s91
    %p105 = scmp.eq.s32.totalorder %s17, 1
    %p106 = por %p104, %p105
    %p108 = scmp.ne.s32.totalorder %s91, %s107
    %p109 = scmp.eq.s32.totalorder %s17, 0
    %p110 = por %p108, %p109
    %s112 = sadd.s32 %s111, 1
    %p115 = scmp.eq.s32.totalorder %s11, 1
    %p116 = scmp.ne.s32.totalorder %s111, %s113
    %p117 = scmp.eq.s32.totalorder %s11, 0
    %p118 = por %p116, %p117
    %p119 = scmp.ne.s32.totalorder %s111, %s113
    %p120 = scmp.eq.s32.totalorder %s16, 1
    %p121 = por %p119, %p120
    %p122 = scmp.ne.s32.totalorder %s113, %s114
    %p123 = scmp.eq.s32.totalorder %s16, 0
    %p124 = por %p122, %p123
    %p125 = scmp.ne.s32.totalorder %s113, %s114
    %p126 = scmp.eq.s32.totalorder %s17, 1
    %p127 = por %p125, %p126
    %p129 = scmp.ne.s32.totalorder %s114, %s128
    %p130 = scmp.eq.s32.totalorder %s17, 0
    %p131 = por %p129, %p130
    %s133 = sadd.s32 %s132, 1
    %p136 = scmp.eq.s32.totalorder %s11, 1
    %p137 = scmp.ne.s32.totalorder %s132, %s134
    %p138 = scmp.eq.s32.totalorder %s11, 0
    %p139 = por %p137, %p138
    %p140 = scmp.ne.s32.totalorder %s132, %s134
    %p141 = scmp.eq.s32.totalorder %s16, 1
    %p142 = por %p140, %p141
    %p143 = scmp.ne.s32.totalorder %s134, %s135
    %p144 = scmp.eq.s32.totalorder %s16, 0
    %p145 = por %p143, %p144
    %p146 = scmp.ne.s32.totalorder %s134, %s135
    %p147 = scmp.eq.s32.totalorder %s17, 1
    %p148 = por %p146, %p147
    %p150 = scmp.ne.s32.totalorder %s135, %s149
    %p151 = scmp.eq.s32.totalorder %s17, 0
    %p152 = por %p150, %p151
    %s153 = ssub.s32 %s18, %s30
    %s154 = ssub.s32 %s19, %s26
    %s155 = sor.u32 %s153, %s154
    %p156 = scmp.eq.s32.totalorder %s155, 0
    %s158 = sadd.s32 %s157, 1
    %s159 = scalar_select %p156, %s157, %s158
    %p162 = pneg %p156
    %p163 = scmp.eq.s32.totalorder %s11, 1
    %p164 = por %p162, %p163
    %p165 = scmp.ne.s32.totalorder %s157, %s160
    %p166 = scmp.eq.s32.totalorder %s11, 0
    %p167 = por %p165, %p166
    %p168 = scmp.ne.s32.totalorder %s157, %s160
    %p169 = scmp.eq.s32.totalorder %s16, 1
    %p170 = por %p168, %p169
    %p171 = scmp.ne.s32.totalorder %s160, %s161
    %p172 = scmp.eq.s32.totalorder %s16, 0
    %p173 = por %p171, %p172
    %p174 = scmp.ne.s32.totalorder %s160, %s161
    %p175 = scmp.eq.s32.totalorder %s17, 1
    %p176 = por %p174, %p175
    %p178 = scmp.ne.s32.totalorder %s161, %s177
    %p179 = scmp.eq.s32.totalorder %s17, 0
    %p180 = por %p178, %p179
    %p181 = scmp.le.s32.totalorder 1, %s11
    %p182 = scmp.lt.s32.totalorder %s11, 3
    %p183 = pnand %p181, %p182
    %p184 = pneg %p183
    // Predicated region
    $region9: #{down_conv_forward.17} parent=5 // pred_check
      _
    $region10: #{down_conv_forward.17} parent=5 // pred_check_branch
      %186 = sbr.rel (%p183) target = $region12
    $region11: #{down_conv_forward.17} parent=5 // pred_region
      %s187 = ssub.s32 %s11, 1
      // Predicated region
      $region13: #{down_conv_forward.17} parent=11 // pred_check
        %p188 = pneg %p124
      $region14: #{down_conv_forward.17} parent=11 // pred_check_branch
        %190 = sbr.rel (%p188) target = $region16
      $region15: #{down_conv_forward.17} parent=11 // pred_region
        _
      $region16: #{down_conv_forward.17} parent=11 // pred_fallthru
        _
      // Predicated region
      $region17: #{down_conv_forward.17} parent=11 // pred_check
        %p191 = pneg %p145
      $region18: #{down_conv_forward.17} parent=11 // pred_check_branch
        %193 = sbr.rel (%p191) target = $region20
      $region19: #{down_conv_forward.17} parent=11 // pred_region
        _
      $region20: #{down_conv_forward.17} parent=11 // pred_fallthru
        _
    $region12: #{down_conv_forward.17} parent=5 // pred_fallthru
      _
    %p194 = scmp.lt.s32.totalorder %s11, 2
    // Predicated region
    $region21: #{down_conv_forward.17} parent=5 // pred_check
      %p195 = pneg %p194
    $region22: #{down_conv_forward.17} parent=5 // pred_check_branch
      %197 = sbr.rel (%p195) target = $region24
    $region23: #{down_conv_forward.17} parent=5 // pred_region
      // Predicated region
      $region25: #{down_conv_forward.17} parent=23 // pred_check
        %p198 = pneg %p45
      $region26: #{down_conv_forward.17} parent=23 // pred_check_branch
        %200 = sbr.rel (%p198) target = $region28
      $region27: #{down_conv_forward.17} parent=23 // pred_region
        %s201 = smul.u32 2, %s19
        %p202 = scmp.lt.s32.totalorder %s18, 1
        %s203 = scalar_select %p202, %s18, 1
        %p204 = scmp.lt.s32.totalorder %s201, 1
        %s205 = scalar_select %p204, %s201, 1
        %s206 = smul.addr %s203, 2
        %s207 = sadd.s32 %s205, %s206
        %s208 = smul.addr %s207, 8
        %s209 = scalar_lea.vmem %s0, %s208
        %s210 = smul.u32 2, %s19
      $region28: #{down_conv_forward.17} parent=23 // pred_fallthru
        _
      // Predicated region
      $region29: #{down_conv_forward.17} parent=23 // pred_check
        %p211 = pneg %p71
      $region30: #{down_conv_forward.17} parent=23 // pred_check_branch
        %213 = sbr.rel (%p211) target = $region32
      $region31: #{down_conv_forward.17} parent=23 // pred_region
        %p214 = scmp.lt.s32.totalorder %s18, 1
        %s215 = scalar_select %p214, %s18, 1
        %s216 = scalar_lea.vmem %s1, %s215
      $region32: #{down_conv_forward.17} parent=23 // pred_fallthru
        _
      // Predicated region
      $region33: #{down_conv_forward.17} parent=23 // pred_check
        %p217 = pneg %p97
      $region34: #{down_conv_forward.17} parent=23 // pred_check_branch
        %219 = sbr.rel (%p217) target = $region36
      $region35: #{down_conv_forward.17} parent=23 // pred_region
        %p220 = scmp.lt.s32.totalorder %s18, 1
        %s221 = scalar_select %p220, %s18, 1
        %s222 = scalar_lea.vmem %s2, %s221
      $region36: #{down_conv_forward.17} parent=23 // pred_fallthru
        _
    $region24: #{down_conv_forward.17} parent=5 // pred_fallthru
      _
    %p223 = scmp.le.s32.totalorder 1, %s11
    %p224 = scmp.lt.s32.totalorder %s11, 3
    %p225 = pnand %p223, %p224
    %p226 = pneg %p225
    // Predicated region
    $region37: #{down_conv_forward.17} parent=5 // pred_check
      _
    $region38: #{down_conv_forward.17} parent=5 // pred_check_branch
      %228 = sbr.rel (%p225) target = $region40
    $region39: #{down_conv_forward.17} parent=5 // pred_region
      %s229 = ssub.s32 %s11, 1
      %s230 = smul.u32 2, %s21
      %p231 = scmp.lt.s32.totalorder %s20, 1
      %s232 = scalar_select %p231, %s20, 1
      %p233 = scmp.lt.s32.totalorder %s230, 1
      %s234 = scalar_select %p233, %s230, 1
      %s235 = smul.addr %s232, 2
      %s236 = sadd.s32 %s234, %s235
      %s237 = smul.addr %s236, 8
      %s238 = scalar_lea.vmem %s0, %s237
      %p239 = pneg %p51
      %p240 = pneg %p48
      %p241 = scmp.lt.s32.totalorder %s20, 1
      %s242 = scalar_select %p241, %s20, 1
      %s243 = scalar_lea.vmem %s1, %s242
      %p244 = pneg %p77
      %p245 = pneg %p74
      %p246 = scmp.lt.s32.totalorder %s20, 1
      %s247 = scalar_select %p246, %s20, 1
      %s248 = scalar_lea.vmem %s2, %s247
      %p249 = pneg %p103
      %p250 = pneg %p100
      %p251 = pneg %p124
      %p252 = pneg %p121
      %p253 = pneg %p145
      %p254 = pneg %p142
      %p255 = pneg %p173
      %p256 = pneg %p170
      %s257 = smul.u32 2, %s21
      %p258 = scmp.lt.s32.totalorder %s20, 1
      %s259 = scalar_select %p258, %s20, 1
      %p260 = scmp.lt.s32.totalorder %s257, 1
      %s261 = scalar_select %p260, %s257, 1
      %s262 = smul.addr %s259, 2
      %s263 = sadd.s32 %s261, %s262
      %s264 = smul.addr %s263, 8
      %s265 = scalar_lea.vmem %s5, %s264
      %s266 = smul.u32 2, %s21
      %p267 = scmp.lt.s32.totalorder %s20, 1
      %s268 = scalar_select %p267, %s20, 1
      %p269 = scmp.lt.s32.totalorder %s266, 1
      %s270 = scalar_select %p269, %s266, 1
      %s271 = smul.addr %s268, 2
      %s272 = sadd.s32 %s270, %s271
      %s273 = smul.addr %s272, 8
      %s274 = scalar_lea.vmem %s0, %s273
      %s275 = smul.u32 2, %s21
      %p276 = scmp.lt.s32.totalorder %s20, 1
      %s277 = scalar_select %p276, %s20, 1
      %s278 = scalar_lea.vmem %s1, %s277
      %p279 = scmp.lt.s32.totalorder %s20, 1
      %s280 = scalar_select %p279, %s20, 1
      %s281 = scalar_lea.vmem %s2, %s280
      %s282 = smul.u32 2, %s21
      %p283 = scmp.lt.s32.totalorder %s20, 1
      %s284 = scalar_select %p283, %s20, 1
      %p285 = scmp.lt.s32.totalorder %s282, 1
      %s286 = scalar_select %p285, %s282, 1
      %s287 = smul.addr %s284, 2
      %s288 = sadd.s32 %s286, %s287
      %s289 = smul.addr %s288, 8
      %s290 = scalar_lea.vmem %s5, %s289
      %s291 = smul.u32 2, %s21
      %v292 = vld [vmem:[%s274] sm:$0xff]
      %v293 = vld [vmem:[%s274 + $0x8] sm:$0xff]
      %v294 = vld [vmem:[%s278] sm:$0x1]
      %v295 = vld [vmem:[%s281] sm:$0x1]
      %v296 = vld [vmem:[%s3] sm:$0x1]
      %v297 = vld [vmem:[%s4] sm:$0x1]
      %v299 = vlaneseq
      %v300 = vshrl.u32 %v299, 7
      %v301 = vsub.s32 0, %v300
      %v302 = vrot.slane %v294, %v301
      %v304 = vsub.f32 %v292, %v302
      %v305 = vsub.f32 %v293, %v302
      %v306 = vmul.f32 %v295, %v296
      %v308 = vlaneseq
      %v309 = vshrl.u32 %v308, 7
      %v310 = vsub.s32 0, %v309
      %v311 = vrot.slane %v306, %v310
      %v313 = vmul.f32 %v304, %v311
      %v314 = vmul.f32 %v305, %v311
      %v316 = vlaneseq
      %v317 = vshrl.u32 %v316, 7
      %v318 = vsub.s32 0, %v317
      %v319 = vrot.slane %v297, %v318
      %v321 = vadd.f32 %v313, %v319
      %v322 = vadd.f32 %v314, %v319
      %v323 = vmax.f32 %v321, 0.0
      %v324 = vmax.f32 %v322, 0.0
      %325 = vst [vmem:[%s290] sm:$0xff] %v323
      %326 = vst [vmem:[%s290 + $0x8] sm:$0xff] %v324
      %s327 = smul.u32 2, %s21
      %p328 = scmp.lt.s32.totalorder %s20, 1
      %s329 = scalar_select %p328, %s20, 1
      %p330 = scmp.lt.s32.totalorder %s327, 1
      %s331 = scalar_select %p330, %s327, 1
      %s332 = smul.addr %s329, 2
      %s333 = sadd.s32 %s331, %s332
      %s334 = smul.addr %s333, 8
      %s335 = scalar_lea.vmem %s5, %s334
      // Predicated region
      $region41: #{down_conv_forward.17} parent=39 // pred_check
        %p336 = pneg %p170
      $region42: #{down_conv_forward.17} parent=39 // pred_check_branch
        %338 = sbr.rel (%p336) target = $region44
      $region43: #{down_conv_forward.17} parent=39 // pred_region
        %s339 = smul.u32 2, %s21
      $region44: #{down_conv_forward.17} parent=39 // pred_fallthru
        _
    $region40: #{down_conv_forward.17} parent=5 // pred_fallthru
      _
    %p340 = scmp.le.s32.totalorder 2, %s11
    // Predicated region
    $region45: #{down_conv_forward.17} parent=5 // pred_check
      %p341 = pneg %p340
    $region46: #{down_conv_forward.17} parent=5 // pred_check_branch
      %343 = sbr.rel (%p341) target = $region48
    $region47: #{down_conv_forward.17} parent=5 // pred_region
      %s344 = ssub.s32 %s11, 2
      // Predicated region
      $region49: #{down_conv_forward.17} parent=47 // pred_check
        %p345 = pneg %p176
      $region50: #{down_conv_forward.17} parent=47 // pred_check_branch
        %347 = sbr.rel (%p345) target = $region52
      $region51: #{down_conv_forward.17} parent=47 // pred_region
        %s348 = smul.u32 2, %s23
        %p349 = scmp.lt.s32.totalorder %s22, 1
        %s350 = scalar_select %p349, %s22, 1
        %p351 = scmp.lt.s32.totalorder %s348, 1
        %s352 = scalar_select %p351, %s348, 1
        %s353 = smul.addr %s350, 2
        %s354 = sadd.s32 %s352, %s353
        %s355 = smul.addr %s354, 8
        %s356 = scalar_lea.vmem %s5, %s355
      $region52: #{down_conv_forward.17} parent=47 // pred_fallthru
        _
    $region48: #{down_conv_forward.17} parent=5 // pred_fallthru
      _
  $region6: #{down_conv_forward.17} parent=0 // loop_footer
    %s15 = sadd.s32 1, %s11
  $region7: #{down_conv_forward.17} parent=0 // loop_footer_branch
    %10 = sbr.rel target = $region3
  $region8: #{down_conv_forward.17} parent=0 // loop_exit
    _

</llo_original>
